<compile_context>
chip_gen: v7x
topology: tpu7x:2x2x1
jax: 0.10.0
libtpu: 0.0.40
codegen_flags: <defaults>
</compile_context>

<pallas_src>
import numpy as np
import jax
import jax.numpy as jnp
from jax.experimental import pallas as pl
from jax.experimental.pallas import tpu as pltpu


NEG_INF = -1e30


# ----------------------------------------------------------------------------
# In-kernel building block: one GAT convolution (dense adjacency) + fused ReLU
# ----------------------------------------------------------------------------
def _gat_conv(h_in, w_bf16, a_src, a_dst, bias, adj_bias):
    # H = X @ W on the MXU: bf16 operands, f32 accumulation.       [N, F_out]
    h = jnp.dot(h_in.astype(jnp.bfloat16), w_bf16,
                preferred_element_type=jnp.float32)

    # Attention logits, both as VPU multiply + lane reduction:
    #   s_dst[i] = a_dst . H[i]  -> [N, 1]
    #   s_src[j] = a_src . H[j]  -> [N, 1], then a tiny [N,1]->[1,N] transpose
    # (one cheap XLU op) instead of the previous M=1 dot_general matvec.
    s_dst = jnp.sum(h * a_dst, axis=1, keepdims=True)                  # [N, 1]
    s_src = jnp.sum(h * a_src, axis=1, keepdims=True).T                # [1, N]

    # e[i, j] = LeakyReLU(s_dst[i] + s_src[j]), negative slope 0.2
    e = s_dst + s_src                                                  # [N, N]
    e = jnp.where(e >= 0.0, e, 0.2 * e)

    # Masked softmax over source nodes j via the precomputed additive bf16
    # bias (0 on edges/self-loops, -1e30 elsewhere).  No f32 mask is ever
    # materialized or kept resident across layers.
    e = e + adj_bias
    m = jnp.max(e, axis=1, keepdims=True)
    p = jnp.exp(e - m)
    # Guard against a destination row without any unmasked entry.
    denom = jnp.maximum(jnp.sum(p, axis=1, keepdims=True), 1e-20)

    # Aggregate first, normalize after (alpha never materialized).
    agg = jnp.dot(p.astype(jnp.bfloat16), h.astype(jnp.bfloat16),
                  preferred_element_type=jnp.float32)                  # [N, F_out]
    # approx reciprocal runs on the EUP slot (~free); ~1e-3 rel. error.
    # Switch to approx=False if the tolerance ever tightens.
    out = agg * pl.reciprocal(denom, approx=True) + bias
    return jnp.maximum(out, 0.0)                                       # fused ReLU


# ----------------------------------------------------------------------------
# Fused kernel: gc1 -> gc2 -> gc3 -> global_mean_pool -> fc1(ReLU) -> fc2
# ----------------------------------------------------------------------------
def _gat_forward_kernel(x_ref, adjb_ref, pool_ref, mol_ref,
                        w1_ref, as1_ref, ad1_ref, b1_ref,
                        w2_ref, as2_ref, ad2_ref, b2_ref,
                        w3_ref, as3_ref, ad3_ref, b3_ref,
                        fw1a_ref, fw1b_ref, fb1_ref, fw2_ref, fb2_ref,
                        o_ref):
    adj_bias = adjb_ref[...]                       # bf16 [N, N], reused 3x

    h = _gat_conv(x_ref[...], w1_ref[...], as1_ref[...], ad1_ref[...],
                  b1_ref[...], adj_bias)
    h = _gat_conv(h, w2_ref[...], as2_ref[...], ad2_ref[...],
                  b2_ref[...], adj_bias)
    h = _gat_conv(h, w3_ref[...], as3_ref[...], ad3_ref[...],
                  b3_ref[...], adj_bias)

    # global mean pool: hg[b] = mean over nodes of graph b          [B, 256]
    hg = jnp.dot(pool_ref[...].astype(jnp.bfloat16), h.astype(jnp.bfloat16),
                 preferred_element_type=jnp.float32)

    # fc1 on concat([hg, mol_feats], axis=1) as a split matmul, then ReLU.
    z1 = (jnp.dot(hg.astype(jnp.bfloat16), fw1a_ref[...],
                  preferred_element_type=jnp.float32)
          + jnp.dot(mol_ref[...].astype(jnp.bfloat16), fw1b_ref[...],
                    preferred_element_type=jnp.float32)
          + fb1_ref[...])
    z1 = jnp.maximum(z1, 0.0)

    # fc2 — hidden/out widths are zero-padded to 256/128 so this final store
    # is lane-dense (no masked vst).                               [B, 128]
    o_ref[...] = (jnp.dot(z1.astype(jnp.bfloat16), fw2_ref[...],
                          preferred_element_type=jnp.float32)
                  + fb2_ref[...])


def _vmem_limit_bytes(n, b, f_in, ngf, hid_pad, out_pad):
    """Scoped-VMEM limit sized from the actual resident set (+headroom)."""
    f = 256
    adj = n * n * 2                                   # bf16 additive mask
    nsq = 3 * n * n * 4                               # e / p transients (f32)
    acts = 8 * n * f * 4                              # h + bf16 copies + headroom
    wts = ((f_in * f + 2 * f * f) * 2                 # gc weights (bf16)
           + (f * hid_pad + ngf * hid_pad + hid_pad * out_pad) * 2
           + 3 * 3 * f * 4 + (hid_pad + out_pad) * 4)
    io = (n * f_in + b * n + b * ngf + b * (hid_pad + out_pad)) * 4
    total = adj + nsq + acts + wts + io + (2 << 20)
    # At least the 16 MiB v5e default, capped at 64 MiB so it is v7x-safe.
    return int(min(max(total, 16 * 1024 * 1024), 64 * 1024 * 1024))


@jax.jit
def gat_forward(kparams, x, adj_bias, pool_mat, mol_feats):
    n = x.shape[0]
    b = pool_mat.shape[0]
    hid_pad = kparams["fc"][0].shape[1]
    out_pad = kparams["fc"][3].shape[1]
    vmem = pl.BlockSpec(memory_space=pltpu.MemorySpace.VMEM)
    args = (x, adj_bias, pool_mat, mol_feats,
            *kparams["gc1"], *kparams["gc2"], *kparams["gc3"], *kparams["fc"])
    return pl.pallas_call(
        _gat_forward_kernel,
        out_shape=jax.ShapeDtypeStruct((b, out_pad), jnp.float32),
        in_specs=[vmem] * len(args),
        out_specs=vmem,
        compiler_params=pltpu.CompilerParams(
            vmem_limit_bytes=_vmem_limit_bytes(
                n, b, x.shape[1], mol_feats.shape[1], hid_pad, out_pad)),
    )(*args)


# ----------------------------------------------------------------------------
# Pure-JAX reference (same bf16 matmul operands / f32 accumulation path,
# exact division instead of approx reciprocal) for tolerance checking.
# ----------------------------------------------------------------------------
def gat_forward_ref(params, x, adj_bias, pool_mat, mol_feats):
    bf16 = jnp.bfloat16
    adj_b = adj_bias.astype(jnp.float32)

    def layer(h_in, w, a_src, a_dst, bias):
        h = jnp.dot(h_in.astype(bf16), w.astype(bf16),
                    preferred_element_type=jnp.float32)
        s_dst = jnp.sum(h * a_dst, axis=1, keepdims=True)
        s_src = jnp.sum(h * a_src, axis=1, keepdims=True).T
        e = s_dst + s_src
        e = jnp.where(e >= 0.0, e, 0.2 * e)
        e = e + adj_b
        e = e - e.max(axis=1, keepdims=True)
        p = jnp.exp(e)
        alpha = p / p.sum(axis=1, keepdims=True)
        agg = jnp.dot(alpha.astype(bf16), h.astype(bf16),
                      preferred_element_type=jnp.float32)
        return jnp.maximum(agg + bias, 0.0)

    h = layer(x, *params["gc1"])
    h = layer(h, *params["gc2"])
    h = layer(h, *params["gc3"])
    hg = jnp.dot(pool_mat.astype(bf16), h.astype(bf16),
                 preferred_element_type=jnp.float32)
    w1a, w1b, b1, w2, b2 = params["fc"]
    z1 = jnp.maximum(
        jnp.dot(hg.astype(bf16), w1a.astype(bf16),
                preferred_element_type=jnp.float32)
        + jnp.dot(mol_feats.astype(bf16), w1b.astype(bf16),
                  preferred_element_type=jnp.float32)
        + b1, 0.0)
    return (jnp.dot(z1.astype(bf16), w2.astype(bf16),
                    preferred_element_type=jnp.float32) + b2)


# ----------------------------------------------------------------------------
# Deterministic parameter construction + TPU-friendly packing
# ----------------------------------------------------------------------------
def make_gat_conv_params(key, f_in, f_out):
    k1, k2, k3 = jax.random.split(key, 3)
    w = jax.random.normal(k1, (f_in, f_out), jnp.float32) / np.sqrt(f_in)
    a_src = jax.random.normal(k2, (1, f_out), jnp.float32) / np.sqrt(f_out)
    a_dst = jax.random.normal(k3, (1, f_out), jnp.float32) / np.sqrt(f_out)
    bias = jnp.zeros((1, f_out), jnp.float32)
    return (w, a_src, a_dst, bias)


def make_params(key, num_node_feats, num_graph_feats, dim_out):
    ks = jax.random.split(key, 6)
    gc1 = make_gat_conv_params(ks[0], num_node_feats, 256)
    gc2 = make_gat_conv_params(ks[1], 256, 256)
    gc3 = make_gat_conv_params(ks[2], 256, 256)
    fan1 = 256 + num_graph_feats
    w1 = jax.random.normal(ks[3], (fan1, 196), jnp.float32) / np.sqrt(fan1)
    w1a, w1b = w1[:256], w1[256:]                 # split for the fused concat
    b1 = jnp.zeros((1, 196), jnp.float32)
    w2 = jax.random.normal(ks[4], (196, dim_out), jnp.float32) / np.sqrt(196)
    b2 = jnp.zeros((1, dim_out), jnp.float32)
    return {"gc1": gc1, "gc2": gc2, "gc3": gc3,
            "fc": (w1a, w1b, b1, w2, b2)}


def prepare_kernel_params(params, hid_pad=256, out_pad=128):
    """Cast matmul weights to bf16; zero-pad fc head to lane-dense widths."""
    def conv(p):
        w, a_src, a_dst, bias = p
        return (w.astype(jnp.bfloat16), a_src, a_dst, bias)

    w1a, w1b, b1, w2, b2 = params["fc"]
    hid, dim_out = w2.shape
    w1a_p = jnp.zeros((w1a.shape[0], hid_pad), jnp.float32).at[:, :hid].set(w1a)
    w1b_p = jnp.zeros((w1b.shape[0], hid_pad), jnp.float32).at[:, :hid].set(w1b)
    b1_p = jnp.zeros((1, hid_pad), jnp.float32).at[:, :hid].set(b1)
    w2_p = jnp.zeros((hid_pad, out_pad), jnp.float32).at[:hid, :dim_out].set(w2)
    b2_p = jnp.zeros((1, out_pad), jnp.float32).at[:, :dim_out].set(b2)
    return {"gc1": conv(params["gc1"]), "gc2": conv(params["gc2"]),
            "gc3": conv(params["gc3"]),
            "fc": (w1a_p.astype(jnp.bfloat16), w1b_p.astype(jnp.bfloat16),
                   b1_p, w2_p.astype(jnp.bfloat16), b2_p)}


def build_graph_tensors(edge_index, batch, num_nodes, num_graphs):
    """edge_index/batch -> additive bf16 attention mask + mean-pool matrix."""
    adj = np.zeros((num_nodes, num_nodes), dtype=bool)
    src, dst = edge_index
    adj[dst, src] = True                                     # src -> dst messages
    adj[np.arange(num_nodes), np.arange(num_nodes)] = True   # self-loops
    adj_bias = np.where(adj, 0.0, NEG_INF).astype(np.float32)
    pool = np.zeros((num_graphs, num_nodes), dtype=np.float32)
    for b in range(num_graphs):
        idx = np.where(batch == b)[0]
        pool[b, idx] = 1.0 / len(idx)
    return jnp.asarray(adj_bias, dtype=jnp.bfloat16), jnp.asarray(pool)


# ----------------------------------------------------------------------------
if __name__ == "__main__":
    num_node_feats = 16
    num_graph_feats = 8
    dim_out = 4
    nodes_per_graph = 8
    num_graphs = 16                 # 16 graphs x 8 nodes -> N = 128 (lane-dense)
    num_nodes = num_graphs * nodes_per_graph

    key = jax.random.PRNGKey(0)
    k_param, k_x, k_mol = jax.random.split(key, 3)

    params = make_params(k_param, num_node_feats, num_graph_feats, dim_out)
    kparams = prepare_kernel_params(params)

    # node features g.x and graph-level features g.mol_feats
    x = jax.random.normal(k_x, (num_nodes, num_node_feats), jnp.float32)
    mol_feats = jax.random.normal(k_mol, (num_graphs, num_graph_feats),
                                  jnp.float32)

    # g.edge_index: a bidirectional ring inside each graph
    src_list, dst_list = [], []
    for g in range(num_graphs):
        off = g * nodes_per_graph
        for i in range(nodes_per_graph):
            a, b = off + i, off + (i + 1) % nodes_per_graph
            src_list += [a, b]
            dst_list += [b, a]
    edge_index = np.stack([np.array(src_list), np.array(dst_list)])
    batch = np.repeat(np.arange(num_graphs), nodes_per_graph)

    adj_bias, pool_mat = build_graph_tensors(edge_index, batch, num_nodes,
                                             num_graphs)

    out_padded = gat_forward(kparams, x, adj_bias, pool_mat, mol_feats)
    out_padded = jax.block_until_ready(out_padded)
    out = out_padded[:, :dim_out]                  # drop lane-padding columns

    # tolerance-check against the pure-JAX reference (approx reciprocal +
    # op-order differences only; same bf16-operand matmul path).
    ref = gat_forward_ref(params, x, adj_bias, pool_mat, mol_feats)
    assert out.shape == (num_graphs, dim_out)
    assert bool(jnp.all(jnp.isfinite(out)))
    assert jnp.allclose(out, ref, rtol=2e-2, atol=2e-2), (out, ref)
    print("KERNEL_OK")
</pallas_src>

<mosaic_0001>
module attributes {stable_mosaic.version = 11 : i64} {
  func.func @_gat_forward_kernel(%arg0: memref<128x16xf32, #tpu.memory_space<vmem>>, %arg1: memref<128x128xbf16, #tpu.memory_space<vmem>>, %arg2: memref<16x128xf32, #tpu.memory_space<vmem>>, %arg3: memref<16x8xf32, #tpu.memory_space<vmem>>, %arg4: memref<16x256xbf16, #tpu.memory_space<vmem>>, %arg5: memref<1x256xf32, #tpu.memory_space<vmem>>, %arg6: memref<1x256xf32, #tpu.memory_space<vmem>>, %arg7: memref<1x256xf32, #tpu.memory_space<vmem>>, %arg8: memref<256x256xbf16, #tpu.memory_space<vmem>>, %arg9: memref<1x256xf32, #tpu.memory_space<vmem>>, %arg10: memref<1x256xf32, #tpu.memory_space<vmem>>, %arg11: memref<1x256xf32, #tpu.memory_space<vmem>>, %arg12: memref<256x256xbf16, #tpu.memory_space<vmem>>, %arg13: memref<1x256xf32, #tpu.memory_space<vmem>>, %arg14: memref<1x256xf32, #tpu.memory_space<vmem>>, %arg15: memref<1x256xf32, #tpu.memory_space<vmem>>, %arg16: memref<256x256xbf16, #tpu.memory_space<vmem>>, %arg17: memref<8x256xbf16, #tpu.memory_space<vmem>>, %arg18: memref<1x256xf32, #tpu.memory_space<vmem>>, %arg19: memref<256x128xbf16, #tpu.memory_space<vmem>>, %arg20: memref<1x128xf32, #tpu.memory_space<vmem>>, %arg21: memref<16x128xf32, #tpu.memory_space<vmem>>) attributes {dimension_semantics = [], scalar_prefetch = 0 : i64, scratch_operands = 0 : i64, tpu.core_type = #tpu.core_type<tc>} {
    %c0 = arith.constant 0 : index
    %c0_0 = arith.constant 0 : index
    %0 = vector.load %arg1[%c0, %c0_0] : memref<128x128xbf16, #tpu.memory_space<vmem>>, vector<128x128xbf16>
    %c0_1 = arith.constant 0 : index
    %c0_2 = arith.constant 0 : index
    %1 = vector.load %arg0[%c0_1, %c0_2] : memref<128x16xf32, #tpu.memory_space<vmem>>, vector<128x16xf32>
    %c0_3 = arith.constant 0 : index
    %c0_4 = arith.constant 0 : index
    %2 = vector.load %arg4[%c0_3, %c0_4] : memref<16x256xbf16, #tpu.memory_space<vmem>>, vector<16x256xbf16>
    %c0_5 = arith.constant 0 : index
    %c0_6 = arith.constant 0 : index
    %3 = vector.load %arg5[%c0_5, %c0_6] : memref<1x256xf32, #tpu.memory_space<vmem>>, vector<1x256xf32>
    %c0_7 = arith.constant 0 : index
    %c0_8 = arith.constant 0 : index
    %4 = vector.load %arg6[%c0_7, %c0_8] : memref<1x256xf32, #tpu.memory_space<vmem>>, vector<1x256xf32>
    %c0_9 = arith.constant 0 : index
    %c0_10 = arith.constant 0 : index
    %5 = vector.load %arg7[%c0_9, %c0_10] : memref<1x256xf32, #tpu.memory_space<vmem>>, vector<1x256xf32>
    %6 = arith.truncf %1 : vector<128x16xf32> to vector<128x16xbf16>
    %cst = arith.constant dense<0.000000e+00> : vector<128x256xf32>
    %7 = tpu.matmul %6, %2, %cst {dimension_numbers = #tpu.dot_dimension_numbers<[1], [0], [0], [1], [0, 0, 1, 1], [], []>} : vector<128x16xbf16>, vector<16x256xbf16>, vector<128x256xf32> -> vector<128x256xf32>
    %8 = vector.broadcast %4 : vector<1x256xf32> to vector<128x256xf32>
    %9 = arith.mulf %7, %8 : vector<128x256xf32>
    %cst_11 = arith.constant dense<0.000000e+00> : vector<128xf32>
    %10 = vector.multi_reduction <add>, %9, %cst_11 [1] : vector<128x256xf32> to vector<128xf32>
    %11 = vector.shape_cast %10 : vector<128xf32> to vector<128x1xf32>
    %12 = vector.broadcast %3 : vector<1x256xf32> to vector<128x256xf32>
    %13 = arith.mulf %7, %12 : vector<128x256xf32>
    %cst_12 = arith.constant dense<0.000000e+00> : vector<128xf32>
    %14 = vector.multi_reduction <add>, %13, %cst_12 [1] : vector<128x256xf32> to vector<128xf32>
    %15 = vector.shape_cast %14 : vector<128xf32> to vector<128x1xf32>
    %16 = tpu.transpose %15, [1, 0] : vector<128x1xf32> -> vector<1x128xf32>
    %17 = vector.broadcast %11 : vector<128x1xf32> to vector<128x128xf32>
    %18 = vector.broadcast %16 : vector<1x128xf32> to vector<128x128xf32>
    %19 = arith.addf %17, %18 : vector<128x128xf32>
    %cst_13 = arith.constant 0.000000e+00 : f32
    %20 = vector.broadcast %cst_13 : f32 to vector<128x128xf32>
    %21 = arith.cmpf oge, %19, %20 : vector<128x128xf32>
    %cst_14 = arith.constant 2.000000e-01 : f32
    %22 = vector.broadcast %cst_14 : f32 to vector<128x128xf32>
    %23 = arith.mulf %22, %19 : vector<128x128xf32>
    %24 = arith.select %21, %19, %23 : vector<128x128xi1>, vector<128x128xf32>
    %25 = arith.extf %0 : vector<128x128xbf16> to vector<128x128xf32>
    %26 = arith.addf %24, %25 : vector<128x128xf32>
    %cst_15 = arith.constant dense<0xFF800000> : vector<128xf32>
    %27 = vector.multi_reduction <maximumf>, %26, %cst_15 [1] : vector<128x128xf32> to vector<128xf32>
    %28 = vector.shape_cast %27 : vector<128xf32> to vector<128x1xf32>
    %29 = vector.broadcast %28 : vector<128x1xf32> to vector<128x128xf32>
    %30 = arith.subf %26, %29 : vector<128x128xf32>
    %31 = math.exp %30 : vector<128x128xf32>
    %cst_16 = arith.constant dense<0.000000e+00> : vector<128xf32>
    %32 = vector.multi_reduction <add>, %31, %cst_16 [1] : vector<128x128xf32> to vector<128xf32>
    %33 = vector.shape_cast %32 : vector<128xf32> to vector<128x1xf32>
    %cst_17 = arith.constant 9.99999968E-21 : f32
    %34 = vector.broadcast %cst_17 : f32 to vector<128x1xf32>
    %35 = arith.maximumf %33, %34 : vector<128x1xf32>
    %36 = arith.truncf %31 : vector<128x128xf32> to vector<128x128xbf16>
    %37 = arith.truncf %7 : vector<128x256xf32> to vector<128x256xbf16>
    %cst_18 = arith.constant dense<0.000000e+00> : vector<128x256xf32>
    %38 = tpu.matmul %36, %37, %cst_18 {dimension_numbers = #tpu.dot_dimension_numbers<[1], [0], [0], [1], [0, 0, 1, 1], [], []>} : vector<128x128xbf16>, vector<128x256xbf16>, vector<128x256xf32> -> vector<128x256xf32>
    %39 = tpu.reciprocal %35 {approx = true} : vector<128x1xf32> -> vector<128x1xf32>
    %40 = vector.broadcast %39 : vector<128x1xf32> to vector<128x256xf32>
    %41 = arith.mulf %38, %40 : vector<128x256xf32>
    %42 = vector.broadcast %5 : vector<1x256xf32> to vector<128x256xf32>
    %43 = arith.addf %41, %42 : vector<128x256xf32>
    %cst_19 = arith.constant 0.000000e+00 : f32
    %44 = vector.broadcast %cst_19 : f32 to vector<128x256xf32>
    %45 = arith.maximumf %43, %44 : vector<128x256xf32>
    %c0_20 = arith.constant 0 : index
    %c0_21 = arith.constant 0 : index
    %46 = vector.load %arg8[%c0_20, %c0_21] : memref<256x256xbf16, #tpu.memory_space<vmem>>, vector<256x256xbf16>
    %c0_22 = arith.constant 0 : index
    %c0_23 = arith.constant 0 : index
    %47 = vector.load %arg9[%c0_22, %c0_23] : memref<1x256xf32, #tpu.memory_space<vmem>>, vector<1x256xf32>
    %c0_24 = arith.constant 0 : index
    %c0_25 = arith.constant 0 : index
    %48 = vector.load %arg10[%c0_24, %c0_25] : memref<1x256xf32, #tpu.memory_space<vmem>>, vector<1x256xf32>
    %c0_26 = arith.constant 0 : index
    %c0_27 = arith.constant 0 : index
    %49 = vector.load %arg11[%c0_26, %c0_27] : memref<1x256xf32, #tpu.memory_space<vmem>>, vector<1x256xf32>
    %50 = arith.truncf %45 : vector<128x256xf32> to vector<128x256xbf16>
    %cst_28 = arith.constant dense<0.000000e+00> : vector<128x256xf32>
    %51 = tpu.matmul %50, %46, %cst_28 {dimension_numbers = #tpu.dot_dimension_numbers<[1], [0], [0], [1], [0, 0, 1, 1], [], []>} : vector<128x256xbf16>, vector<256x256xbf16>, vector<128x256xf32> -> vector<128x256xf32>
    %52 = vector.broadcast %48 : vector<1x256xf32> to vector<128x256xf32>
    %53 = arith.mulf %51, %52 : vector<128x256xf32>
    %cst_29 = arith.constant dense<0.000000e+00> : vector<128xf32>
    %54 = vector.multi_reduction <add>, %53, %cst_29 [1] : vector<128x256xf32> to vector<128xf32>
    %55 = vector.shape_cast %54 : vector<128xf32> to vector<128x1xf32>
    %56 = vector.broadcast %47 : vector<1x256xf32> to vector<128x256xf32>
    %57 = arith.mulf %51, %56 : vector<128x256xf32>
    %cst_30 = arith.constant dense<0.000000e+00> : vector<128xf32>
    %58 = vector.multi_reduction <add>, %57, %cst_30 [1] : vector<128x256xf32> to vector<128xf32>
    %59 = vector.shape_cast %58 : vector<128xf32> to vector<128x1xf32>
    %60 = tpu.transpose %59, [1, 0] : vector<128x1xf32> -> vector<1x128xf32>
    %61 = vector.broadcast %55 : vector<128x1xf32> to vector<128x128xf32>
    %62 = vector.broadcast %60 : vector<1x128xf32> to vector<128x128xf32>
    %63 = arith.addf %61, %62 : vector<128x128xf32>
    %cst_31 = arith.constant 0.000000e+00 : f32
    %64 = vector.broadcast %cst_31 : f32 to vector<128x128xf32>
    %65 = arith.cmpf oge, %63, %64 : vector<128x128xf32>
    %cst_32 = arith.constant 2.000000e-01 : f32
    %66 = vector.broadcast %cst_32 : f32 to vector<128x128xf32>
    %67 = arith.mulf %66, %63 : vector<128x128xf32>
    %68 = arith.select %65, %63, %67 : vector<128x128xi1>, vector<128x128xf32>
    %69 = arith.extf %0 : vector<128x128xbf16> to vector<128x128xf32>
    %70 = arith.addf %68, %69 : vector<128x128xf32>
    %cst_33 = arith.constant dense<0xFF800000> : vector<128xf32>
    %71 = vector.multi_reduction <maximumf>, %70, %cst_33 [1] : vector<128x128xf32> to vector<128xf32>
    %72 = vector.shape_cast %71 : vector<128xf32> to vector<128x1xf32>
    %73 = vector.broadcast %72 : vector<128x1xf32> to vector<128x128xf32>
    %74 = arith.subf %70, %73 : vector<128x128xf32>
    %75 = math.exp %74 : vector<128x128xf32>
    %cst_34 = arith.constant dense<0.000000e+00> : vector<128xf32>
    %76 = vector.multi_reduction <add>, %75, %cst_34 [1] : vector<128x128xf32> to vector<128xf32>
    %77 = vector.shape_cast %76 : vector<128xf32> to vector<128x1xf32>
    %cst_35 = arith.constant 9.99999968E-21 : f32
    %78 = vector.broadcast %cst_35 : f32 to vector<128x1xf32>
    %79 = arith.maximumf %77, %78 : vector<128x1xf32>
    %80 = arith.truncf %75 : vector<128x128xf32> to vector<128x128xbf16>
    %81 = arith.truncf %51 : vector<128x256xf32> to vector<128x256xbf16>
    %cst_36 = arith.constant dense<0.000000e+00> : vector<128x256xf32>
    %82 = tpu.matmul %80, %81, %cst_36 {dimension_numbers = #tpu.dot_dimension_numbers<[1], [0], [0], [1], [0, 0, 1, 1], [], []>} : vector<128x128xbf16>, vector<128x256xbf16>, vector<128x256xf32> -> vector<128x256xf32>
    %83 = tpu.reciprocal %79 {approx = true} : vector<128x1xf32> -> vector<128x1xf32>
    %84 = vector.broadcast %83 : vector<128x1xf32> to vector<128x256xf32>
    %85 = arith.mulf %82, %84 : vector<128x256xf32>
    %86 = vector.broadcast %49 : vector<1x256xf32> to vector<128x256xf32>
    %87 = arith.addf %85, %86 : vector<128x256xf32>
    %cst_37 = arith.constant 0.000000e+00 : f32
    %88 = vector.broadcast %cst_37 : f32 to vector<128x256xf32>
    %89 = arith.maximumf %87, %88 : vector<128x256xf32>
    %c0_38 = arith.constant 0 : index
    %c0_39 = arith.constant 0 : index
    %90 = vector.load %arg12[%c0_38, %c0_39] : memref<256x256xbf16, #tpu.memory_space<vmem>>, vector<256x256xbf16>
    %c0_40 = arith.constant 0 : index
    %c0_41 = arith.constant 0 : index
    %91 = vector.load %arg13[%c0_40, %c0_41] : memref<1x256xf32, #tpu.memory_space<vmem>>, vector<1x256xf32>
    %c0_42 = arith.constant 0 : index
    %c0_43 = arith.constant 0 : index
    %92 = vector.load %arg14[%c0_42, %c0_43] : memref<1x256xf32, #tpu.memory_space<vmem>>, vector<1x256xf32>
    %c0_44 = arith.constant 0 : index
    %c0_45 = arith.constant 0 : index
    %93 = vector.load %arg15[%c0_44, %c0_45] : memref<1x256xf32, #tpu.memory_space<vmem>>, vector<1x256xf32>
    %94 = arith.truncf %89 : vector<128x256xf32> to vector<128x256xbf16>
    %cst_46 = arith.constant dense<0.000000e+00> : vector<128x256xf32>
    %95 = tpu.matmul %94, %90, %cst_46 {dimension_numbers = #tpu.dot_dimension_numbers<[1], [0], [0], [1], [0, 0, 1, 1], [], []>} : vector<128x256xbf16>, vector<256x256xbf16>, vector<128x256xf32> -> vector<128x256xf32>
    %96 = vector.broadcast %92 : vector<1x256xf32> to vector<128x256xf32>
    %97 = arith.mulf %95, %96 : vector<128x256xf32>
    %cst_47 = arith.constant dense<0.000000e+00> : vector<128xf32>
    %98 = vector.multi_reduction <add>, %97, %cst_47 [1] : vector<128x256xf32> to vector<128xf32>
    %99 = vector.shape_cast %98 : vector<128xf32> to vector<128x1xf32>
    %100 = vector.broadcast %91 : vector<1x256xf32> to vector<128x256xf32>
    %101 = arith.mulf %95, %100 : vector<128x256xf32>
    %cst_48 = arith.constant dense<0.000000e+00> : vector<128xf32>
    %102 = vector.multi_reduction <add>, %101, %cst_48 [1] : vector<128x256xf32> to vector<128xf32>
    %103 = vector.shape_cast %102 : vector<128xf32> to vector<128x1xf32>
    %104 = tpu.transpose %103, [1, 0] : vector<128x1xf32> -> vector<1x128xf32>
    %105 = vector.broadcast %99 : vector<128x1xf32> to vector<128x128xf32>
    %106 = vector.broadcast %104 : vector<1x128xf32> to vector<128x128xf32>
    %107 = arith.addf %105, %106 : vector<128x128xf32>
    %cst_49 = arith.constant 0.000000e+00 : f32
    %108 = vector.broadcast %cst_49 : f32 to vector<128x128xf32>
    %109 = arith.cmpf oge, %107, %108 : vector<128x128xf32>
    %cst_50 = arith.constant 2.000000e-01 : f32
    %110 = vector.broadcast %cst_50 : f32 to vector<128x128xf32>
    %111 = arith.mulf %110, %107 : vector<128x128xf32>
    %112 = arith.select %109, %107, %111 : vector<128x128xi1>, vector<128x128xf32>
    %113 = arith.extf %0 : vector<128x128xbf16> to vector<128x128xf32>
    %114 = arith.addf %112, %113 : vector<128x128xf32>
    %cst_51 = arith.constant dense<0xFF800000> : vector<128xf32>
    %115 = vector.multi_reduction <maximumf>, %114, %cst_51 [1] : vector<128x128xf32> to vector<128xf32>
    %116 = vector.shape_cast %115 : vector<128xf32> to vector<128x1xf32>
    %117 = vector.broadcast %116 : vector<128x1xf32> to vector<128x128xf32>
    %118 = arith.subf %114, %117 : vector<128x128xf32>
    %119 = math.exp %118 : vector<128x128xf32>
    %cst_52 = arith.constant dense<0.000000e+00> : vector<128xf32>
    %120 = vector.multi_reduction <add>, %119, %cst_52 [1] : vector<128x128xf32> to vector<128xf32>
    %121 = vector.shape_cast %120 : vector<128xf32> to vector<128x1xf32>
    %cst_53 = arith.constant 9.99999968E-21 : f32
    %122 = vector.broadcast %cst_53 : f32 to vector<128x1xf32>
    %123 = arith.maximumf %121, %122 : vector<128x1xf32>
    %124 = arith.truncf %119 : vector<128x128xf32> to vector<128x128xbf16>
    %125 = arith.truncf %95 : vector<128x256xf32> to vector<128x256xbf16>
    %cst_54 = arith.constant dense<0.000000e+00> : vector<128x256xf32>
    %126 = tpu.matmul %124, %125, %cst_54 {dimension_numbers = #tpu.dot_dimension_numbers<[1], [0], [0], [1], [0, 0, 1, 1], [], []>} : vector<128x128xbf16>, vector<128x256xbf16>, vector<128x256xf32> -> vector<128x256xf32>
    %127 = tpu.reciprocal %123 {approx = true} : vector<128x1xf32> -> vector<128x1xf32>
    %128 = vector.broadcast %127 : vector<128x1xf32> to vector<128x256xf32>
    %129 = arith.mulf %126, %128 : vector<128x256xf32>
    %130 = vector.broadcast %93 : vector<1x256xf32> to vector<128x256xf32>
    %131 = arith.addf %129, %130 : vector<128x256xf32>
    %cst_55 = arith.constant 0.000000e+00 : f32
    %132 = vector.broadcast %cst_55 : f32 to vector<128x256xf32>
    %133 = arith.maximumf %131, %132 : vector<128x256xf32>
    %c0_56 = arith.constant 0 : index
    %c0_57 = arith.constant 0 : index
    %134 = vector.load %arg2[%c0_56, %c0_57] : memref<16x128xf32, #tpu.memory_space<vmem>>, vector<16x128xf32>
    %135 = arith.truncf %134 : vector<16x128xf32> to vector<16x128xbf16>
    %136 = arith.truncf %133 : vector<128x256xf32> to vector<128x256xbf16>
    %cst_58 = arith.constant dense<0.000000e+00> : vector<16x256xf32>
    %137 = tpu.matmul %135, %136, %cst_58 {dimension_numbers = #tpu.dot_dimension_numbers<[1], [0], [0], [1], [0, 0, 1, 1], [], []>} : vector<16x128xbf16>, vector<128x256xbf16>, vector<16x256xf32> -> vector<16x256xf32>
    %138 = arith.truncf %137 : vector<16x256xf32> to vector<16x256xbf16>
    %c0_59 = arith.constant 0 : index
    %c0_60 = arith.constant 0 : index
    %139 = vector.load %arg16[%c0_59, %c0_60] : memref<256x256xbf16, #tpu.memory_space<vmem>>, vector<256x256xbf16>
    %cst_61 = arith.constant dense<0.000000e+00> : vector<16x256xf32>
    %140 = tpu.matmul %138, %139, %cst_61 {dimension_numbers = #tpu.dot_dimension_numbers<[1], [0], [0], [1], [0, 0, 1, 1], [], []>} : vector<16x256xbf16>, vector<256x256xbf16>, vector<16x256xf32> -> vector<16x256xf32>
    %c0_62 = arith.constant 0 : index
    %c0_63 = arith.constant 0 : index
    %141 = vector.load %arg3[%c0_62, %c0_63] : memref<16x8xf32, #tpu.memory_space<vmem>>, vector<16x8xf32>
    %142 = arith.truncf %141 : vector<16x8xf32> to vector<16x8xbf16>
    %c0_64 = arith.constant 0 : index
    %c0_65 = arith.constant 0 : index
    %143 = vector.load %arg17[%c0_64, %c0_65] : memref<8x256xbf16, #tpu.memory_space<vmem>>, vector<8x256xbf16>
    %cst_66 = arith.constant dense<0.000000e+00> : vector<16x256xf32>
    %144 = tpu.matmul %142, %143, %cst_66 {dimension_numbers = #tpu.dot_dimension_numbers<[1], [0], [0], [1], [0, 0, 1, 1], [], []>} : vector<16x8xbf16>, vector<8x256xbf16>, vector<16x256xf32> -> vector<16x256xf32>
    %145 = arith.addf %140, %144 : vector<16x256xf32>
    %c0_67 = arith.constant 0 : index
    %c0_68 = arith.constant 0 : index
    %146 = vector.load %arg18[%c0_67, %c0_68] : memref<1x256xf32, #tpu.memory_space<vmem>>, vector<1x256xf32>
    %147 = vector.broadcast %146 : vector<1x256xf32> to vector<16x256xf32>
    %148 = arith.addf %145, %147 : vector<16x256xf32>
    %cst_69 = arith.constant 0.000000e+00 : f32
    %149 = vector.broadcast %cst_69 : f32 to vector<16x256xf32>
    %150 = arith.maximumf %148, %149 : vector<16x256xf32>
    %151 = arith.truncf %150 : vector<16x256xf32> to vector<16x256xbf16>
    %c0_70 = arith.constant 0 : index
    %c0_71 = arith.constant 0 : index
    %152 = vector.load %arg19[%c0_70, %c0_71] : memref<256x128xbf16, #tpu.memory_space<vmem>>, vector<256x128xbf16>
    %cst_72 = arith.constant dense<0.000000e+00> : vector<16x128xf32>
    %153 = tpu.matmul %151, %152, %cst_72 {dimension_numbers = #tpu.dot_dimension_numbers<[1], [0], [0], [1], [0, 0, 1, 1], [], []>} : vector<16x256xbf16>, vector<256x128xbf16>, vector<16x128xf32> -> vector<16x128xf32>
    %c0_73 = arith.constant 0 : index
    %c0_74 = arith.constant 0 : index
    %154 = vector.load %arg20[%c0_73, %c0_74] : memref<1x128xf32, #tpu.memory_space<vmem>>, vector<1x128xf32>
    %155 = vector.broadcast %154 : vector<1x128xf32> to vector<16x128xf32>
    %156 = arith.addf %153, %155 : vector<16x128xf32>
    %c0_75 = arith.constant 0 : index
    %c0_76 = arith.constant 0 : index
    %157 = vector.load %arg21[%c0_75, %c0_76] : memref<16x128xf32, #tpu.memory_space<vmem>>, vector<16x128xf32>
    tpu.vector_store %arg21[%c0_75, %c0_76], %156 {strides = array<i32>} : memref<16x128xf32, #tpu.memory_space<vmem>>, vector<16x128xf32>,
    return
  }
}

</mosaic_0001>

<llo_original>
// kernel: gat_forward.1
$region0: #{gat_forward.1}
  #allocation0 [shape = 'u32[]', space=smem, size = 0x4, offset = 0x4, fixed_abs, tag = 'smem constant byte address 0x4 - core index']
  #allocation1 [shape = 'u32[144,128]{1,0:T(1,128)}', space=vmem, size = 0x12000, scoped, tag = 'internal scratch']
  %s0 = inlined_call_operand.vmem [shape: f32[128,16], index: 0, kind: input, shape index: {}]
  %s1 = inlined_call_operand.vmem [shape: bf16[128,128], index: 1, kind: input, shape index: {}]
  %s2 = inlined_call_operand.vmem [shape: f32[16,128], index: 2, kind: input, shape index: {}]
  %s3 = inlined_call_operand.vmem [shape: f32[16,8], index: 3, kind: input, shape index: {}]
  %s4 = inlined_call_operand.hbm [shape: bf16[16,256], index: 4, kind: input, shape index: {}]
  %s5 = inlined_call_operand.hbm [shape: f32[1,256], index: 5, kind: input, shape index: {}]
  %s6 = inlined_call_operand.hbm [shape: f32[1,256], index: 6, kind: input, shape index: {}]
  %s7 = inlined_call_operand.hbm [shape: f32[1,256], index: 7, kind: input, shape index: {}]
  %s8 = inlined_call_operand.hbm [shape: bf16[256,256], index: 8, kind: input, shape index: {}]
  %s9 = inlined_call_operand.hbm [shape: f32[1,256], index: 9, kind: input, shape index: {}]
  %s10 = inlined_call_operand.hbm [shape: f32[1,256], index: 10, kind: input, shape index: {}]
  %s11 = inlined_call_operand.hbm [shape: f32[1,256], index: 11, kind: input, shape index: {}]
  %s12 = inlined_call_operand.hbm [shape: bf16[256,256], index: 12, kind: input, shape index: {}]
  %s13 = inlined_call_operand.hbm [shape: f32[1,256], index: 13, kind: input, shape index: {}]
  %s14 = inlined_call_operand.hbm [shape: f32[1,256], index: 14, kind: input, shape index: {}]
  %s15 = inlined_call_operand.hbm [shape: f32[1,256], index: 15, kind: input, shape index: {}]
  %s16 = inlined_call_operand.hbm [shape: bf16[256,256], index: 16, kind: input, shape index: {}]
  %s17 = inlined_call_operand.hbm [shape: bf16[8,256], index: 17, kind: input, shape index: {}]
  %s18 = inlined_call_operand.hbm [shape: f32[1,256], index: 18, kind: input, shape index: {}]
  %s19 = inlined_call_operand.vmem [shape: bf16[256,128], index: 19, kind: input, shape index: {}]
  %s20 = inlined_call_operand.hbm [shape: f32[1,128], index: 20, kind: input, shape index: {}]
  %s21 = inlined_call_operand.hbm [shape: f32[16,128], index: 21, kind: output, shape index: {}]
  %s22 = sld [smem:[#allocation0]]
  $region158: #{gat_forward.1} parent=0
    _
  %s24 = ssub.s32 1, %s22
  %s25 = scalar_select 0, %s24, %s22
  $region1: #{gat_forward.1} parent=0
    #allocation2 [shape = 'u8[8192]{0}', space=vmem, size = 0x2000, scoped, tag = 'input window, operand 4, single buffered']
    #allocation3 [shape = 's32[1]{0}', space=sflag, size = 0x4, scoped, tag = 'scoped memory for gat_forward.1']
    #allocation4 [shape = 's32[1]{0}', space=sflag, size = 0x4, scoped, tag = 'scoped memory for gat_forward.1']
    #allocation5 [shape = 'u8[1024]{0}', space=vmem, size = 0x400, scoped, tag = 'input window, operand 5, single buffered']
    #allocation6 [shape = 's32[1]{0}', space=sflag, size = 0x4, scoped, tag = 'scoped memory for gat_forward.1']
    #allocation7 [shape = 'u8[1024]{0}', space=vmem, size = 0x400, scoped, tag = 'input window, operand 6, single buffered']
    #allocation8 [shape = 'u8[1024]{0}', space=vmem, size = 0x400, scoped, tag = 'input window, operand 7, single buffered']
    #allocation9 [shape = 's32[1]{0}', space=sflag, size = 0x4, scoped, tag = 'scoped memory for gat_forward.1']
    #allocation10 [shape = 'u8[131072]{0}', space=vmem, size = 0x20000, scoped, tag = 'input window, operand 8, single buffered']
    #allocation11 [shape = 'u8[1024]{0}', space=vmem, size = 0x400, scoped, tag = 'input window, operand 9, single buffered']
    #allocation12 [shape = 's32[1]{0}', space=sflag, size = 0x4, scoped, tag = 'scoped memory for gat_forward.1']
    #allocation13 [shape = 'u8[1024]{0}', space=vmem, size = 0x400, scoped, tag = 'input window, operand 10, single buffered']
    #allocation14 [shape = 'u8[1024]{0}', space=vmem, size = 0x400, scoped, tag = 'input window, operand 11, single buffered']
    #allocation15 [shape = 's32[1]{0}', space=sflag, size = 0x4, scoped, tag = 'scoped memory for gat_forward.1']
    #allocation16 [shape = 'u8[131072]{0}', space=vmem, size = 0x20000, scoped, tag = 'input window, operand 12, single buffered']
    #allocation17 [shape = 'u8[1024]{0}', space=vmem, size = 0x400, scoped, tag = 'input window, operand 13, single buffered']
    #allocation18 [shape = 's32[1]{0}', space=sflag, size = 0x4, scoped, tag = 'scoped memory for gat_forward.1']
    #allocation19 [shape = 'u8[1024]{0}', space=vmem, size = 0x400, scoped, tag = 'input window, operand 14, single buffered']
    #allocation20 [shape = 'u8[1024]{0}', space=vmem, size = 0x400, scoped, tag = 'input window, operand 15, single buffered']
    #allocation21 [shape = 's32[1]{0}', space=sflag, size = 0x4, scoped, tag = 'scoped memory for gat_forward.1']
    #allocation22 [shape = 'u8[131072]{0}', space=vmem, size = 0x20000, scoped, tag = 'input window, operand 16, single buffered']
    #allocation23 [shape = 'u8[4096]{0}', space=vmem, size = 0x1000, scoped, tag = 'input window, operand 17, single buffered']
    #allocation24 [shape = 's32[1]{0}', space=sflag, size = 0x4, scoped, tag = 'scoped memory for gat_forward.1']
    #allocation25 [shape = 'u8[1024]{0}', space=vmem, size = 0x400, scoped, tag = 'input window, operand 18, single buffered']
    #allocation26 [shape = 'u8[512]{0}', space=vmem, size = 0x400, scoped, tag = 'input window, operand 20, single buffered']
    #allocation27 [shape = 's32[1]{0}', space=sflag, size = 0x4, scoped, tag = 'scoped memory for gat_forward.1']
    #allocation28 [shape = 'u8[8192]{0}', space=vmem, size = 0x2000, scoped, tag = 'output window, operand 0, single buffered']
    %26 = vsyncpa [#allocation3], 0
    %27 = vsyncpa [#allocation6], 0
    %28 = vsyncpa [#allocation9], 0
    %29 = vsyncpa [#allocation12], 0
    %30 = vsyncpa [#allocation15], 0
    %31 = vsyncpa [#allocation18], 0
    %32 = vsyncpa [#allocation21], 0
    %33 = vsyncpa [#allocation24], 0
    %34 = vsyncpa [#allocation27], 0
    %35 = vsyncpa [#allocation4], 0
    // Predicated region
    $region2: #{gat_forward.1} parent=1 // pred_check
      _
    $region3: #{gat_forward.1} parent=1 // pred_check_branch
      %37 = sbr.rel (0) target = $region5
    $region4: #{gat_forward.1} parent=1 // pred_region
      _
    $region5: #{gat_forward.1} parent=1 // pred_fallthru
      _
    // Predicated region
    $region6: #{gat_forward.1} parent=1 // pred_check
      _
    $region7: #{gat_forward.1} parent=1 // pred_check_branch
      %39 = sbr.rel (0) target = $region9
    $region8: #{gat_forward.1} parent=1 // pred_region
      _
    $region9: #{gat_forward.1} parent=1 // pred_fallthru
      _
    // Predicated region
    $region10: #{gat_forward.1} parent=1 // pred_check
      _
    $region11: #{gat_forward.1} parent=1 // pred_check_branch
      %41 = sbr.rel (0) target = $region13
    $region12: #{gat_forward.1} parent=1 // pred_region
      _
    $region13: #{gat_forward.1} parent=1 // pred_fallthru
      _
    // Predicated region
    $region14: #{gat_forward.1} parent=1 // pred_check
      _
    $region15: #{gat_forward.1} parent=1 // pred_check_branch
      %43 = sbr.rel (0) target = $region17
    $region16: #{gat_forward.1} parent=1 // pred_region
      _
    $region17: #{gat_forward.1} parent=1 // pred_fallthru
      _
    // Predicated region
    $region18: #{gat_forward.1} parent=1 // pred_check
      _
    $region19: #{gat_forward.1} parent=1 // pred_check_branch
      %45 = sbr.rel (0) target = $region21
    $region20: #{gat_forward.1} parent=1 // pred_region
      %s47 = ssub.s32 256, 256
      %48 = vsyncadd [#allocation3], %s47
      %s49 = sshll.u32 [#allocation2], 4
      %s50 = int_to_ptr.vmem [resolvable:$true] %s49
      %55 = dma.hbm_to_vmem [thread:$0]  %s4, 256, %s50, [#allocation3], 128, 128, 8
    $region21: #{gat_forward.1} parent=1 // pred_fallthru
      _
    // Predicated region
    $region22: #{gat_forward.1} parent=1 // pred_check
      _
    $region23: #{gat_forward.1} parent=1 // pred_check_branch
      %57 = sbr.rel (0) target = $region25
    $region24: #{gat_forward.1} parent=1 // pred_region
      %s59 = ssub.s32 32, 32
      %60 = vsyncadd [#allocation6], %s59
      %s62 = sshll.u32 [#allocation5], 4
      %s63 = int_to_ptr.vmem [resolvable:$true] %s62
      %65 = dma.hbm_to_vmem [thread:$0]  %s5, 32, %s63, [#allocation6]
    $region25: #{gat_forward.1} parent=1 // pred_fallthru
      _
    // Predicated region
    $region26: #{gat_forward.1} parent=1 // pred_check
      _
    $region27: #{gat_forward.1} parent=1 // pred_check_branch
      %67 = sbr.rel (0) target = $region29
    $region28: #{gat_forward.1} parent=1 // pred_region
      %s69 = ssub.s32 32, 32
      %70 = vsyncadd [#allocation6], %s69
      %s72 = sshll.u32 [#allocation7], 4
      %s73 = int_to_ptr.vmem [resolvable:$true] %s72
      %75 = dma.hbm_to_vmem [thread:$0]  %s6, 32, %s73, [#allocation6]
    $region29: #{gat_forward.1} parent=1 // pred_fallthru
      _
    // Predicated region
    $region30: #{gat_forward.1} parent=1 // pred_check
      _
    $region31: #{gat_forward.1} parent=1 // pred_check_branch
      %77 = sbr.rel (0) target = $region33
    $region32: #{gat_forward.1} parent=1 // pred_region
      %s79 = ssub.s32 32, 32
      %80 = vsyncadd [#allocation9], %s79
      %s82 = sshll.u32 [#allocation8], 4
      %s83 = int_to_ptr.vmem [resolvable:$true] %s82
      %85 = dma.hbm_to_vmem [thread:$0]  %s7, 32, %s83, [#allocation9]
    $region33: #{gat_forward.1} parent=1 // pred_fallthru
      _
    // Predicated region
    $region34: #{gat_forward.1} parent=1 // pred_check
      _
    $region35: #{gat_forward.1} parent=1 // pred_check_branch
      %87 = sbr.rel (0) target = $region37
    $region36: #{gat_forward.1} parent=1 // pred_region
      %s89 = ssub.s32 4096, 4096
      %90 = vsyncadd [#allocation9], %s89
      %s91 = sshll.u32 [#allocation10], 4
      %s92 = int_to_ptr.vmem [resolvable:$true] %s91
      %97 = dma.hbm_to_vmem [thread:$0]  %s8, 4096, %s92, [#allocation9], 128, 128, 8
    $region37: #{gat_forward.1} parent=1 // pred_fallthru
      _
    // Predicated region
    $region38: #{gat_forward.1} parent=1 // pred_check
      _
    $region39: #{gat_forward.1} parent=1 // pred_check_branch
      %99 = sbr.rel (0) target = $region41
    $region40: #{gat_forward.1} parent=1 // pred_region
      %s101 = ssub.s32 32, 32
      %102 = vsyncadd [#allocation12], %s101
      %s104 = sshll.u32 [#allocation11], 4
      %s105 = int_to_ptr.vmem [resolvable:$true] %s104
      %107 = dma.hbm_to_vmem [thread:$0]  %s9, 32, %s105, [#allocation12]
    $region41: #{gat_forward.1} parent=1 // pred_fallthru
      _
    // Predicated region
    $region42: #{gat_forward.1} parent=1 // pred_check
      _
    $region43: #{gat_forward.1} parent=1 // pred_check_branch
      %109 = sbr.rel (0) target = $region45
    $region44: #{gat_forward.1} parent=1 // pred_region
      %s111 = ssub.s32 32, 32
      %112 = vsyncadd [#allocation12], %s111
      %s114 = sshll.u32 [#allocation13], 4
      %s115 = int_to_ptr.vmem [resolvable:$true] %s114
      %117 = dma.hbm_to_vmem [thread:$0]  %s10, 32, %s115, [#allocation12]
    $region45: #{gat_forward.1} parent=1 // pred_fallthru
      _
    // Predicated region
    $region46: #{gat_forward.1} parent=1 // pred_check
      _
    $region47: #{gat_forward.1} parent=1 // pred_check_branch
      %119 = sbr.rel (0) target = $region49
    $region48: #{gat_forward.1} parent=1 // pred_region
      %s121 = ssub.s32 32, 32
      %122 = vsyncadd [#allocation15], %s121
      %s124 = sshll.u32 [#allocation14], 4
      %s125 = int_to_ptr.vmem [resolvable:$true] %s124
      %127 = dma.hbm_to_vmem [thread:$0]  %s11, 32, %s125, [#allocation15]
    $region49: #{gat_forward.1} parent=1 // pred_fallthru
      _
    // Predicated region
    $region50: #{gat_forward.1} parent=1 // pred_check
      _
    $region51: #{gat_forward.1} parent=1 // pred_check_branch
      %129 = sbr.rel (0) target = $region53
    $region52: #{gat_forward.1} parent=1 // pred_region
      %s131 = ssub.s32 4096, 4096
      %132 = vsyncadd [#allocation15], %s131
      %s133 = sshll.u32 [#allocation16], 4
      %s134 = int_to_ptr.vmem [resolvable:$true] %s133
      %139 = dma.hbm_to_vmem [thread:$0]  %s12, 4096, %s134, [#allocation15], 128, 128, 8
    $region53: #{gat_forward.1} parent=1 // pred_fallthru
      _
    // Predicated region
    $region54: #{gat_forward.1} parent=1 // pred_check
      _
    $region55: #{gat_forward.1} parent=1 // pred_check_branch
      %141 = sbr.rel (0) target = $region57
    $region56: #{gat_forward.1} parent=1 // pred_region
      %s143 = ssub.s32 32, 32
      %144 = vsyncadd [#allocation18], %s143
      %s146 = sshll.u32 [#allocation17], 4
      %s147 = int_to_ptr.vmem [resolvable:$true] %s146
      %149 = dma.hbm_to_vmem [thread:$0]  %s13, 32, %s147, [#allocation18]
    $region57: #{gat_forward.1} parent=1 // pred_fallthru
      _
    // Predicated region
    $region58: #{gat_forward.1} parent=1 // pred_check
      _
    $region59: #{gat_forward.1} parent=1 // pred_check_branch
      %151 = sbr.rel (0) target = $region61
    $region60: #{gat_forward.1} parent=1 // pred_region
      %s153 = ssub.s32 32, 32
      %154 = vsyncadd [#allocation18], %s153
      %s156 = sshll.u32 [#allocation19], 4
      %s157 = int_to_ptr.vmem [resolvable:$true] %s156
      %159 = dma.hbm_to_vmem [thread:$0]  %s14, 32, %s157, [#allocation18]
    $region61: #{gat_forward.1} parent=1 // pred_fallthru
      _
    // Predicated region
    $region62: #{gat_forward.1} parent=1 // pred_check
      _
    $region63: #{gat_forward.1} parent=1 // pred_check_branch
      %161 = sbr.rel (0) target = $region65
    $region64: #{gat_forward.1} parent=1 // pred_region
      %s163 = ssub.s32 32, 32
      %164 = vsyncadd [#allocation21], %s163
      %s166 = sshll.u32 [#allocation20], 4
      %s167 = int_to_ptr.vmem [resolvable:$true] %s166
      %169 = dma.hbm_to_vmem [thread:$0]  %s15, 32, %s167, [#allocation21]
    $region65: #{gat_forward.1} parent=1 // pred_fallthru
      _
    // Predicated region
    $region66: #{gat_forward.1} parent=1 // pred_check
      _
    $region67: #{gat_forward.1} parent=1 // pred_check_branch
      %171 = sbr.rel (0) target = $region69
    $region68: #{gat_forward.1} parent=1 // pred_region
      %s173 = ssub.s32 4096, 4096
      %174 = vsyncadd [#allocation21], %s173
      %s175 = sshll.u32 [#allocation22], 4
      %s176 = int_to_ptr.vmem [resolvable:$true] %s175
      %181 = dma.hbm_to_vmem [thread:$0]  %s16, 4096, %s176, [#allocation21], 128, 128, 8
    $region69: #{gat_forward.1} parent=1 // pred_fallthru
      _
    // Predicated region
    $region70: #{gat_forward.1} parent=1 // pred_check
      _
    $region71: #{gat_forward.1} parent=1 // pred_check_branch
      %183 = sbr.rel (0) target = $region73
    $region72: #{gat_forward.1} parent=1 // pred_region
      %s185 = ssub.s32 128, 128
      %186 = vsyncadd [#allocation24], %s185
      %s188 = sshll.u32 [#allocation23], 4
      %s189 = int_to_ptr.vmem [resolvable:$true] %s188
      %191 = dma.hbm_to_vmem [thread:$0]  %s17, 128, %s189, [#allocation24]
    $region73: #{gat_forward.1} parent=1 // pred_fallthru
      _
    // Predicated region
    $region74: #{gat_forward.1} parent=1 // pred_check
      _
    $region75: #{gat_forward.1} parent=1 // pred_check_branch
      %193 = sbr.rel (0) target = $region77
    $region76: #{gat_forward.1} parent=1 // pred_region
      %s195 = ssub.s32 32, 32
      %196 = vsyncadd [#allocation24], %s195
      %s198 = sshll.u32 [#allocation25], 4
      %s199 = int_to_ptr.vmem [resolvable:$true] %s198
      %201 = dma.hbm_to_vmem [thread:$0]  %s18, 32, %s199, [#allocation24]
    $region77: #{gat_forward.1} parent=1 // pred_fallthru
      _
    // Predicated region
    $region78: #{gat_forward.1} parent=1 // pred_check
      _
    $region79: #{gat_forward.1} parent=1 // pred_check_branch
      %203 = sbr.rel (0) target = $region81
    $region80: #{gat_forward.1} parent=1 // pred_region
      _
    $region81: #{gat_forward.1} parent=1 // pred_fallthru
      _
    // Predicated region
    $region82: #{gat_forward.1} parent=1 // pred_check
      _
    $region83: #{gat_forward.1} parent=1 // pred_check_branch
      %205 = sbr.rel (0) target = $region85
    $region84: #{gat_forward.1} parent=1 // pred_region
      %s207 = ssub.s32 16, 16
      %208 = vsyncadd [#allocation27], %s207
      %s210 = sshll.u32 [#allocation26], 4
      %s211 = int_to_ptr.vmem [resolvable:$true] %s210
      %213 = dma.hbm_to_vmem [thread:$0]  %s20, 16, %s211, [#allocation27]
    $region85: #{gat_forward.1} parent=1 // pred_fallthru
      _
    // Predicated region
    $region86: #{gat_forward.1} parent=1 // pred_check
      _
    $region87: #{gat_forward.1} parent=1 // pred_check_branch
      %215 = sbr.rel (0) target = $region89
    $region88: #{gat_forward.1} parent=1 // pred_region
      %216 = dma.done [#allocation3], 256
    $region89: #{gat_forward.1} parent=1 // pred_fallthru
      _
    // Predicated region
    $region90: #{gat_forward.1} parent=1 // pred_check
      _
    $region91: #{gat_forward.1} parent=1 // pred_check_branch
      %218 = sbr.rel (0) target = $region93
    $region92: #{gat_forward.1} parent=1 // pred_region
      %219 = dma.done [#allocation6], 32
    $region93: #{gat_forward.1} parent=1 // pred_fallthru
      _
    // Predicated region
    $region94: #{gat_forward.1} parent=1 // pred_check
      _
    $region95: #{gat_forward.1} parent=1 // pred_check_branch
      %221 = sbr.rel (0) target = $region97
    $region96: #{gat_forward.1} parent=1 // pred_region
      %222 = dma.done [#allocation6], 32
    $region97: #{gat_forward.1} parent=1 // pred_fallthru
      _
    // Predicated region
    $region98: #{gat_forward.1} parent=1 // pred_check
      _
    $region99: #{gat_forward.1} parent=1 // pred_check_branch
      %224 = sbr.rel (0) target = $region101
    $region100: #{gat_forward.1} parent=1 // pred_region
      %225 = dma.done [#allocation9], 32
    $region101: #{gat_forward.1} parent=1 // pred_fallthru
      _
    // Predicated region
    $region102: #{gat_forward.1} parent=1 // pred_check
      _
    $region103: #{gat_forward.1} parent=1 // pred_check_branch
      %227 = sbr.rel (0) target = $region105
    $region104: #{gat_forward.1} parent=1 // pred_region
      %228 = dma.done [#allocation9], 4096
    $region105: #{gat_forward.1} parent=1 // pred_fallthru
      _
    // Predicated region
    $region106: #{gat_forward.1} parent=1 // pred_check
      _
    $region107: #{gat_forward.1} parent=1 // pred_check_branch
      %230 = sbr.rel (0) target = $region109
    $region108: #{gat_forward.1} parent=1 // pred_region
      %231 = dma.done [#allocation12], 32
    $region109: #{gat_forward.1} parent=1 // pred_fallthru
      _
    // Predicated region
    $region110: #{gat_forward.1} parent=1 // pred_check
      _
    $region111: #{gat_forward.1} parent=1 // pred_check_branch
      %233 = sbr.rel (0) target = $region113
    $region112: #{gat_forward.1} parent=1 // pred_region
      %234 = dma.done [#allocation12], 32
    $region113: #{gat_forward.1} parent=1 // pred_fallthru
      _
    // Predicated region
    $region114: #{gat_forward.1} parent=1 // pred_check
      _
    $region115: #{gat_forward.1} parent=1 // pred_check_branch
      %236 = sbr.rel (0) target = $region117
    $region116: #{gat_forward.1} parent=1 // pred_region
      %237 = dma.done [#allocation15], 32
    $region117: #{gat_forward.1} parent=1 // pred_fallthru
      _
    // Predicated region
    $region118: #{gat_forward.1} parent=1 // pred_check
      _
    $region119: #{gat_forward.1} parent=1 // pred_check_branch
      %239 = sbr.rel (0) target = $region121
    $region120: #{gat_forward.1} parent=1 // pred_region
      %240 = dma.done [#allocation15], 4096
    $region121: #{gat_forward.1} parent=1 // pred_fallthru
      _
    // Predicated region
    $region122: #{gat_forward.1} parent=1 // pred_check
      _
    $region123: #{gat_forward.1} parent=1 // pred_check_branch
      %242 = sbr.rel (0) target = $region125
    $region124: #{gat_forward.1} parent=1 // pred_region
      %243 = dma.done [#allocation18], 32
    $region125: #{gat_forward.1} parent=1 // pred_fallthru
      _
    // Predicated region
    $region126: #{gat_forward.1} parent=1 // pred_check
      _
    $region127: #{gat_forward.1} parent=1 // pred_check_branch
      %245 = sbr.rel (0) target = $region129
    $region128: #{gat_forward.1} parent=1 // pred_region
      %246 = dma.done [#allocation18], 32
    $region129: #{gat_forward.1} parent=1 // pred_fallthru
      _
    // Predicated region
    $region130: #{gat_forward.1} parent=1 // pred_check
      _
    $region131: #{gat_forward.1} parent=1 // pred_check_branch
      %248 = sbr.rel (0) target = $region133
    $region132: #{gat_forward.1} parent=1 // pred_region
      %249 = dma.done [#allocation21], 32
    $region133: #{gat_forward.1} parent=1 // pred_fallthru
      _
    // Predicated region
    $region134: #{gat_forward.1} parent=1 // pred_check
      _
    $region135: #{gat_forward.1} parent=1 // pred_check_branch
      %251 = sbr.rel (0) target = $region137
    $region136: #{gat_forward.1} parent=1 // pred_region
      %252 = dma.done [#allocation21], 4096
    $region137: #{gat_forward.1} parent=1 // pred_fallthru
      _
    // Predicated region
    $region138: #{gat_forward.1} parent=1 // pred_check
      _
    $region139: #{gat_forward.1} parent=1 // pred_check_branch
      %254 = sbr.rel (0) target = $region141
    $region140: #{gat_forward.1} parent=1 // pred_region
      %255 = dma.done [#allocation24], 128
    $region141: #{gat_forward.1} parent=1 // pred_fallthru
      _
    // Predicated region
    $region142: #{gat_forward.1} parent=1 // pred_check
      _
    $region143: #{gat_forward.1} parent=1 // pred_check_branch
      %257 = sbr.rel (0) target = $region145
    $region144: #{gat_forward.1} parent=1 // pred_region
      %258 = dma.done [#allocation24], 32
    $region145: #{gat_forward.1} parent=1 // pred_fallthru
      _
    // Predicated region
    $region146: #{gat_forward.1} parent=1 // pred_check
      _
    $region147: #{gat_forward.1} parent=1 // pred_check_branch
      %260 = sbr.rel (0) target = $region149
    $region148: #{gat_forward.1} parent=1 // pred_region
      %261 = dma.done [#allocation27], 16
    $region149: #{gat_forward.1} parent=1 // pred_fallthru
      _
    %v263 = vld [vmem:[%s1] sm:$0xf]
    %v264 = vld [vmem:[%s1 + $0x4] sm:$0xf]
    %v265 = vld [vmem:[%s1 + $0x8] sm:$0xf]
    %v266 = vld [vmem:[%s1 + $0xc] sm:$0xf]
    %v267 = vld [vmem:[%s1 + $0x10] sm:$0xf]
    %v268 = vld [vmem:[%s1 + $0x14] sm:$0xf]
    %v269 = vld [vmem:[%s1 + $0x18] sm:$0xf]
    %v270 = vld [vmem:[%s1 + $0x1c] sm:$0xf]
    %v271 = vld [vmem:[%s1 + $0x20] sm:$0xf]
    %v272 = vld [vmem:[%s1 + $0x24] sm:$0xf]
    %v273 = vld [vmem:[%s1 + $0x28] sm:$0xf]
    %v274 = vld [vmem:[%s1 + $0x2c] sm:$0xf]
    %v275 = vld [vmem:[%s1 + $0x30] sm:$0xf]
    %v276 = vld [vmem:[%s1 + $0x34] sm:$0xf]
    %v277 = vld [vmem:[%s1 + $0x38] sm:$0xf]
    %v278 = vld [vmem:[%s1 + $0x3c] sm:$0xf]
    %v279 = vld [vmem:[%s0] sm:$0xff]
    %v280 = vld [vmem:[%s0 + $0x8] sm:$0xff]
    %v281 = vld [vmem:[%s0 + $0x10] sm:$0xff]
    %v282 = vld [vmem:[%s0 + $0x18] sm:$0xff]
    %v283 = vld [vmem:[%s0 + $0x20] sm:$0xff]
    %v284 = vld [vmem:[%s0 + $0x28] sm:$0xff]
    %v285 = vld [vmem:[%s0 + $0x30] sm:$0xff]
    %v286 = vld [vmem:[%s0 + $0x38] sm:$0xff]
    %v287 = vld [vmem:[%s0 + $0x40] sm:$0xff]
    %v288 = vld [vmem:[%s0 + $0x48] sm:$0xff]
    %v289 = vld [vmem:[%s0 + $0x50] sm:$0xff]
    %v290 = vld [vmem:[%s0 + $0x58] sm:$0xff]
    %v291 = vld [vmem:[%s0 + $0x60] sm:$0xff]
    %v292 = vld [vmem:[%s0 + $0x68] sm:$0xff]
    %v293 = vld [vmem:[%s0 + $0x70] sm:$0xff]
    %v294 = vld [vmem:[%s0 + $0x78] sm:$0xff]
    %v295 = vld [vmem:[#allocation2] sm:$0xff]
    %v296 = vld [vmem:[#allocation2 + $0x8] sm:$0xff]
    %v297 = vld [vmem:[#allocation5] sm:$0x3]
    %v298 = vld [vmem:[#allocation7] sm:$0x3]
    %v299 = vld [vmem:[#allocation8] sm:$0x3]
    %v300 = vpack.c.bf16 %v280, %v279
    %v301 = vpack.c.bf16 %v282, %v281
    %v302 = vpack.c.bf16 %v284, %v283
    %v303 = vpack.c.bf16 %v286, %v285
    %v304 = vpack.c.bf16 %v288, %v287
    %v305 = vpack.c.bf16 %v290, %v289
    %v306 = vpack.c.bf16 %v292, %v291
    %v307 = vpack.c.bf16 %v294, %v293
    %v310 = vunpack.c.l.b16 %v295
    %v311 = vunpack.c.h.b16 %v295
    %v312 = vunpack.c.l.b16 %v296
    %v313 = vunpack.c.h.b16 %v296
    %v314 = vpack.c.b16 %v312, %v310
    %v315 = vpack.c.b16 %v313, %v311
    %vm318 = vcmask 130048
    %v320 = vsel %vm318, %v300, 0
    %v323 = vsel %vm318, %v301, 0
    %v326 = vsel %vm318, %v302, 0
    %v329 = vsel %vm318, %v303, 0
    %v332 = vsel %vm318, %v304, 0
    %v335 = vsel %vm318, %v305, 0
    %v338 = vsel %vm318, %v306, 0
    %v341 = vsel %vm318, %v307, 0
    %343 = vmatprep.subr.bf16.mxu0 %v315
    %344 = vmatpush1.bf16.msra.mxu0 %v314
    %345 = vmatprep.subr.bf16.mxu0 0
    %346 = vmatpush1.bf16.msra.mxu0 0
    %347 = vmatprep.subr.bf16.mxu0 0
    %348 = vmatpush1.bf16.msra.mxu0 0
    %349 = vmatprep.subr.bf16.mxu0 0
    %350 = vmatpush1.bf16.msra.mxu0 0
    %351 = vmatprep.subr.bf16.mxu0 0
    %352 = vmatpush1.bf16.msra.mxu0 0
    %353 = vmatprep.subr.bf16.mxu0 0
    %354 = vmatpush1.bf16.msra.mxu0 0
    %355 = vmatprep.subr.bf16.mxu0 0
    %356 = vmatpush1.bf16.msra.mxu0 0
    %357 = vmatprep.subr.bf16.mxu0 0
    %358 = vmatpush1.bf16.msra.mxu0 0
    %359 = vmatprep.subr.bf16.mxu0 0
    %360 = vmatpush1.bf16.msra.mxu0 0
    %361 = vmatprep.subr.bf16.mxu0 0
    %362 = vmatpush1.bf16.msra.mxu0 0
    %363 = vmatprep.subr.bf16.mxu0 0
    %364 = vmatpush1.bf16.msra.mxu0 0
    %365 = vmatprep.subr.bf16.mxu0 0
    %366 = vmatpush1.bf16.msra.mxu0 0
    %367 = vmatprep.subr.bf16.mxu0 0
    %368 = vmatpush1.bf16.msra.mxu0 0
    %369 = vmatprep.subr.bf16.mxu0 0
    %370 = vmatpush1.bf16.msra.mxu0 0
    %371 = vmatprep.subr.bf16.mxu0 0
    %372 = vmatpush1.bf16.msra.mxu0 0
    %373 = vmatprep.subr.bf16.mxu0 0
    %374 = vmatpush1.bf16.msra.mxu0 0
    %375 = vmatprep.mubr.bf16.mxu0 0
    %376 = vmatmul.mubr.bf16.gmra.mrb[0].mxu0 %v320
    %v377 = vpop.f32.mrb[0].mxu0
    %v378 = vadd.f32 0.0, %v377
    %v379 = vpop.f32.mrb[0].mxu0
    %v380 = vadd.f32 0.0, %v379
    %v381 = vpop.f32.mrb[0].mxu0
    %v382 = vadd.f32 0.0, %v381
    %v383 = vpop.f32.mrb[0].mxu0
    %v384 = vadd.f32 0.0, %v383
    %385 = vmatprep.mubr.bf16.mxu0 0
    %386 = vmatmul.mubr.bf16.gmra.mrb[0].mxu0 %v323
    %v387 = vpop.f32.mrb[0].mxu0
    %v388 = vadd.f32 0.0, %v387
    %v389 = vpop.f32.mrb[0].mxu0
    %v390 = vadd.f32 0.0, %v389
    %v391 = vpop.f32.mrb[0].mxu0
    %v392 = vadd.f32 0.0, %v391
    %v393 = vpop.f32.mrb[0].mxu0
    %v394 = vadd.f32 0.0, %v393
    %395 = vmatprep.mubr.bf16.mxu0 0
    %396 = vmatmul.mubr.bf16.gmra.mrb[0].mxu0 %v326
    %v397 = vpop.f32.mrb[0].mxu0
    %v398 = vadd.f32 0.0, %v397
    %v399 = vpop.f32.mrb[0].mxu0
    %v400 = vadd.f32 0.0, %v399
    %v401 = vpop.f32.mrb[0].mxu0
    %v402 = vadd.f32 0.0, %v401
    %v403 = vpop.f32.mrb[0].mxu0
    %v404 = vadd.f32 0.0, %v403
    %405 = vmatprep.mubr.bf16.mxu0 0
    %406 = vmatmul.mubr.bf16.gmra.mrb[0].mxu0 %v329
    %v407 = vpop.f32.mrb[0].mxu0
    %v408 = vadd.f32 0.0, %v407
    %v409 = vpop.f32.mrb[0].mxu0
    %v410 = vadd.f32 0.0, %v409
    %v411 = vpop.f32.mrb[0].mxu0
    %v412 = vadd.f32 0.0, %v411
    %v413 = vpop.f32.mrb[0].mxu0
    %v414 = vadd.f32 0.0, %v413
    %415 = vmatprep.mubr.bf16.mxu0 0
    %416 = vmatmul.mubr.bf16.gmra.mrb[0].mxu0 %v332
    %v417 = vpop.f32.mrb[0].mxu0
    %v418 = vadd.f32 0.0, %v417
    %v419 = vpop.f32.mrb[0].mxu0
    %v420 = vadd.f32 0.0, %v419
    %v421 = vpop.f32.mrb[0].mxu0
    %v422 = vadd.f32 0.0, %v421
    %v423 = vpop.f32.mrb[0].mxu0
    %v424 = vadd.f32 0.0, %v423
    %425 = vmatprep.mubr.bf16.mxu0 0
    %426 = vmatmul.mubr.bf16.gmra.mrb[0].mxu0 %v335
    %v427 = vpop.f32.mrb[0].mxu0
    %v428 = vadd.f32 0.0, %v427
    %v429 = vpop.f32.mrb[0].mxu0
    %v430 = vadd.f32 0.0, %v429
    %v431 = vpop.f32.mrb[0].mxu0
    %v432 = vadd.f32 0.0, %v431
    %v433 = vpop.f32.mrb[0].mxu0
    %v434 = vadd.f32 0.0, %v433
    %435 = vmatprep.mubr.bf16.mxu0 0
    %436 = vmatmul.mubr.bf16.gmra.mrb[0].mxu0 %v338
    %v437 = vpop.f32.mrb[0].mxu0
    %v438 = vadd.f32 0.0, %v437
    %v439 = vpop.f32.mrb[0].mxu0
    %v440 = vadd.f32 0.0, %v439
    %v441 = vpop.f32.mrb[0].mxu0
    %v442 = vadd.f32 0.0, %v441
    %v443 = vpop.f32.mrb[0].mxu0
    %v444 = vadd.f32 0.0, %v443
    %445 = vmatprep.mubr.bf16.mxu0 0
    %446 = vmatmul.mubr.bf16.gmra.mrb[0].mxu0 %v341
    %v447 = vpop.f32.mrb[0].mxu0
    %v448 = vadd.f32 0.0, %v447
    %v449 = vpop.f32.mrb[0].mxu0
    %v450 = vadd.f32 0.0, %v449
    %v451 = vpop.f32.mrb[0].mxu0
    %v452 = vadd.f32 0.0, %v451
    %v453 = vpop.f32.mrb[0].mxu0
    %v454 = vadd.f32 0.0, %v453
    %455 = vdwg.mxu0
    %v457 = vlaneseq
    %v458 = vshrl.u32 %v457, 7
    %v459 = vsub.s32 0, %v458
    %v460 = vrot.slane %v298, %v459
    %v461 = vlaneseq
    %v462 = vshrl.u32 %v461, 7
    %v463 = vsub.s32 1, %v462
    %v464 = vrot.slane %v298, %v463
    %v467 = vmul.f32 %v378, %v460
    %v468 = vmul.f32 %v380, %v464
    %v469 = vmul.f32 %v382, %v460
    %v470 = vmul.f32 %v384, %v464
    %v471 = vmul.f32 %v388, %v460
    %v472 = vmul.f32 %v390, %v464
    %v473 = vmul.f32 %v392, %v460
    %v474 = vmul.f32 %v394, %v464
    %v475 = vmul.f32 %v398, %v460
    %v476 = vmul.f32 %v400, %v464
    %v477 = vmul.f32 %v402, %v460
    %v478 = vmul.f32 %v404, %v464
    %v479 = vmul.f32 %v408, %v460
    %v480 = vmul.f32 %v410, %v464
    %v481 = vmul.f32 %v412, %v460
    %v482 = vmul.f32 %v414, %v464
    %v483 = vmul.f32 %v418, %v460
    %v484 = vmul.f32 %v420, %v464
    %v485 = vmul.f32 %v422, %v460
    %v486 = vmul.f32 %v424, %v464
    %v487 = vmul.f32 %v428, %v460
    %v488 = vmul.f32 %v430, %v464
    %v489 = vmul.f32 %v432, %v460
    %v490 = vmul.f32 %v434, %v464
    %v491 = vmul.f32 %v438, %v460
    %v492 = vmul.f32 %v440, %v464
    %v493 = vmul.f32 %v442, %v460
    %v494 = vmul.f32 %v444, %v464
    %v495 = vmul.f32 %v448, %v460
    %v496 = vmul.f32 %v450, %v464
    %v497 = vmul.f32 %v452, %v460
    %v498 = vmul.f32 %v454, %v464
    %v499 = vadd.f32 %v467, %v468
    %500 = vadd.xlane.f32.xlu0 %v499
    %v501 = vpop.xlane.xlu0 %500
    %v502 = vadd.f32 %v469, %v470
    %503 = vadd.xlane.f32.xlu0 %v502
    %v504 = vpop.xlane.xlu0 %503
    %v505 = vadd.f32 %v471, %v472
    %506 = vadd.xlane.f32.xlu0 %v505
    %v507 = vpop.xlane.xlu0 %506
    %v508 = vadd.f32 %v473, %v474
    %509 = vadd.xlane.f32.xlu0 %v508
    %v510 = vpop.xlane.xlu0 %509
    %v511 = vadd.f32 %v475, %v476
    %512 = vadd.xlane.f32.xlu0 %v511
    %v513 = vpop.xlane.xlu0 %512
    %v514 = vadd.f32 %v477, %v478
    %515 = vadd.xlane.f32.xlu0 %v514
    %v516 = vpop.xlane.xlu0 %515
    %v517 = vadd.f32 %v479, %v480
    %518 = vadd.xlane.f32.xlu0 %v517
    %v519 = vpop.xlane.xlu0 %518
    %v520 = vadd.f32 %v481, %v482
    %521 = vadd.xlane.f32.xlu0 %v520
    %v522 = vpop.xlane.xlu0 %521
    %v523 = vadd.f32 %v483, %v484
    %524 = vadd.xlane.f32.xlu0 %v523
    %v525 = vpop.xlane.xlu0 %524
    %v526 = vadd.f32 %v485, %v486
    %527 = vadd.xlane.f32.xlu0 %v526
    %v528 = vpop.xlane.xlu0 %527
    %v529 = vadd.f32 %v487, %v488
    %530 = vadd.xlane.f32.xlu0 %v529
    %v531 = vpop.xlane.xlu0 %530
    %v532 = vadd.f32 %v489, %v490
    %533 = vadd.xlane.f32.xlu0 %v532
    %v534 = vpop.xlane.xlu0 %533
    %v535 = vadd.f32 %v491, %v492
    %536 = vadd.xlane.f32.xlu0 %v535
    %v537 = vpop.xlane.xlu0 %536
    %v538 = vadd.f32 %v493, %v494
    %539 = vadd.xlane.f32.xlu0 %v538
    %v540 = vpop.xlane.xlu0 %539
    %v541 = vadd.f32 %v495, %v496
    %542 = vadd.xlane.f32.xlu0 %v541
    %v543 = vpop.xlane.xlu0 %542
    %v544 = vadd.f32 %v497, %v498
    %545 = vadd.xlane.f32.xlu0 %v544
    %v546 = vpop.xlane.xlu0 %545
    %v548 = vlaneseq
    %v549 = vshrl.u32 %v548, 7
    %v550 = vsub.s32 0, %v549
    %v551 = vrot.slane %v297, %v550
    %v552 = vlaneseq
    %v553 = vshrl.u32 %v552, 7
    %v554 = vsub.s32 1, %v553
    %v555 = vrot.slane %v297, %v554
    %v558 = vmul.f32 %v378, %v551
    %v559 = vmul.f32 %v380, %v555
    %v560 = vmul.f32 %v382, %v551
    %v561 = vmul.f32 %v384, %v555
    %v562 = vmul.f32 %v388, %v551
    %v563 = vmul.f32 %v390, %v555
    %v564 = vmul.f32 %v392, %v551
    %v565 = vmul.f32 %v394, %v555
    %v566 = vmul.f32 %v398, %v551
    %v567 = vmul.f32 %v400, %v555
    %v568 = vmul.f32 %v402, %v551
    %v569 = vmul.f32 %v404, %v555
    %v570 = vmul.f32 %v408, %v551
    %v571 = vmul.f32 %v410, %v555
    %v572 = vmul.f32 %v412, %v551
    %v573 = vmul.f32 %v414, %v555
    %v574 = vmul.f32 %v418, %v551
    %v575 = vmul.f32 %v420, %v555
    %v576 = vmul.f32 %v422, %v551
    %v577 = vmul.f32 %v424, %v555
    %v578 = vmul.f32 %v428, %v551
    %v579 = vmul.f32 %v430, %v555
    %v580 = vmul.f32 %v432, %v551
    %v581 = vmul.f32 %v434, %v555
    %v582 = vmul.f32 %v438, %v551
    %v583 = vmul.f32 %v440, %v555
    %v584 = vmul.f32 %v442, %v551
    %v585 = vmul.f32 %v444, %v555
    %v586 = vmul.f32 %v448, %v551
    %v587 = vmul.f32 %v450, %v555
    %v588 = vmul.f32 %v452, %v551
    %v589 = vmul.f32 %v454, %v555
    %v590 = vadd.f32 %v558, %v559
    %591 = vadd.xlane.f32.xlu0 %v590
    %v592 = vpop.xlane.xlu0 %591
    %v593 = vadd.f32 %v560, %v561
    %594 = vadd.xlane.f32.xlu0 %v593
    %v595 = vpop.xlane.xlu0 %594
    %v596 = vadd.f32 %v562, %v563
    %597 = vadd.xlane.f32.xlu0 %v596
    %v598 = vpop.xlane.xlu0 %597
    %v599 = vadd.f32 %v564, %v565
    %600 = vadd.xlane.f32.xlu0 %v599
    %v601 = vpop.xlane.xlu0 %600
    %v602 = vadd.f32 %v566, %v567
    %603 = vadd.xlane.f32.xlu0 %v602
    %v604 = vpop.xlane.xlu0 %603
    %v605 = vadd.f32 %v568, %v569
    %606 = vadd.xlane.f32.xlu0 %v605
    %v607 = vpop.xlane.xlu0 %606
    %v608 = vadd.f32 %v570, %v571
    %609 = vadd.xlane.f32.xlu0 %v608
    %v610 = vpop.xlane.xlu0 %609
    %v611 = vadd.f32 %v572, %v573
    %612 = vadd.xlane.f32.xlu0 %v611
    %v613 = vpop.xlane.xlu0 %612
    %v614 = vadd.f32 %v574, %v575
    %615 = vadd.xlane.f32.xlu0 %v614
    %v616 = vpop.xlane.xlu0 %615
    %v617 = vadd.f32 %v576, %v577
    %618 = vadd.xlane.f32.xlu0 %v617
    %v619 = vpop.xlane.xlu0 %618
    %v620 = vadd.f32 %v578, %v579
    %621 = vadd.xlane.f32.xlu0 %v620
    %v622 = vpop.xlane.xlu0 %621
    %v623 = vadd.f32 %v580, %v581
    %624 = vadd.xlane.f32.xlu0 %v623
    %v625 = vpop.xlane.xlu0 %624
    %v626 = vadd.f32 %v582, %v583
    %627 = vadd.xlane.f32.xlu0 %v626
    %v628 = vpop.xlane.xlu0 %627
    %v629 = vadd.f32 %v584, %v585
    %630 = vadd.xlane.f32.xlu0 %v629
    %v631 = vpop.xlane.xlu0 %630
    %v632 = vadd.f32 %v586, %v587
    %633 = vadd.xlane.f32.xlu0 %v632
    %v634 = vpop.xlane.xlu0 %633
    %v635 = vadd.f32 %v588, %v589
    %636 = vadd.xlane.f32.xlu0 %v635
    %v637 = vpop.xlane.xlu0 %636
    %638 = vxpose.xlu0.b32.start [1/16] %v592, 128
    %639 = vxpose.xlu0.b32.cont [2/16] %v595, 128
    %640 = vxpose.xlu0.b32.cont [3/16] %v598, 128
    %641 = vxpose.xlu0.b32.cont [4/16] %v601, 128
    %642 = vxpose.xlu0.b32.cont [5/16] %v604, 128
    %643 = vxpose.xlu0.b32.cont [6/16] %v607, 128
    %644 = vxpose.xlu0.b32.cont [7/16] %v610, 128
    %645 = vxpose.xlu0.b32.cont [8/16] %v613, 128
    %646 = vxpose.xlu0.b32.cont [9/16] %v616, 128
    %647 = vxpose.xlu0.b32.cont [10/16] %v619, 128
    %648 = vxpose.xlu0.b32.cont [11/16] %v622, 128
    %649 = vxpose.xlu0.b32.cont [12/16] %v625, 128
    %650 = vxpose.xlu0.b32.cont [13/16] %v628, 128
    %651 = vxpose.xlu0.b32.cont [14/16] %v631, 128
    %652 = vxpose.xlu0.b32.cont [15/16] %v634, 128
    %653 = vxpose.xlu0.b32.end [16/16] %v637, 128
    %v654 = vpop.trf.xlu0
    %v655 = vpop.trf.xlu0
    %v656 = vpop.trf.xlu0
    %v657 = vpop.trf.xlu0
    %v658 = vpop.trf.xlu0
    %v659 = vpop.trf.xlu0
    %v660 = vpop.trf.xlu0
    %v661 = vpop.trf.xlu0
    %v662 = vpop.trf.xlu0
    %v663 = vpop.trf.xlu0
    %v664 = vpop.trf.xlu0
    %v665 = vpop.trf.xlu0
    %v666 = vpop.trf.xlu0
    %v667 = vpop.trf.xlu0
    %v668 = vpop.trf.xlu0
    %v669 = vpop.trf.xlu0
    %v670 = vlaneseq
    %v671 = vshrl.u32 %v670, 7
    %v672 = vsub.s32 0, %v671
    %v673 = vrot.slane %v654, %v672
    %v674 = vadd.f32 %v501, %v673
    %v675 = vadd.f32 %v504, %v673
    %v676 = vadd.f32 %v507, %v673
    %v677 = vadd.f32 %v510, %v673
    %v678 = vadd.f32 %v513, %v673
    %v679 = vadd.f32 %v516, %v673
    %v680 = vadd.f32 %v519, %v673
    %v681 = vadd.f32 %v522, %v673
    %v682 = vadd.f32 %v525, %v673
    %v683 = vadd.f32 %v528, %v673
    %v684 = vadd.f32 %v531, %v673
    %v685 = vadd.f32 %v534, %v673
    %v686 = vadd.f32 %v537, %v673
    %v687 = vadd.f32 %v540, %v673
    %v688 = vadd.f32 %v543, %v673
    %v689 = vadd.f32 %v546, %v673
    %vm690 = vcmp.ge.f32.partialorder %v674, 0.0
    %vm691 = vcmp.ge.f32.partialorder %v675, 0.0
    %vm692 = vcmp.ge.f32.partialorder %v676, 0.0
    %vm693 = vcmp.ge.f32.partialorder %v677, 0.0
    %vm694 = vcmp.ge.f32.partialorder %v678, 0.0
    %vm695 = vcmp.ge.f32.partialorder %v679, 0.0
    %vm696 = vcmp.ge.f32.partialorder %v680, 0.0
    %vm697 = vcmp.ge.f32.partialorder %v681, 0.0
    %vm698 = vcmp.ge.f32.partialorder %v682, 0.0
    %vm699 = vcmp.ge.f32.partialorder %v683, 0.0
    %vm700 = vcmp.ge.f32.partialorder %v684, 0.0
    %vm701 = vcmp.ge.f32.partialorder %v685, 0.0
    %vm702 = vcmp.ge.f32.partialorder %v686, 0.0
    %vm703 = vcmp.ge.f32.partialorder %v687, 0.0
    %vm704 = vcmp.ge.f32.partialorder %v688, 0.0
    %vm705 = vcmp.ge.f32.partialorder %v689, 0.0
    %v706 = vmul.f32 %v674, 0.2
    %v707 = vmul.f32 %v675, 0.2
    %v708 = vmul.f32 %v676, 0.2
    %v709 = vmul.f32 %v677, 0.2
    %v710 = vmul.f32 %v678, 0.2
    %v711 = vmul.f32 %v679, 0.2
    %v712 = vmul.f32 %v680, 0.2
    %v713 = vmul.f32 %v681, 0.2
    %v714 = vmul.f32 %v682, 0.2
    %v715 = vmul.f32 %v683, 0.2
    %v716 = vmul.f32 %v684, 0.2
    %v717 = vmul.f32 %v685, 0.2
    %v718 = vmul.f32 %v686, 0.2
    %v719 = vmul.f32 %v687, 0.2
    %v720 = vmul.f32 %v688, 0.2
    %v721 = vmul.f32 %v689, 0.2
    %v722 = vsel %vm690, %v674, %v706
    %v723 = vsel %vm691, %v675, %v707
    %v724 = vsel %vm692, %v676, %v708
    %v725 = vsel %vm693, %v677, %v709
    %v726 = vsel %vm694, %v678, %v710
    %v727 = vsel %vm695, %v679, %v711
    %v728 = vsel %vm696, %v680, %v712
    %v729 = vsel %vm697, %v681, %v713
    %v730 = vsel %vm698, %v682, %v714
    %v731 = vsel %vm699, %v683, %v715
    %v732 = vsel %vm700, %v684, %v716
    %v733 = vsel %vm701, %v685, %v717
    %v734 = vsel %vm702, %v686, %v718
    %v735 = vsel %vm703, %v687, %v719
    %v736 = vsel %vm704, %v688, %v720
    %v737 = vsel %vm705, %v689, %v721
    %v738 = vunpack.c.l.bf16 %v263
    %v739 = vunpack.c.l.bf16 %v264
    %v740 = vunpack.c.l.bf16 %v265
    %v741 = vunpack.c.l.bf16 %v266
    %v742 = vunpack.c.l.bf16 %v267
    %v743 = vunpack.c.l.bf16 %v268
    %v744 = vunpack.c.l.bf16 %v269
    %v745 = vunpack.c.l.bf16 %v270
    %v746 = vunpack.c.l.bf16 %v271
    %v747 = vunpack.c.l.bf16 %v272
    %v748 = vunpack.c.l.bf16 %v273
    %v749 = vunpack.c.l.bf16 %v274
    %v750 = vunpack.c.l.bf16 %v275
    %v751 = vunpack.c.l.bf16 %v276
    %v752 = vunpack.c.l.bf16 %v277
    %v753 = vunpack.c.l.bf16 %v278
    %v754 = vadd.f32 %v722, %v738
    %v755 = vadd.f32 %v723, %v739
    %v756 = vadd.f32 %v724, %v740
    %v757 = vadd.f32 %v725, %v741
    %v758 = vadd.f32 %v726, %v742
    %v759 = vadd.f32 %v727, %v743
    %v760 = vadd.f32 %v728, %v744
    %v761 = vadd.f32 %v729, %v745
    %v762 = vadd.f32 %v730, %v746
    %v763 = vadd.f32 %v731, %v747
    %v764 = vadd.f32 %v732, %v748
    %v765 = vadd.f32 %v733, %v749
    %v766 = vadd.f32 %v734, %v750
    %v767 = vadd.f32 %v735, %v751
    %v768 = vadd.f32 %v736, %v752
    %v769 = vadd.f32 %v737, %v753
    %770 = vmax.xlane.f32.xlu0 %v754
    %v771 = vpop.xlane.xlu0 %770
    %772 = vmax.xlane.f32.xlu0 %v755
    %v773 = vpop.xlane.xlu0 %772
    %774 = vmax.xlane.f32.xlu0 %v756
    %v775 = vpop.xlane.xlu0 %774
    %776 = vmax.xlane.f32.xlu0 %v757
    %v777 = vpop.xlane.xlu0 %776
    %778 = vmax.xlane.f32.xlu0 %v758
    %v779 = vpop.xlane.xlu0 %778
    %780 = vmax.xlane.f32.xlu0 %v759
    %v781 = vpop.xlane.xlu0 %780
    %782 = vmax.xlane.f32.xlu0 %v760
    %v783 = vpop.xlane.xlu0 %782
    %784 = vmax.xlane.f32.xlu0 %v761
    %v785 = vpop.xlane.xlu0 %784
    %786 = vmax.xlane.f32.xlu0 %v762
    %v787 = vpop.xlane.xlu0 %786
    %788 = vmax.xlane.f32.xlu0 %v763
    %v789 = vpop.xlane.xlu0 %788
    %790 = vmax.xlane.f32.xlu0 %v764
    %v791 = vpop.xlane.xlu0 %790
    %792 = vmax.xlane.f32.xlu0 %v765
    %v793 = vpop.xlane.xlu0 %792
    %794 = vmax.xlane.f32.xlu0 %v766
    %v795 = vpop.xlane.xlu0 %794
    %796 = vmax.xlane.f32.xlu0 %v767
    %v797 = vpop.xlane.xlu0 %796
    %798 = vmax.xlane.f32.xlu0 %v768
    %v799 = vpop.xlane.xlu0 %798
    %800 = vmax.xlane.f32.xlu0 %v769
    %v801 = vpop.xlane.xlu0 %800
    %v802 = vsub.f32 %v754, %v771
    %v803 = vsub.f32 %v755, %v773
    %v804 = vsub.f32 %v756, %v775
    %v805 = vsub.f32 %v757, %v777
    %v806 = vsub.f32 %v758, %v779
    %v807 = vsub.f32 %v759, %v781
    %v808 = vsub.f32 %v760, %v783
    %v809 = vsub.f32 %v761, %v785
    %v810 = vsub.f32 %v762, %v787
    %v811 = vsub.f32 %v763, %v789
    %v812 = vsub.f32 %v764, %v791
    %v813 = vsub.f32 %v765, %v793
    %v814 = vsub.f32 %v766, %v795
    %v815 = vsub.f32 %v767, %v797
    %v816 = vsub.f32 %v768, %v799
    %v817 = vsub.f32 %v769, %v801
    %v818 = vmul.f32 %v802, 1.442695
    %v819 = vpow.pop %v818
    %v820 = vmul.f32 %v803, 1.442695
    %v821 = vpow.pop %v820
    %v822 = vmul.f32 %v804, 1.442695
    %v823 = vpow.pop %v822
    %v824 = vmul.f32 %v805, 1.442695
    %v825 = vpow.pop %v824
    %v826 = vmul.f32 %v806, 1.442695
    %v827 = vpow.pop %v826
    %v828 = vmul.f32 %v807, 1.442695
    %v829 = vpow.pop %v828
    %v830 = vmul.f32 %v808, 1.442695
    %v831 = vpow.pop %v830
    %v832 = vmul.f32 %v809, 1.442695
    %v833 = vpow.pop %v832
    %v834 = vmul.f32 %v810, 1.442695
    %v835 = vpow.pop %v834
    %v836 = vmul.f32 %v811, 1.442695
    %v837 = vpow.pop %v836
    %v838 = vmul.f32 %v812, 1.442695
    %v839 = vpow.pop %v838
    %v840 = vmul.f32 %v813, 1.442695
    %v841 = vpow.pop %v840
    %v842 = vmul.f32 %v814, 1.442695
    %v843 = vpow.pop %v842
    %v844 = vmul.f32 %v815, 1.442695
    %v845 = vpow.pop %v844
    %v846 = vmul.f32 %v816, 1.442695
    %v847 = vpow.pop %v846
    %v848 = vmul.f32 %v817, 1.442695
    %v849 = vpow.pop %v848
    %850 = vadd.xlane.f32.xlu0 %v819
    %v851 = vpop.xlane.xlu0 %850
    %852 = vadd.xlane.f32.xlu0 %v821
    %v853 = vpop.xlane.xlu0 %852
    %854 = vadd.xlane.f32.xlu0 %v823
    %v855 = vpop.xlane.xlu0 %854
    %856 = vadd.xlane.f32.xlu0 %v825
    %v857 = vpop.xlane.xlu0 %856
    %858 = vadd.xlane.f32.xlu0 %v827
    %v859 = vpop.xlane.xlu0 %858
    %860 = vadd.xlane.f32.xlu0 %v829
    %v861 = vpop.xlane.xlu0 %860
    %862 = vadd.xlane.f32.xlu0 %v831
    %v863 = vpop.xlane.xlu0 %862
    %864 = vadd.xlane.f32.xlu0 %v833
    %v865 = vpop.xlane.xlu0 %864
    %866 = vadd.xlane.f32.xlu0 %v835
    %v867 = vpop.xlane.xlu0 %866
    %868 = vadd.xlane.f32.xlu0 %v837
    %v869 = vpop.xlane.xlu0 %868
    %870 = vadd.xlane.f32.xlu0 %v839
    %v871 = vpop.xlane.xlu0 %870
    %872 = vadd.xlane.f32.xlu0 %v841
    %v873 = vpop.xlane.xlu0 %872
    %874 = vadd.xlane.f32.xlu0 %v843
    %v875 = vpop.xlane.xlu0 %874
    %876 = vadd.xlane.f32.xlu0 %v845
    %v877 = vpop.xlane.xlu0 %876
    %878 = vadd.xlane.f32.xlu0 %v847
    %v879 = vpop.xlane.xlu0 %878
    %880 = vadd.xlane.f32.xlu0 %v849
    %v881 = vpop.xlane.xlu0 %880
    %v882 = vmax.f32 %v851, 1e-20
    %v883 = vmax.f32 %v853, 1e-20
    %v884 = vmax.f32 %v855, 1e-20
    %v885 = vmax.f32 %v857, 1e-20
    %v886 = vmax.f32 %v859, 1e-20
    %v887 = vmax.f32 %v861, 1e-20
    %v888 = vmax.f32 %v863, 1e-20
    %v889 = vmax.f32 %v865, 1e-20
    %v890 = vmax.f32 %v867, 1e-20
    %v891 = vmax.f32 %v869, 1e-20
    %v892 = vmax.f32 %v871, 1e-20
    %v893 = vmax.f32 %v873, 1e-20
    %v894 = vmax.f32 %v875, 1e-20
    %v895 = vmax.f32 %v877, 1e-20
    %v896 = vmax.f32 %v879, 1e-20
    %v897 = vmax.f32 %v881, 1e-20
    %v898 = vpack.c.bf16 %v821, %v819
    %v899 = vpack.c.bf16 %v825, %v823
    %v900 = vpack.c.bf16 %v829, %v827
    %v901 = vpack.c.bf16 %v833, %v831
    %v902 = vpack.c.bf16 %v837, %v835
    %v903 = vpack.c.bf16 %v841, %v839
    %v904 = vpack.c.bf16 %v845, %v843
    %v905 = vpack.c.bf16 %v849, %v847
    %v906 = vpack.c.bf16 %v382, %v378
    %v907 = vpack.c.bf16 %v384, %v380
    %v908 = vpack.c.bf16 %v392, %v388
    %v909 = vpack.c.bf16 %v394, %v390
    %v910 = vpack.c.bf16 %v402, %v398
    %v911 = vpack.c.bf16 %v404, %v400
    %v912 = vpack.c.bf16 %v412, %v408
    %v913 = vpack.c.bf16 %v414, %v410
    %v914 = vpack.c.bf16 %v422, %v418
    %v915 = vpack.c.bf16 %v424, %v420
    %v916 = vpack.c.bf16 %v432, %v428
    %v917 = vpack.c.bf16 %v434, %v430
    %v918 = vpack.c.bf16 %v442, %v438
    %v919 = vpack.c.bf16 %v444, %v440
    %v920 = vpack.c.bf16 %v452, %v448
    %v921 = vpack.c.bf16 %v454, %v450
    %922 = vmatprep.subr.bf16.mxu0 %v907
    %923 = vmatpush1.bf16.msra.mxu0 %v906
    %924 = vmatprep.subr.bf16.mxu0 %v909
    %925 = vmatpush1.bf16.msra.mxu0 %v908
    %926 = vmatprep.subr.bf16.mxu0 %v911
    %927 = vmatpush1.bf16.msra.mxu0 %v910
    %928 = vmatprep.subr.bf16.mxu0 %v913
    %929 = vmatpush1.bf16.msra.mxu0 %v912
    %930 = vmatprep.subr.bf16.mxu0 %v915
    %931 = vmatpush1.bf16.msra.mxu0 %v914
    %932 = vmatprep.subr.bf16.mxu0 %v917
    %933 = vmatpush1.bf16.msra.mxu0 %v916
    %934 = vmatprep.subr.bf16.mxu0 %v919
    %935 = vmatpush1.bf16.msra.mxu0 %v918
    %936 = vmatprep.subr.bf16.mxu0 %v921
    %937 = vmatpush1.bf16.msra.mxu0 %v920
    %938 = vmatprep.subr.bf16.mxu0 0
    %939 = vmatpush1.bf16.msra.mxu0 0
    %940 = vmatprep.subr.bf16.mxu0 0
    %941 = vmatpush1.bf16.msra.mxu0 0
    %942 = vmatprep.subr.bf16.mxu0 0
    %943 = vmatpush1.bf16.msra.mxu0 0
    %944 = vmatprep.subr.bf16.mxu0 0
    %945 = vmatpush1.bf16.msra.mxu0 0
    %946 = vmatprep.subr.bf16.mxu0 0
    %947 = vmatpush1.bf16.msra.mxu0 0
    %948 = vmatprep.subr.bf16.mxu0 0
    %949 = vmatpush1.bf16.msra.mxu0 0
    %950 = vmatprep.subr.bf16.mxu0 0
    %951 = vmatpush1.bf16.msra.mxu0 0
    %952 = vmatprep.subr.bf16.mxu0 0
    %953 = vmatpush1.bf16.msra.mxu0 0
    %954 = vmatprep.mubr.bf16.mxu0 0
    %955 = vmatmul.mubr.bf16.gmra.mrb[0].mxu0 %v898
    %v956 = vpop.f32.mrb[0].mxu0
    %v957 = vadd.f32 0.0, %v956
    %v958 = vpop.f32.mrb[0].mxu0
    %v959 = vadd.f32 0.0, %v958
    %v960 = vpop.f32.mrb[0].mxu0
    %v961 = vadd.f32 0.0, %v960
    %v962 = vpop.f32.mrb[0].mxu0
    %v963 = vadd.f32 0.0, %v962
    %964 = vmatprep.mubr.bf16.mxu0 0
    %965 = vmatmul.mubr.bf16.gmra.mrb[0].mxu0 %v899
    %v966 = vpop.f32.mrb[0].mxu0
    %v967 = vadd.f32 0.0, %v966
    %v968 = vpop.f32.mrb[0].mxu0
    %v969 = vadd.f32 0.0, %v968
    %v970 = vpop.f32.mrb[0].mxu0
    %v971 = vadd.f32 0.0, %v970
    %v972 = vpop.f32.mrb[0].mxu0
    %v973 = vadd.f32 0.0, %v972
    %974 = vmatprep.mubr.bf16.mxu0 0
    %975 = vmatmul.mubr.bf16.gmra.mrb[0].mxu0 %v900
    %v976 = vpop.f32.mrb[0].mxu0
    %v977 = vadd.f32 0.0, %v976
    %v978 = vpop.f32.mrb[0].mxu0
    %v979 = vadd.f32 0.0, %v978
    %v980 = vpop.f32.mrb[0].mxu0
    %v981 = vadd.f32 0.0, %v980
    %v982 = vpop.f32.mrb[0].mxu0
    %v983 = vadd.f32 0.0, %v982
    %984 = vmatprep.mubr.bf16.mxu0 0
    %985 = vmatmul.mubr.bf16.gmra.mrb[0].mxu0 %v901
    %v986 = vpop.f32.mrb[0].mxu0
    %v987 = vadd.f32 0.0, %v986
    %v988 = vpop.f32.mrb[0].mxu0
    %v989 = vadd.f32 0.0, %v988
    %v990 = vpop.f32.mrb[0].mxu0
    %v991 = vadd.f32 0.0, %v990
    %v992 = vpop.f32.mrb[0].mxu0
    %v993 = vadd.f32 0.0, %v992
    %994 = vmatprep.mubr.bf16.mxu0 0
    %995 = vmatmul.mubr.bf16.gmra.mrb[0].mxu0 %v902
    %v996 = vpop.f32.mrb[0].mxu0
    %v997 = vadd.f32 0.0, %v996
    %v998 = vpop.f32.mrb[0].mxu0
    %v999 = vadd.f32 0.0, %v998
    %v1000 = vpop.f32.mrb[0].mxu0
    %v1001 = vadd.f32 0.0, %v1000
    %v1002 = vpop.f32.mrb[0].mxu0
    %v1003 = vadd.f32 0.0, %v1002
    %1004 = vmatprep.mubr.bf16.mxu0 0
    %1005 = vmatmul.mubr.bf16.gmra.mrb[0].mxu0 %v903
    %v1006 = vpop.f32.mrb[0].mxu0
    %v1007 = vadd.f32 0.0, %v1006
    %v1008 = vpop.f32.mrb[0].mxu0
    %v1009 = vadd.f32 0.0, %v1008
    %v1010 = vpop.f32.mrb[0].mxu0
    %v1011 = vadd.f32 0.0, %v1010
    %v1012 = vpop.f32.mrb[0].mxu0
    %v1013 = vadd.f32 0.0, %v1012
    %1014 = vmatprep.mubr.bf16.mxu0 0
    %1015 = vmatmul.mubr.bf16.gmra.mrb[0].mxu0 %v904
    %v1016 = vpop.f32.mrb[0].mxu0
    %v1017 = vadd.f32 0.0, %v1016
    %v1018 = vpop.f32.mrb[0].mxu0
    %v1019 = vadd.f32 0.0, %v1018
    %v1020 = vpop.f32.mrb[0].mxu0
    %v1021 = vadd.f32 0.0, %v1020
    %v1022 = vpop.f32.mrb[0].mxu0
    %v1023 = vadd.f32 0.0, %v1022
    %1024 = vmatprep.mubr.bf16.mxu0 0
    %1025 = vmatmul.mubr.bf16.gmra.mrb[0].mxu0 %v905
    %v1026 = vpop.f32.mrb[0].mxu0
    %v1027 = vadd.f32 0.0, %v1026
    %v1028 = vpop.f32.mrb[0].mxu0
    %v1029 = vadd.f32 0.0, %v1028
    %v1030 = vpop.f32.mrb[0].mxu0
    %v1031 = vadd.f32 0.0, %v1030
    %v1032 = vpop.f32.mrb[0].mxu0
    %v1033 = vadd.f32 0.0, %v1032
    %1034 = vdwg.mxu0
    %v1035 = vrcp.pop %v882
    %v1036 = vrcp.pop %v883
    %v1037 = vrcp.pop %v884
    %v1038 = vrcp.pop %v885
    %v1039 = vrcp.pop %v886
    %v1040 = vrcp.pop %v887
    %v1041 = vrcp.pop %v888
    %v1042 = vrcp.pop %v889
    %v1043 = vrcp.pop %v890
    %v1044 = vrcp.pop %v891
    %v1045 = vrcp.pop %v892
    %v1046 = vrcp.pop %v893
    %v1047 = vrcp.pop %v894
    %v1048 = vrcp.pop %v895
    %v1049 = vrcp.pop %v896
    %v1050 = vrcp.pop %v897
    %v1051 = vmul.f32 %v957, %v1035
    %v1052 = vmul.f32 %v959, %v1035
    %v1053 = vmul.f32 %v961, %v1036
    %v1054 = vmul.f32 %v963, %v1036
    %v1055 = vmul.f32 %v967, %v1037
    %v1056 = vmul.f32 %v969, %v1037
    %v1057 = vmul.f32 %v971, %v1038
    %v1058 = vmul.f32 %v973, %v1038
    %v1059 = vmul.f32 %v977, %v1039
    %v1060 = vmul.f32 %v979, %v1039
    %v1061 = vmul.f32 %v981, %v1040
    %v1062 = vmul.f32 %v983, %v1040
    %v1063 = vmul.f32 %v987, %v1041
    %v1064 = vmul.f32 %v989, %v1041
    %v1065 = vmul.f32 %v991, %v1042
    %v1066 = vmul.f32 %v993, %v1042
    %v1067 = vmul.f32 %v997, %v1043
    %v1068 = vmul.f32 %v999, %v1043
    %v1069 = vmul.f32 %v1001, %v1044
    %v1070 = vmul.f32 %v1003, %v1044
    %v1071 = vmul.f32 %v1007, %v1045
    %v1072 = vmul.f32 %v1009, %v1045
    %v1073 = vmul.f32 %v1011, %v1046
    %v1074 = vmul.f32 %v1013, %v1046
    %v1075 = vmul.f32 %v1017, %v1047
    %v1076 = vmul.f32 %v1019, %v1047
    %v1077 = vmul.f32 %v1021, %v1048
    %v1078 = vmul.f32 %v1023, %v1048
    %v1079 = vmul.f32 %v1027, %v1049
    %v1080 = vmul.f32 %v1029, %v1049
    %v1081 = vmul.f32 %v1031, %v1050
    %v1082 = vmul.f32 %v1033, %v1050
    %v1084 = vlaneseq
    %v1085 = vshrl.u32 %v1084, 7
    %v1086 = vsub.s32 0, %v1085
    %v1087 = vrot.slane %v299, %v1086
    %v1088 = vlaneseq
    %v1089 = vshrl.u32 %v1088, 7
    %v1090 = vsub.s32 1, %v1089
    %v1091 = vrot.slane %v299, %v1090
    %v1094 = vadd.f32 %v1051, %v1087
    %v1095 = vadd.f32 %v1052, %v1091
    %v1096 = vadd.f32 %v1053, %v1087
    %v1097 = vadd.f32 %v1054, %v1091
    %v1098 = vadd.f32 %v1055, %v1087
    %v1099 = vadd.f32 %v1056, %v1091
    %v1100 = vadd.f32 %v1057, %v1087
    %v1101 = vadd.f32 %v1058, %v1091
    %v1102 = vadd.f32 %v1059, %v1087
    %v1103 = vadd.f32 %v1060, %v1091
    %v1104 = vadd.f32 %v1061, %v1087
    %v1105 = vadd.f32 %v1062, %v1091
    %v1106 = vadd.f32 %v1063, %v1087
    %v1107 = vadd.f32 %v1064, %v1091
    %v1108 = vadd.f32 %v1065, %v1087
    %v1109 = vadd.f32 %v1066, %v1091
    %v1110 = vadd.f32 %v1067, %v1087
    %v1111 = vadd.f32 %v1068, %v1091
    %v1112 = vadd.f32 %v1069, %v1087
    %v1113 = vadd.f32 %v1070, %v1091
    %v1114 = vadd.f32 %v1071, %v1087
    %v1115 = vadd.f32 %v1072, %v1091
    %v1116 = vadd.f32 %v1073, %v1087
    %v1117 = vadd.f32 %v1074, %v1091
    %v1118 = vadd.f32 %v1075, %v1087
    %v1119 = vadd.f32 %v1076, %v1091
    %v1120 = vadd.f32 %v1077, %v1087
    %v1121 = vadd.f32 %v1078, %v1091
    %v1122 = vadd.f32 %v1079, %v1087
    %v1123 = vadd.f32 %v1080, %v1091
    %v1124 = vadd.f32 %v1081, %v1087
    %v1125 = vadd.f32 %v1082, %v1091
    %v1126 = vmax.f32 %v1094, 0.0
    %v1127 = vmax.f32 %v1095, 0.0
    %v1128 = vmax.f32 %v1096, 0.0
    %v1129 = vmax.f32 %v1097, 0.0
    %v1130 = vmax.f32 %v1098, 0.0
    %v1131 = vmax.f32 %v1099, 0.0
    %v1132 = vmax.f32 %v1100, 0.0
    %v1133 = vmax.f32 %v1101, 0.0
    %v1134 = vmax.f32 %v1102, 0.0
    %v1135 = vmax.f32 %v1103, 0.0
    %v1136 = vmax.f32 %v1104, 0.0
    %v1137 = vmax.f32 %v1105, 0.0
    %v1138 = vmax.f32 %v1106, 0.0
    %v1139 = vmax.f32 %v1107, 0.0
    %v1140 = vmax.f32 %v1108, 0.0
    %v1141 = vmax.f32 %v1109, 0.0
    %v1142 = vmax.f32 %v1110, 0.0
    %v1143 = vmax.f32 %v1111, 0.0
    %v1144 = vmax.f32 %v1112, 0.0
    %v1145 = vmax.f32 %v1113, 0.0
    %v1146 = vmax.f32 %v1114, 0.0
    %v1147 = vmax.f32 %v1115, 0.0
    %v1148 = vmax.f32 %v1116, 0.0
    %v1149 = vmax.f32 %v1117, 0.0
    %v1150 = vmax.f32 %v1118, 0.0
    %v1151 = vmax.f32 %v1119, 0.0
    %v1152 = vmax.f32 %v1120, 0.0
    %v1153 = vmax.f32 %v1121, 0.0
    %v1154 = vmax.f32 %v1122, 0.0
    %v1155 = vmax.f32 %v1123, 0.0
    %v1156 = vmax.f32 %v1124, 0.0
    %v1157 = vmax.f32 %v1125, 0.0
    %v1158 = vld [vmem:[#allocation10] sm:$0xff]
    %v1159 = vld [vmem:[#allocation10 + $0x8] sm:$0xff]
    %v1160 = vld [vmem:[#allocation10 + $0x10] sm:$0xff]
    %v1161 = vld [vmem:[#allocation10 + $0x18] sm:$0xff]
    %v1162 = vld [vmem:[#allocation10 + $0x20] sm:$0xff]
    %v1163 = vld [vmem:[#allocation10 + $0x28] sm:$0xff]
    %v1164 = vld [vmem:[#allocation10 + $0x30] sm:$0xff]
    %v1165 = vld [vmem:[#allocation10 + $0x38] sm:$0xff]
    %v1166 = vld [vmem:[#allocation10 + $0x40] sm:$0xff]
    %v1167 = vld [vmem:[#allocation10 + $0x48] sm:$0xff]
    %v1168 = vld [vmem:[#allocation10 + $0x50] sm:$0xff]
    %v1169 = vld [vmem:[#allocation10 + $0x58] sm:$0xff]
    %v1170 = vld [vmem:[#allocation10 + $0x60] sm:$0xff]
    %v1171 = vld [vmem:[#allocation10 + $0x68] sm:$0xff]
    %v1172 = vld [vmem:[#allocation10 + $0x70] sm:$0xff]
    %v1173 = vld [vmem:[#allocation10 + $0x78] sm:$0xff]
    %v1174 = vld [vmem:[#allocation10 + $0x80] sm:$0xff]
    %v1175 = vld [vmem:[#allocation10 + $0x88] sm:$0xff]
    %v1176 = vld [vmem:[#allocation10 + $0x90] sm:$0xff]
    %v1177 = vld [vmem:[#allocation10 + $0x98] sm:$0xff]
    %v1178 = vld [vmem:[#allocation10 + $0xa0] sm:$0xff]
    %v1179 = vld [vmem:[#allocation10 + $0xa8] sm:$0xff]
    %v1180 = vld [vmem:[#allocation10 + $0xb0] sm:$0xff]
    %v1181 = vld [vmem:[#allocation10 + $0xb8] sm:$0xff]
    %v1182 = vld [vmem:[#allocation10 + $0xc0] sm:$0xff]
    %v1183 = vld [vmem:[#allocation10 + $0xc8] sm:$0xff]
    %v1184 = vld [vmem:[#allocation10 + $0xd0] sm:$0xff]
    %v1185 = vld [vmem:[#allocation10 + $0xd8] sm:$0xff]
    %v1186 = vld [vmem:[#allocation10 + $0xe0] sm:$0xff]
    %v1187 = vld [vmem:[#allocation10 + $0xe8] sm:$0xff]
    %v1188 = vld [vmem:[#allocation10 + $0xf0] sm:$0xff]
    %v1189 = vld [vmem:[#allocation10 + $0xf8] sm:$0xff]
    %v1190 = vld [vmem:[#allocation11] sm:$0x3]
    %v1191 = vld [vmem:[#allocation13] sm:$0x3]
    %v1192 = vld [vmem:[#allocation14] sm:$0x3]
    %v1193 = vpack.c.bf16 %v1128, %v1126
    %v1194 = vpack.c.bf16 %v1129, %v1127
    %v1195 = vpack.c.bf16 %v1132, %v1130
    %v1196 = vpack.c.bf16 %v1133, %v1131
    %v1197 = vpack.c.bf16 %v1136, %v1134
    %v1198 = vpack.c.bf16 %v1137, %v1135
    %v1199 = vpack.c.bf16 %v1140, %v1138
    %v1200 = vpack.c.bf16 %v1141, %v1139
    %v1201 = vpack.c.bf16 %v1144, %v1142
    %v1202 = vpack.c.bf16 %v1145, %v1143
    %v1203 = vpack.c.bf16 %v1148, %v1146
    %v1204 = vpack.c.bf16 %v1149, %v1147
    %v1205 = vpack.c.bf16 %v1152, %v1150
    %v1206 = vpack.c.bf16 %v1153, %v1151
    %v1207 = vpack.c.bf16 %v1156, %v1154
    %v1208 = vpack.c.bf16 %v1157, %v1155
    %v1241 = vunpack.c.l.b16 %v1158
    %v1242 = vunpack.c.h.b16 %v1158
    %v1243 = vunpack.c.l.b16 %v1159
    %v1244 = vunpack.c.h.b16 %v1159
    %v1245 = vunpack.c.l.b16 %v1160
    %v1246 = vunpack.c.h.b16 %v1160
    %v1247 = vunpack.c.l.b16 %v1161
    %v1248 = vunpack.c.h.b16 %v1161
    %v1249 = vunpack.c.l.b16 %v1162
    %v1250 = vunpack.c.h.b16 %v1162
    %v1251 = vunpack.c.l.b16 %v1163
    %v1252 = vunpack.c.h.b16 %v1163
    %v1253 = vunpack.c.l.b16 %v1164
    %v1254 = vunpack.c.h.b16 %v1164
    %v1255 = vunpack.c.l.b16 %v1165
    %v1256 = vunpack.c.h.b16 %v1165
    %v1257 = vunpack.c.l.b16 %v1166
    %v1258 = vunpack.c.h.b16 %v1166
    %v1259 = vunpack.c.l.b16 %v1167
    %v1260 = vunpack.c.h.b16 %v1167
    %v1261 = vunpack.c.l.b16 %v1168
    %v1262 = vunpack.c.h.b16 %v1168
    %v1263 = vunpack.c.l.b16 %v1169
    %v1264 = vunpack.c.h.b16 %v1169
    %v1265 = vunpack.c.l.b16 %v1170
    %v1266 = vunpack.c.h.b16 %v1170
    %v1267 = vunpack.c.l.b16 %v1171
    %v1268 = vunpack.c.h.b16 %v1171
    %v1269 = vunpack.c.l.b16 %v1172
    %v1270 = vunpack.c.h.b16 %v1172
    %v1271 = vunpack.c.l.b16 %v1173
    %v1272 = vunpack.c.h.b16 %v1173
    %v1273 = vunpack.c.l.b16 %v1174
    %v1274 = vunpack.c.h.b16 %v1174
    %v1275 = vunpack.c.l.b16 %v1175
    %v1276 = vunpack.c.h.b16 %v1175
    %v1277 = vunpack.c.l.b16 %v1176
    %v1278 = vunpack.c.h.b16 %v1176
    %v1279 = vunpack.c.l.b16 %v1177
    %v1280 = vunpack.c.h.b16 %v1177
    %v1281 = vunpack.c.l.b16 %v1178
    %v1282 = vunpack.c.h.b16 %v1178
    %v1283 = vunpack.c.l.b16 %v1179
    %v1284 = vunpack.c.h.b16 %v1179
    %v1285 = vunpack.c.l.b16 %v1180
    %v1286 = vunpack.c.h.b16 %v1180
    %v1287 = vunpack.c.l.b16 %v1181
    %v1288 = vunpack.c.h.b16 %v1181
    %v1289 = vunpack.c.l.b16 %v1182
    %v1290 = vunpack.c.h.b16 %v1182
    %v1291 = vunpack.c.l.b16 %v1183
    %v1292 = vunpack.c.h.b16 %v1183
    %v1293 = vunpack.c.l.b16 %v1184
    %v1294 = vunpack.c.h.b16 %v1184
    %v1295 = vunpack.c.l.b16 %v1185
    %v1296 = vunpack.c.h.b16 %v1185
    %v1297 = vunpack.c.l.b16 %v1186
    %v1298 = vunpack.c.h.b16 %v1186
    %v1299 = vunpack.c.l.b16 %v1187
    %v1300 = vunpack.c.h.b16 %v1187
    %v1301 = vunpack.c.l.b16 %v1188
    %v1302 = vunpack.c.h.b16 %v1188
    %v1303 = vunpack.c.l.b16 %v1189
    %v1304 = vunpack.c.h.b16 %v1189
    %v1305 = vpack.c.b16 %v1243, %v1241
    %v1306 = vpack.c.b16 %v1244, %v1242
    %v1307 = vpack.c.b16 %v1247, %v1245
    %v1308 = vpack.c.b16 %v1248, %v1246
    %v1309 = vpack.c.b16 %v1251, %v1249
    %v1310 = vpack.c.b16 %v1252, %v1250
    %v1311 = vpack.c.b16 %v1255, %v1253
    %v1312 = vpack.c.b16 %v1256, %v1254
    %v1313 = vpack.c.b16 %v1259, %v1257
    %v1314 = vpack.c.b16 %v1260, %v1258
    %v1315 = vpack.c.b16 %v1263, %v1261
    %v1316 = vpack.c.b16 %v1264, %v1262
    %v1317 = vpack.c.b16 %v1267, %v1265
    %v1318 = vpack.c.b16 %v1268, %v1266
    %v1319 = vpack.c.b16 %v1271, %v1269
    %v1320 = vpack.c.b16 %v1272, %v1270
    %v1321 = vpack.c.b16 %v1275, %v1273
    %v1322 = vpack.c.b16 %v1276, %v1274
    %v1323 = vpack.c.b16 %v1279, %v1277
    %v1324 = vpack.c.b16 %v1280, %v1278
    %v1325 = vpack.c.b16 %v1283, %v1281
    %v1326 = vpack.c.b16 %v1284, %v1282
    %v1327 = vpack.c.b16 %v1287, %v1285
    %v1328 = vpack.c.b16 %v1288, %v1286
    %v1329 = vpack.c.b16 %v1291, %v1289
    %v1330 = vpack.c.b16 %v1292, %v1290
    %v1331 = vpack.c.b16 %v1295, %v1293
    %v1332 = vpack.c.b16 %v1296, %v1294
    %v1333 = vpack.c.b16 %v1299, %v1297
    %v1334 = vpack.c.b16 %v1300, %v1298
    %v1335 = vpack.c.b16 %v1303, %v1301
    %v1336 = vpack.c.b16 %v1304, %v1302
    %1369 = vmatprep.subr.bf16.mxu0 %v1306
    %1370 = vmatpush1.bf16.msra.mxu0 %v1305
    %1371 = vmatprep.subr.bf16.mxu0 %v1308
    %1372 = vmatpush1.bf16.msra.mxu0 %v1307
    %1373 = vmatprep.subr.bf16.mxu0 %v1310
    %1374 = vmatpush1.bf16.msra.mxu0 %v1309
    %1375 = vmatprep.subr.bf16.mxu0 %v1312
    %1376 = vmatpush1.bf16.msra.mxu0 %v1311
    %1377 = vmatprep.subr.bf16.mxu0 %v1314
    %1378 = vmatpush1.bf16.msra.mxu0 %v1313
    %1379 = vmatprep.subr.bf16.mxu0 %v1316
    %1380 = vmatpush1.bf16.msra.mxu0 %v1315
    %1381 = vmatprep.subr.bf16.mxu0 %v1318
    %1382 = vmatpush1.bf16.msra.mxu0 %v1317
    %1383 = vmatprep.subr.bf16.mxu0 %v1320
    %1384 = vmatpush1.bf16.msra.mxu0 %v1319
    %1385 = vmatprep.subr.bf16.mxu0 %v1322
    %1386 = vmatpush1.bf16.msra.mxu0 %v1321
    %1387 = vmatprep.subr.bf16.mxu0 %v1324
    %1388 = vmatpush1.bf16.msra.mxu0 %v1323
    %1389 = vmatprep.subr.bf16.mxu0 %v1326
    %1390 = vmatpush1.bf16.msra.mxu0 %v1325
    %1391 = vmatprep.subr.bf16.mxu0 %v1328
    %1392 = vmatpush1.bf16.msra.mxu0 %v1327
    %1393 = vmatprep.subr.bf16.mxu0 %v1330
    %1394 = vmatpush1.bf16.msra.mxu0 %v1329
    %1395 = vmatprep.subr.bf16.mxu0 %v1332
    %1396 = vmatpush1.bf16.msra.mxu0 %v1331
    %1397 = vmatprep.subr.bf16.mxu0 %v1334
    %1398 = vmatpush1.bf16.msra.mxu0 %v1333
    %1399 = vmatprep.subr.bf16.mxu0 %v1336
    %1400 = vmatpush1.bf16.msra.mxu0 %v1335
    %1401 = vmatprep.mubr.bf16.mxu0 %v1194
    %1402 = vmatmul.mubr.bf16.gmra.mrb[0].mxu0 %v1193
    %v1403 = vpop.f32.mrb[0].mxu0
    %v1404 = vadd.f32 0.0, %v1403
    %v1405 = vpop.f32.mrb[0].mxu0
    %v1406 = vadd.f32 0.0, %v1405
    %v1407 = vpop.f32.mrb[0].mxu0
    %v1408 = vadd.f32 0.0, %v1407
    %v1409 = vpop.f32.mrb[0].mxu0
    %v1410 = vadd.f32 0.0, %v1409
    %1411 = vmatprep.mubr.bf16.mxu0 %v1196
    %1412 = vmatmul.mubr.bf16.gmra.mrb[0].mxu0 %v1195
    %v1413 = vpop.f32.mrb[0].mxu0
    %v1414 = vadd.f32 0.0, %v1413
    %v1415 = vpop.f32.mrb[0].mxu0
    %v1416 = vadd.f32 0.0, %v1415
    %v1417 = vpop.f32.mrb[0].mxu0
    %v1418 = vadd.f32 0.0, %v1417
    %v1419 = vpop.f32.mrb[0].mxu0
    %v1420 = vadd.f32 0.0, %v1419
    %1421 = vmatprep.mubr.bf16.mxu0 %v1198
    %1422 = vmatmul.mubr.bf16.gmra.mrb[0].mxu0 %v1197
    %v1423 = vpop.f32.mrb[0].mxu0
    %v1424 = vadd.f32 0.0, %v1423
    %v1425 = vpop.f32.mrb[0].mxu0
    %v1426 = vadd.f32 0.0, %v1425
    %v1427 = vpop.f32.mrb[0].mxu0
    %v1428 = vadd.f32 0.0, %v1427
    %v1429 = vpop.f32.mrb[0].mxu0
    %v1430 = vadd.f32 0.0, %v1429
    %1431 = vmatprep.mubr.bf16.mxu0 %v1200
    %1432 = vmatmul.mubr.bf16.gmra.mrb[0].mxu0 %v1199
    %v1433 = vpop.f32.mrb[0].mxu0
    %v1434 = vadd.f32 0.0, %v1433
    %v1435 = vpop.f32.mrb[0].mxu0
    %v1436 = vadd.f32 0.0, %v1435
    %v1437 = vpop.f32.mrb[0].mxu0
    %v1438 = vadd.f32 0.0, %v1437
    %v1439 = vpop.f32.mrb[0].mxu0
    %v1440 = vadd.f32 0.0, %v1439
    %1441 = vmatprep.mubr.bf16.mxu0 %v1202
    %1442 = vmatmul.mubr.bf16.gmra.mrb[0].mxu0 %v1201
    %v1443 = vpop.f32.mrb[0].mxu0
    %v1444 = vadd.f32 0.0, %v1443
    %v1445 = vpop.f32.mrb[0].mxu0
    %v1446 = vadd.f32 0.0, %v1445
    %v1447 = vpop.f32.mrb[0].mxu0
    %v1448 = vadd.f32 0.0, %v1447
    %v1449 = vpop.f32.mrb[0].mxu0
    %v1450 = vadd.f32 0.0, %v1449
    %1451 = vmatprep.mubr.bf16.mxu0 %v1204
    %1452 = vmatmul.mubr.bf16.gmra.mrb[0].mxu0 %v1203
    %v1453 = vpop.f32.mrb[0].mxu0
    %v1454 = vadd.f32 0.0, %v1453
    %v1455 = vpop.f32.mrb[0].mxu0
    %v1456 = vadd.f32 0.0, %v1455
    %v1457 = vpop.f32.mrb[0].mxu0
    %v1458 = vadd.f32 0.0, %v1457
    %v1459 = vpop.f32.mrb[0].mxu0
    %v1460 = vadd.f32 0.0, %v1459
    %1461 = vmatprep.mubr.bf16.mxu0 %v1206
    %1462 = vmatmul.mubr.bf16.gmra.mrb[0].mxu0 %v1205
    %v1463 = vpop.f32.mrb[0].mxu0
    %v1464 = vadd.f32 0.0, %v1463
    %v1465 = vpop.f32.mrb[0].mxu0
    %v1466 = vadd.f32 0.0, %v1465
    %v1467 = vpop.f32.mrb[0].mxu0
    %v1468 = vadd.f32 0.0, %v1467
    %v1469 = vpop.f32.mrb[0].mxu0
    %v1470 = vadd.f32 0.0, %v1469
    %1471 = vmatprep.mubr.bf16.mxu0 %v1208
    %1472 = vmatmul.mubr.bf16.gmra.mrb[0].mxu0 %v1207
    %v1473 = vpop.f32.mrb[0].mxu0
    %v1474 = vadd.f32 0.0, %v1473
    %v1475 = vpop.f32.mrb[0].mxu0
    %v1476 = vadd.f32 0.0, %v1475
    %v1477 = vpop.f32.mrb[0].mxu0
    %v1478 = vadd.f32 0.0, %v1477
    %v1479 = vpop.f32.mrb[0].mxu0
    %v1480 = vadd.f32 0.0, %v1479
    %1481 = vdwg.mxu0
    %v1483 = vlaneseq
    %v1484 = vshrl.u32 %v1483, 7
    %v1485 = vsub.s32 0, %v1484
    %v1486 = vrot.slane %v1191, %v1485
    %v1487 = vlaneseq
    %v1488 = vshrl.u32 %v1487, 7
    %v1489 = vsub.s32 1, %v1488
    %v1490 = vrot.slane %v1191, %v1489
    %v1493 = vmul.f32 %v1404, %v1486
    %v1494 = vmul.f32 %v1406, %v1490
    %v1495 = vmul.f32 %v1408, %v1486
    %v1496 = vmul.f32 %v1410, %v1490
    %v1497 = vmul.f32 %v1414, %v1486
    %v1498 = vmul.f32 %v1416, %v1490
    %v1499 = vmul.f32 %v1418, %v1486
    %v1500 = vmul.f32 %v1420, %v1490
    %v1501 = vmul.f32 %v1424, %v1486
    %v1502 = vmul.f32 %v1426, %v1490
    %v1503 = vmul.f32 %v1428, %v1486
    %v1504 = vmul.f32 %v1430, %v1490
    %v1505 = vmul.f32 %v1434, %v1486
    %v1506 = vmul.f32 %v1436, %v1490
    %v1507 = vmul.f32 %v1438, %v1486
    %v1508 = vmul.f32 %v1440, %v1490
    %v1509 = vmul.f32 %v1444, %v1486
    %v1510 = vmul.f32 %v1446, %v1490
    %v1511 = vmul.f32 %v1448, %v1486
    %v1512 = vmul.f32 %v1450, %v1490
    %v1513 = vmul.f32 %v1454, %v1486
    %v1514 = vmul.f32 %v1456, %v1490
    %v1515 = vmul.f32 %v1458, %v1486
    %v1516 = vmul.f32 %v1460, %v1490
    %v1517 = vmul.f32 %v1464, %v1486
    %v1518 = vmul.f32 %v1466, %v1490
    %v1519 = vmul.f32 %v1468, %v1486
    %v1520 = vmul.f32 %v1470, %v1490
    %v1521 = vmul.f32 %v1474, %v1486
    %v1522 = vmul.f32 %v1476, %v1490
    %v1523 = vmul.f32 %v1478, %v1486
    %v1524 = vmul.f32 %v1480, %v1490
    %v1525 = vadd.f32 %v1493, %v1494
    %1526 = vadd.xlane.f32.xlu0 %v1525
    %v1527 = vpop.xlane.xlu0 %1526
    %v1528 = vadd.f32 %v1495, %v1496
    %1529 = vadd.xlane.f32.xlu0 %v1528
    %v1530 = vpop.xlane.xlu0 %1529
    %v1531 = vadd.f32 %v1497, %v1498
    %1532 = vadd.xlane.f32.xlu0 %v1531
    %v1533 = vpop.xlane.xlu0 %1532
    %v1534 = vadd.f32 %v1499, %v1500
    %1535 = vadd.xlane.f32.xlu0 %v1534
    %v1536 = vpop.xlane.xlu0 %1535
    %v1537 = vadd.f32 %v1501, %v1502
    %1538 = vadd.xlane.f32.xlu0 %v1537
    %v1539 = vpop.xlane.xlu0 %1538
    %v1540 = vadd.f32 %v1503, %v1504
    %1541 = vadd.xlane.f32.xlu0 %v1540
    %v1542 = vpop.xlane.xlu0 %1541
    %v1543 = vadd.f32 %v1505, %v1506
    %1544 = vadd.xlane.f32.xlu0 %v1543
    %v1545 = vpop.xlane.xlu0 %1544
    %v1546 = vadd.f32 %v1507, %v1508
    %1547 = vadd.xlane.f32.xlu0 %v1546
    %v1548 = vpop.xlane.xlu0 %1547
    %v1549 = vadd.f32 %v1509, %v1510
    %1550 = vadd.xlane.f32.xlu0 %v1549
    %v1551 = vpop.xlane.xlu0 %1550
    %v1552 = vadd.f32 %v1511, %v1512
    %1553 = vadd.xlane.f32.xlu0 %v1552
    %v1554 = vpop.xlane.xlu0 %1553
    %v1555 = vadd.f32 %v1513, %v1514
    %1556 = vadd.xlane.f32.xlu0 %v1555
    %v1557 = vpop.xlane.xlu0 %1556
    %v1558 = vadd.f32 %v1515, %v1516
    %1559 = vadd.xlane.f32.xlu0 %v1558
    %v1560 = vpop.xlane.xlu0 %1559
    %v1561 = vadd.f32 %v1517, %v1518
    %1562 = vadd.xlane.f32.xlu0 %v1561
    %v1563 = vpop.xlane.xlu0 %1562
    %v1564 = vadd.f32 %v1519, %v1520
    %1565 = vadd.xlane.f32.xlu0 %v1564
    %v1566 = vpop.xlane.xlu0 %1565
    %v1567 = vadd.f32 %v1521, %v1522
    %1568 = vadd.xlane.f32.xlu0 %v1567
    %v1569 = vpop.xlane.xlu0 %1568
    %v1570 = vadd.f32 %v1523, %v1524
    %1571 = vadd.xlane.f32.xlu0 %v1570
    %v1572 = vpop.xlane.xlu0 %1571
    %v1574 = vlaneseq
    %v1575 = vshrl.u32 %v1574, 7
    %v1576 = vsub.s32 0, %v1575
    %v1577 = vrot.slane %v1190, %v1576
    %v1578 = vlaneseq
    %v1579 = vshrl.u32 %v1578, 7
    %v1580 = vsub.s32 1, %v1579
    %v1581 = vrot.slane %v1190, %v1580
    %v1584 = vmul.f32 %v1404, %v1577
    %v1585 = vmul.f32 %v1406, %v1581
    %v1586 = vmul.f32 %v1408, %v1577
    %v1587 = vmul.f32 %v1410, %v1581
    %v1588 = vmul.f32 %v1414, %v1577
    %v1589 = vmul.f32 %v1416, %v1581
    %v1590 = vmul.f32 %v1418, %v1577
    %v1591 = vmul.f32 %v1420, %v1581
    %v1592 = vmul.f32 %v1424, %v1577
    %v1593 = vmul.f32 %v1426, %v1581
    %v1594 = vmul.f32 %v1428, %v1577
    %v1595 = vmul.f32 %v1430, %v1581
    %v1596 = vmul.f32 %v1434, %v1577
    %v1597 = vmul.f32 %v1436, %v1581
    %v1598 = vmul.f32 %v1438, %v1577
    %v1599 = vmul.f32 %v1440, %v1581
    %v1600 = vmul.f32 %v1444, %v1577
    %v1601 = vmul.f32 %v1446, %v1581
    %v1602 = vmul.f32 %v1448, %v1577
    %v1603 = vmul.f32 %v1450, %v1581
    %v1604 = vmul.f32 %v1454, %v1577
    %v1605 = vmul.f32 %v1456, %v1581
    %v1606 = vmul.f32 %v1458, %v1577
    %v1607 = vmul.f32 %v1460, %v1581
    %v1608 = vmul.f32 %v1464, %v1577
    %v1609 = vmul.f32 %v1466, %v1581
    %v1610 = vmul.f32 %v1468, %v1577
    %v1611 = vmul.f32 %v1470, %v1581
    %v1612 = vmul.f32 %v1474, %v1577
    %v1613 = vmul.f32 %v1476, %v1581
    %v1614 = vmul.f32 %v1478, %v1577
    %v1615 = vmul.f32 %v1480, %v1581
    %v1616 = vadd.f32 %v1584, %v1585
    %1617 = vadd.xlane.f32.xlu0 %v1616
    %v1618 = vpop.xlane.xlu0 %1617
    %v1619 = vadd.f32 %v1586, %v1587
    %1620 = vadd.xlane.f32.xlu0 %v1619
    %v1621 = vpop.xlane.xlu0 %1620
    %v1622 = vadd.f32 %v1588, %v1589
    %1623 = vadd.xlane.f32.xlu0 %v1622
    %v1624 = vpop.xlane.xlu0 %1623
    %v1625 = vadd.f32 %v1590, %v1591
    %1626 = vadd.xlane.f32.xlu0 %v1625
    %v1627 = vpop.xlane.xlu0 %1626
    %v1628 = vadd.f32 %v1592, %v1593
    %1629 = vadd.xlane.f32.xlu0 %v1628
    %v1630 = vpop.xlane.xlu0 %1629
    %v1631 = vadd.f32 %v1594, %v1595
    %1632 = vadd.xlane.f32.xlu0 %v1631
    %v1633 = vpop.xlane.xlu0 %1632
    %v1634 = vadd.f32 %v1596, %v1597
    %1635 = vadd.xlane.f32.xlu0 %v1634
    %v1636 = vpop.xlane.xlu0 %1635
    %v1637 = vadd.f32 %v1598, %v1599
    %1638 = vadd.xlane.f32.xlu0 %v1637
    %v1639 = vpop.xlane.xlu0 %1638
    %v1640 = vadd.f32 %v1600, %v1601
    %1641 = vadd.xlane.f32.xlu0 %v1640
    %v1642 = vpop.xlane.xlu0 %1641
    %v1643 = vadd.f32 %v1602, %v1603
    %1644 = vadd.xlane.f32.xlu0 %v1643
    %v1645 = vpop.xlane.xlu0 %1644
    %v1646 = vadd.f32 %v1604, %v1605
    %1647 = vadd.xlane.f32.xlu0 %v1646
    %v1648 = vpop.xlane.xlu0 %1647
    %v1649 = vadd.f32 %v1606, %v1607
    %1650 = vadd.xlane.f32.xlu0 %v1649
    %v1651 = vpop.xlane.xlu0 %1650
    %v1652 = vadd.f32 %v1608, %v1609
    %1653 = vadd.xlane.f32.xlu0 %v1652
    %v1654 = vpop.xlane.xlu0 %1653
    %v1655 = vadd.f32 %v1610, %v1611
    %1656 = vadd.xlane.f32.xlu0 %v1655
    %v1657 = vpop.xlane.xlu0 %1656
    %v1658 = vadd.f32 %v1612, %v1613
    %1659 = vadd.xlane.f32.xlu0 %v1658
    %v1660 = vpop.xlane.xlu0 %1659
    %v1661 = vadd.f32 %v1614, %v1615
    %1662 = vadd.xlane.f32.xlu0 %v1661
    %v1663 = vpop.xlane.xlu0 %1662
    %1664 = vxpose.xlu0.b32.start [1/16] %v1618, 128
    %1665 = vxpose.xlu0.b32.cont [2/16] %v1621, 128
    %1666 = vxpose.xlu0.b32.cont [3/16] %v1624, 128
    %1667 = vxpose.xlu0.b32.cont [4/16] %v1627, 128
    %1668 = vxpose.xlu0.b32.cont [5/16] %v1630, 128
    %1669 = vxpose.xlu0.b32.cont [6/16] %v1633, 128
    %1670 = vxpose.xlu0.b32.cont [7/16] %v1636, 128
    %1671 = vxpose.xlu0.b32.cont [8/16] %v1639, 128
    %1672 = vxpose.xlu0.b32.cont [9/16] %v1642, 128
    %1673 = vxpose.xlu0.b32.cont [10/16] %v1645, 128
    %1674 = vxpose.xlu0.b32.cont [11/16] %v1648, 128
    %1675 = vxpose.xlu0.b32.cont [12/16] %v1651, 128
    %1676 = vxpose.xlu0.b32.cont [13/16] %v1654, 128
    %1677 = vxpose.xlu0.b32.cont [14/16] %v1657, 128
    %1678 = vxpose.xlu0.b32.cont [15/16] %v1660, 128
    %1679 = vxpose.xlu0.b32.end [16/16] %v1663, 128
    %v1680 = vpop.trf.xlu0
    %v1681 = vpop.trf.xlu0
    %v1682 = vpop.trf.xlu0
    %v1683 = vpop.trf.xlu0
    %v1684 = vpop.trf.xlu0
    %v1685 = vpop.trf.xlu0
    %v1686 = vpop.trf.xlu0
    %v1687 = vpop.trf.xlu0
    %v1688 = vpop.trf.xlu0
    %v1689 = vpop.trf.xlu0
    %v1690 = vpop.trf.xlu0
    %v1691 = vpop.trf.xlu0
    %v1692 = vpop.trf.xlu0
    %v1693 = vpop.trf.xlu0
    %v1694 = vpop.trf.xlu0
    %v1695 = vpop.trf.xlu0
    %v1696 = vlaneseq
    %v1697 = vshrl.u32 %v1696, 7
    %v1698 = vsub.s32 0, %v1697
    %v1699 = vrot.slane %v1680, %v1698
    %v1700 = vadd.f32 %v1527, %v1699
    %v1701 = vadd.f32 %v1530, %v1699
    %v1702 = vadd.f32 %v1533, %v1699
    %v1703 = vadd.f32 %v1536, %v1699
    %v1704 = vadd.f32 %v1539, %v1699
    %v1705 = vadd.f32 %v1542, %v1699
    %v1706 = vadd.f32 %v1545, %v1699
    %v1707 = vadd.f32 %v1548, %v1699
    %v1708 = vadd.f32 %v1551, %v1699
    %v1709 = vadd.f32 %v1554, %v1699
    %v1710 = vadd.f32 %v1557, %v1699
    %v1711 = vadd.f32 %v1560, %v1699
    %v1712 = vadd.f32 %v1563, %v1699
    %v1713 = vadd.f32 %v1566, %v1699
    %v1714 = vadd.f32 %v1569, %v1699
    %v1715 = vadd.f32 %v1572, %v1699
    %vm1716 = vcmp.ge.f32.partialorder %v1700, 0.0
    %vm1717 = vcmp.ge.f32.partialorder %v1701, 0.0
    %vm1718 = vcmp.ge.f32.partialorder %v1702, 0.0
    %vm1719 = vcmp.ge.f32.partialorder %v1703, 0.0
    %vm1720 = vcmp.ge.f32.partialorder %v1704, 0.0
    %vm1721 = vcmp.ge.f32.partialorder %v1705, 0.0
    %vm1722 = vcmp.ge.f32.partialorder %v1706, 0.0
    %vm1723 = vcmp.ge.f32.partialorder %v1707, 0.0
    %vm1724 = vcmp.ge.f32.partialorder %v1708, 0.0
    %vm1725 = vcmp.ge.f32.partialorder %v1709, 0.0
    %vm1726 = vcmp.ge.f32.partialorder %v1710, 0.0
    %vm1727 = vcmp.ge.f32.partialorder %v1711, 0.0
    %vm1728 = vcmp.ge.f32.partialorder %v1712, 0.0
    %vm1729 = vcmp.ge.f32.partialorder %v1713, 0.0
    %vm1730 = vcmp.ge.f32.partialorder %v1714, 0.0
    %vm1731 = vcmp.ge.f32.partialorder %v1715, 0.0
    %v1732 = vmul.f32 %v1700, 0.2
    %v1733 = vmul.f32 %v1701, 0.2
    %v1734 = vmul.f32 %v1702, 0.2
    %v1735 = vmul.f32 %v1703, 0.2
    %v1736 = vmul.f32 %v1704, 0.2
    %v1737 = vmul.f32 %v1705, 0.2
    %v1738 = vmul.f32 %v1706, 0.2
    %v1739 = vmul.f32 %v1707, 0.2
    %v1740 = vmul.f32 %v1708, 0.2
    %v1741 = vmul.f32 %v1709, 0.2
    %v1742 = vmul.f32 %v1710, 0.2
    %v1743 = vmul.f32 %v1711, 0.2
    %v1744 = vmul.f32 %v1712, 0.2
    %v1745 = vmul.f32 %v1713, 0.2
    %v1746 = vmul.f32 %v1714, 0.2
    %v1747 = vmul.f32 %v1715, 0.2
    %v1748 = vsel %vm1716, %v1700, %v1732
    %v1749 = vsel %vm1717, %v1701, %v1733
    %v1750 = vsel %vm1718, %v1702, %v1734
    %v1751 = vsel %vm1719, %v1703, %v1735
    %v1752 = vsel %vm1720, %v1704, %v1736
    %v1753 = vsel %vm1721, %v1705, %v1737
    %v1754 = vsel %vm1722, %v1706, %v1738
    %v1755 = vsel %vm1723, %v1707, %v1739
    %v1756 = vsel %vm1724, %v1708, %v1740
    %v1757 = vsel %vm1725, %v1709, %v1741
    %v1758 = vsel %vm1726, %v1710, %v1742
    %v1759 = vsel %vm1727, %v1711, %v1743
    %v1760 = vsel %vm1728, %v1712, %v1744
    %v1761 = vsel %vm1729, %v1713, %v1745
    %v1762 = vsel %vm1730, %v1714, %v1746
    %v1763 = vsel %vm1731, %v1715, %v1747
    %v1764 = vadd.f32 %v1748, %v738
    %v1765 = vadd.f32 %v1749, %v739
    %v1766 = vadd.f32 %v1750, %v740
    %v1767 = vadd.f32 %v1751, %v741
    %v1768 = vadd.f32 %v1752, %v742
    %v1769 = vadd.f32 %v1753, %v743
    %v1770 = vadd.f32 %v1754, %v744
    %v1771 = vadd.f32 %v1755, %v745
    %v1772 = vadd.f32 %v1756, %v746
    %v1773 = vadd.f32 %v1757, %v747
    %v1774 = vadd.f32 %v1758, %v748
    %v1775 = vadd.f32 %v1759, %v749
    %v1776 = vadd.f32 %v1760, %v750
    %v1777 = vadd.f32 %v1761, %v751
    %v1778 = vadd.f32 %v1762, %v752
    %v1779 = vadd.f32 %v1763, %v753
    %1780 = vmax.xlane.f32.xlu0 %v1764
    %v1781 = vpop.xlane.xlu0 %1780
    %1782 = vmax.xlane.f32.xlu0 %v1765
    %v1783 = vpop.xlane.xlu0 %1782
    %1784 = vmax.xlane.f32.xlu0 %v1766
    %v1785 = vpop.xlane.xlu0 %1784
    %1786 = vmax.xlane.f32.xlu0 %v1767
    %v1787 = vpop.xlane.xlu0 %1786
    %1788 = vmax.xlane.f32.xlu0 %v1768
    %v1789 = vpop.xlane.xlu0 %1788
    %1790 = vmax.xlane.f32.xlu0 %v1769
    %v1791 = vpop.xlane.xlu0 %1790
    %1792 = vmax.xlane.f32.xlu0 %v1770
    %v1793 = vpop.xlane.xlu0 %1792
    %1794 = vmax.xlane.f32.xlu0 %v1771
    %v1795 = vpop.xlane.xlu0 %1794
    %1796 = vmax.xlane.f32.xlu0 %v1772
    %v1797 = vpop.xlane.xlu0 %1796
    %1798 = vmax.xlane.f32.xlu0 %v1773
    %v1799 = vpop.xlane.xlu0 %1798
    %1800 = vmax.xlane.f32.xlu0 %v1774
    %v1801 = vpop.xlane.xlu0 %1800
    %1802 = vmax.xlane.f32.xlu0 %v1775
    %v1803 = vpop.xlane.xlu0 %1802
    %1804 = vmax.xlane.f32.xlu0 %v1776
    %v1805 = vpop.xlane.xlu0 %1804
    %1806 = vmax.xlane.f32.xlu0 %v1777
    %v1807 = vpop.xlane.xlu0 %1806
    %1808 = vmax.xlane.f32.xlu0 %v1778
    %v1809 = vpop.xlane.xlu0 %1808
    %1810 = vmax.xlane.f32.xlu0 %v1779
    %v1811 = vpop.xlane.xlu0 %1810
    %v1812 = vsub.f32 %v1764, %v1781
    %v1813 = vsub.f32 %v1765, %v1783
    %v1814 = vsub.f32 %v1766, %v1785
    %v1815 = vsub.f32 %v1767, %v1787
    %v1816 = vsub.f32 %v1768, %v1789
    %v1817 = vsub.f32 %v1769, %v1791
    %v1818 = vsub.f32 %v1770, %v1793
    %v1819 = vsub.f32 %v1771, %v1795
    %v1820 = vsub.f32 %v1772, %v1797
    %v1821 = vsub.f32 %v1773, %v1799
    %v1822 = vsub.f32 %v1774, %v1801
    %v1823 = vsub.f32 %v1775, %v1803
    %v1824 = vsub.f32 %v1776, %v1805
    %v1825 = vsub.f32 %v1777, %v1807
    %v1826 = vsub.f32 %v1778, %v1809
    %v1827 = vsub.f32 %v1779, %v1811
    %v1828 = vmul.f32 %v1812, 1.442695
    %v1829 = vpow.pop %v1828
    %v1830 = vmul.f32 %v1813, 1.442695
    %v1831 = vpow.pop %v1830
    %v1832 = vmul.f32 %v1814, 1.442695
    %v1833 = vpow.pop %v1832
    %v1834 = vmul.f32 %v1815, 1.442695
    %v1835 = vpow.pop %v1834
    %v1836 = vmul.f32 %v1816, 1.442695
    %v1837 = vpow.pop %v1836
    %v1838 = vmul.f32 %v1817, 1.442695
    %v1839 = vpow.pop %v1838
    %v1840 = vmul.f32 %v1818, 1.442695
    %v1841 = vpow.pop %v1840
    %v1842 = vmul.f32 %v1819, 1.442695
    %v1843 = vpow.pop %v1842
    %v1844 = vmul.f32 %v1820, 1.442695
    %v1845 = vpow.pop %v1844
    %v1846 = vmul.f32 %v1821, 1.442695
    %v1847 = vpow.pop %v1846
    %v1848 = vmul.f32 %v1822, 1.442695
    %v1849 = vpow.pop %v1848
    %v1850 = vmul.f32 %v1823, 1.442695
    %v1851 = vpow.pop %v1850
    %v1852 = vmul.f32 %v1824, 1.442695
    %v1853 = vpow.pop %v1852
    %v1854 = vmul.f32 %v1825, 1.442695
    %v1855 = vpow.pop %v1854
    %v1856 = vmul.f32 %v1826, 1.442695
    %v1857 = vpow.pop %v1856
    %v1858 = vmul.f32 %v1827, 1.442695
    %v1859 = vpow.pop %v1858
    %1860 = vadd.xlane.f32.xlu0 %v1829
    %v1861 = vpop.xlane.xlu0 %1860
    %1862 = vadd.xlane.f32.xlu0 %v1831
    %v1863 = vpop.xlane.xlu0 %1862
    %1864 = vadd.xlane.f32.xlu0 %v1833
    %v1865 = vpop.xlane.xlu0 %1864
    %1866 = vadd.xlane.f32.xlu0 %v1835
    %v1867 = vpop.xlane.xlu0 %1866
    %1868 = vadd.xlane.f32.xlu0 %v1837
    %v1869 = vpop.xlane.xlu0 %1868
    %1870 = vadd.xlane.f32.xlu0 %v1839
    %v1871 = vpop.xlane.xlu0 %1870
    %1872 = vadd.xlane.f32.xlu0 %v1841
    %v1873 = vpop.xlane.xlu0 %1872
    %1874 = vadd.xlane.f32.xlu0 %v1843
    %v1875 = vpop.xlane.xlu0 %1874
    %1876 = vadd.xlane.f32.xlu0 %v1845
    %v1877 = vpop.xlane.xlu0 %1876
    %1878 = vadd.xlane.f32.xlu0 %v1847
    %v1879 = vpop.xlane.xlu0 %1878
    %1880 = vadd.xlane.f32.xlu0 %v1849
    %v1881 = vpop.xlane.xlu0 %1880
    %1882 = vadd.xlane.f32.xlu0 %v1851
    %v1883 = vpop.xlane.xlu0 %1882
    %1884 = vadd.xlane.f32.xlu0 %v1853
    %v1885 = vpop.xlane.xlu0 %1884
    %1886 = vadd.xlane.f32.xlu0 %v1855
    %v1887 = vpop.xlane.xlu0 %1886
    %1888 = vadd.xlane.f32.xlu0 %v1857
    %v1889 = vpop.xlane.xlu0 %1888
    %1890 = vadd.xlane.f32.xlu0 %v1859
    %v1891 = vpop.xlane.xlu0 %1890
    %v1892 = vmax.f32 %v1861, 1e-20
    %v1893 = vmax.f32 %v1863, 1e-20
    %v1894 = vmax.f32 %v1865, 1e-20
    %v1895 = vmax.f32 %v1867, 1e-20
    %v1896 = vmax.f32 %v1869, 1e-20
    %v1897 = vmax.f32 %v1871, 1e-20
    %v1898 = vmax.f32 %v1873, 1e-20
    %v1899 = vmax.f32 %v1875, 1e-20
    %v1900 = vmax.f32 %v1877, 1e-20
    %v1901 = vmax.f32 %v1879, 1e-20
    %v1902 = vmax.f32 %v1881, 1e-20
    %v1903 = vmax.f32 %v1883, 1e-20
    %v1904 = vmax.f32 %v1885, 1e-20
    %v1905 = vmax.f32 %v1887, 1e-20
    %v1906 = vmax.f32 %v1889, 1e-20
    %v1907 = vmax.f32 %v1891, 1e-20
    %v1908 = vpack.c.bf16 %v1831, %v1829
    %v1909 = vpack.c.bf16 %v1835, %v1833
    %v1910 = vpack.c.bf16 %v1839, %v1837
    %v1911 = vpack.c.bf16 %v1843, %v1841
    %v1912 = vpack.c.bf16 %v1847, %v1845
    %v1913 = vpack.c.bf16 %v1851, %v1849
    %v1914 = vpack.c.bf16 %v1855, %v1853
    %v1915 = vpack.c.bf16 %v1859, %v1857
    %v1916 = vpack.c.bf16 %v1408, %v1404
    %v1917 = vpack.c.bf16 %v1410, %v1406
    %v1918 = vpack.c.bf16 %v1418, %v1414
    %v1919 = vpack.c.bf16 %v1420, %v1416
    %v1920 = vpack.c.bf16 %v1428, %v1424
    %v1921 = vpack.c.bf16 %v1430, %v1426
    %v1922 = vpack.c.bf16 %v1438, %v1434
    %v1923 = vpack.c.bf16 %v1440, %v1436
    %v1924 = vpack.c.bf16 %v1448, %v1444
    %v1925 = vpack.c.bf16 %v1450, %v1446
    %v1926 = vpack.c.bf16 %v1458, %v1454
    %v1927 = vpack.c.bf16 %v1460, %v1456
    %v1928 = vpack.c.bf16 %v1468, %v1464
    %v1929 = vpack.c.bf16 %v1470, %v1466
    %v1930 = vpack.c.bf16 %v1478, %v1474
    %v1931 = vpack.c.bf16 %v1480, %v1476
    %1932 = vmatprep.subr.bf16.mxu0 %v1917
    %1933 = vmatpush1.bf16.msra.mxu0 %v1916
    %1934 = vmatprep.subr.bf16.mxu0 %v1919
    %1935 = vmatpush1.bf16.msra.mxu0 %v1918
    %1936 = vmatprep.subr.bf16.mxu0 %v1921
    %1937 = vmatpush1.bf16.msra.mxu0 %v1920
    %1938 = vmatprep.subr.bf16.mxu0 %v1923
    %1939 = vmatpush1.bf16.msra.mxu0 %v1922
    %1940 = vmatprep.subr.bf16.mxu0 %v1925
    %1941 = vmatpush1.bf16.msra.mxu0 %v1924
    %1942 = vmatprep.subr.bf16.mxu0 %v1927
    %1943 = vmatpush1.bf16.msra.mxu0 %v1926
    %1944 = vmatprep.subr.bf16.mxu0 %v1929
    %1945 = vmatpush1.bf16.msra.mxu0 %v1928
    %1946 = vmatprep.subr.bf16.mxu0 %v1931
    %1947 = vmatpush1.bf16.msra.mxu0 %v1930
    %1948 = vmatprep.subr.bf16.mxu0 0
    %1949 = vmatpush1.bf16.msra.mxu0 0
    %1950 = vmatprep.subr.bf16.mxu0 0
    %1951 = vmatpush1.bf16.msra.mxu0 0
    %1952 = vmatprep.subr.bf16.mxu0 0
    %1953 = vmatpush1.bf16.msra.mxu0 0
    %1954 = vmatprep.subr.bf16.mxu0 0
    %1955 = vmatpush1.bf16.msra.mxu0 0
    %1956 = vmatprep.subr.bf16.mxu0 0
    %1957 = vmatpush1.bf16.msra.mxu0 0
    %1958 = vmatprep.subr.bf16.mxu0 0
    %1959 = vmatpush1.bf16.msra.mxu0 0
    %1960 = vmatprep.subr.bf16.mxu0 0
    %1961 = vmatpush1.bf16.msra.mxu0 0
    %1962 = vmatprep.subr.bf16.mxu0 0
    %1963 = vmatpush1.bf16.msra.mxu0 0
    %1964 = vmatprep.mubr.bf16.mxu0 0
    %1965 = vmatmul.mubr.bf16.gmra.mrb[0].mxu0 %v1908
    %v1966 = vpop.f32.mrb[0].mxu0
    %v1967 = vadd.f32 0.0, %v1966
    %v1968 = vpop.f32.mrb[0].mxu0
    %v1969 = vadd.f32 0.0, %v1968
    %v1970 = vpop.f32.mrb[0].mxu0
    %v1971 = vadd.f32 0.0, %v1970
    %v1972 = vpop.f32.mrb[0].mxu0
    %v1973 = vadd.f32 0.0, %v1972
    %1974 = vmatprep.mubr.bf16.mxu0 0
    %1975 = vmatmul.mubr.bf16.gmra.mrb[0].mxu0 %v1909
    %v1976 = vpop.f32.mrb[0].mxu0
    %v1977 = vadd.f32 0.0, %v1976
    %v1978 = vpop.f32.mrb[0].mxu0
    %v1979 = vadd.f32 0.0, %v1978
    %v1980 = vpop.f32.mrb[0].mxu0
    %v1981 = vadd.f32 0.0, %v1980
    %v1982 = vpop.f32.mrb[0].mxu0
    %v1983 = vadd.f32 0.0, %v1982
    %1984 = vmatprep.mubr.bf16.mxu0 0
    %1985 = vmatmul.mubr.bf16.gmra.mrb[0].mxu0 %v1910
    %v1986 = vpop.f32.mrb[0].mxu0
    %v1987 = vadd.f32 0.0, %v1986
    %v1988 = vpop.f32.mrb[0].mxu0
    %v1989 = vadd.f32 0.0, %v1988
    %v1990 = vpop.f32.mrb[0].mxu0
    %v1991 = vadd.f32 0.0, %v1990
    %v1992 = vpop.f32.mrb[0].mxu0
    %v1993 = vadd.f32 0.0, %v1992
    %1994 = vmatprep.mubr.bf16.mxu0 0
    %1995 = vmatmul.mubr.bf16.gmra.mrb[0].mxu0 %v1911
    %v1996 = vpop.f32.mrb[0].mxu0
    %v1997 = vadd.f32 0.0, %v1996
    %v1998 = vpop.f32.mrb[0].mxu0
    %v1999 = vadd.f32 0.0, %v1998
    %v2000 = vpop.f32.mrb[0].mxu0
    %v2001 = vadd.f32 0.0, %v2000
    %v2002 = vpop.f32.mrb[0].mxu0
    %v2003 = vadd.f32 0.0, %v2002
    %2004 = vmatprep.mubr.bf16.mxu0 0
    %2005 = vmatmul.mubr.bf16.gmra.mrb[0].mxu0 %v1912
    %v2006 = vpop.f32.mrb[0].mxu0
    %v2007 = vadd.f32 0.0, %v2006
    %v2008 = vpop.f32.mrb[0].mxu0
    %v2009 = vadd.f32 0.0, %v2008
    %v2010 = vpop.f32.mrb[0].mxu0
    %v2011 = vadd.f32 0.0, %v2010
    %v2012 = vpop.f32.mrb[0].mxu0
    %v2013 = vadd.f32 0.0, %v2012
    %2014 = vmatprep.mubr.bf16.mxu0 0
    %2015 = vmatmul.mubr.bf16.gmra.mrb[0].mxu0 %v1913
    %v2016 = vpop.f32.mrb[0].mxu0
    %v2017 = vadd.f32 0.0, %v2016
    %v2018 = vpop.f32.mrb[0].mxu0
    %v2019 = vadd.f32 0.0, %v2018
    %v2020 = vpop.f32.mrb[0].mxu0
    %v2021 = vadd.f32 0.0, %v2020
    %v2022 = vpop.f32.mrb[0].mxu0
    %v2023 = vadd.f32 0.0, %v2022
    %2024 = vmatprep.mubr.bf16.mxu0 0
    %2025 = vmatmul.mubr.bf16.gmra.mrb[0].mxu0 %v1914
    %v2026 = vpop.f32.mrb[0].mxu0
    %v2027 = vadd.f32 0.0, %v2026
    %v2028 = vpop.f32.mrb[0].mxu0
    %v2029 = vadd.f32 0.0, %v2028
    %v2030 = vpop.f32.mrb[0].mxu0
    %v2031 = vadd.f32 0.0, %v2030
    %v2032 = vpop.f32.mrb[0].mxu0
    %v2033 = vadd.f32 0.0, %v2032
    %2034 = vmatprep.mubr.bf16.mxu0 0
    %2035 = vmatmul.mubr.bf16.gmra.mrb[0].mxu0 %v1915
    %v2036 = vpop.f32.mrb[0].mxu0
    %v2037 = vadd.f32 0.0, %v2036
    %v2038 = vpop.f32.mrb[0].mxu0
    %v2039 = vadd.f32 0.0, %v2038
    %v2040 = vpop.f32.mrb[0].mxu0
    %v2041 = vadd.f32 0.0, %v2040
    %v2042 = vpop.f32.mrb[0].mxu0
    %v2043 = vadd.f32 0.0, %v2042
    %2044 = vdwg.mxu0
    %v2045 = vrcp.pop %v1892
    %v2046 = vrcp.pop %v1893
    %v2047 = vrcp.pop %v1894
    %v2048 = vrcp.pop %v1895
    %v2049 = vrcp.pop %v1896
    %v2050 = vrcp.pop %v1897
    %v2051 = vrcp.pop %v1898
    %v2052 = vrcp.pop %v1899
    %v2053 = vrcp.pop %v1900
    %v2054 = vrcp.pop %v1901
    %v2055 = vrcp.pop %v1902
    %v2056 = vrcp.pop %v1903
    %v2057 = vrcp.pop %v1904
    %v2058 = vrcp.pop %v1905
    %v2059 = vrcp.pop %v1906
    %v2060 = vrcp.pop %v1907
    %v2061 = vmul.f32 %v1967, %v2045
    %v2062 = vmul.f32 %v1969, %v2045
    %v2063 = vmul.f32 %v1971, %v2046
    %v2064 = vmul.f32 %v1973, %v2046
    %v2065 = vmul.f32 %v1977, %v2047
    %v2066 = vmul.f32 %v1979, %v2047
    %v2067 = vmul.f32 %v1981, %v2048
    %v2068 = vmul.f32 %v1983, %v2048
    %v2069 = vmul.f32 %v1987, %v2049
    %v2070 = vmul.f32 %v1989, %v2049
    %v2071 = vmul.f32 %v1991, %v2050
    %v2072 = vmul.f32 %v1993, %v2050
    %v2073 = vmul.f32 %v1997, %v2051
    %v2074 = vmul.f32 %v1999, %v2051
    %v2075 = vmul.f32 %v2001, %v2052
    %v2076 = vmul.f32 %v2003, %v2052
    %v2077 = vmul.f32 %v2007, %v2053
    %v2078 = vmul.f32 %v2009, %v2053
    %v2079 = vmul.f32 %v2011, %v2054
    %v2080 = vmul.f32 %v2013, %v2054
    %v2081 = vmul.f32 %v2017, %v2055
    %v2082 = vmul.f32 %v2019, %v2055
    %v2083 = vmul.f32 %v2021, %v2056
    %v2084 = vmul.f32 %v2023, %v2056
    %v2085 = vmul.f32 %v2027, %v2057
    %v2086 = vmul.f32 %v2029, %v2057
    %v2087 = vmul.f32 %v2031, %v2058
    %v2088 = vmul.f32 %v2033, %v2058
    %v2089 = vmul.f32 %v2037, %v2059
    %v2090 = vmul.f32 %v2039, %v2059
    %v2091 = vmul.f32 %v2041, %v2060
    %v2092 = vmul.f32 %v2043, %v2060
    %v2094 = vlaneseq
    %v2095 = vshrl.u32 %v2094, 7
    %v2096 = vsub.s32 0, %v2095
    %v2097 = vrot.slane %v1192, %v2096
    %v2098 = vlaneseq
    %v2099 = vshrl.u32 %v2098, 7
    %v2100 = vsub.s32 1, %v2099
    %v2101 = vrot.slane %v1192, %v2100
    %v2104 = vadd.f32 %v2061, %v2097
    %v2105 = vadd.f32 %v2062, %v2101
    %v2106 = vadd.f32 %v2063, %v2097
    %v2107 = vadd.f32 %v2064, %v2101
    %v2108 = vadd.f32 %v2065, %v2097
    %v2109 = vadd.f32 %v2066, %v2101
    %v2110 = vadd.f32 %v2067, %v2097
    %v2111 = vadd.f32 %v2068, %v2101
    %v2112 = vadd.f32 %v2069, %v2097
    %v2113 = vadd.f32 %v2070, %v2101
    %v2114 = vadd.f32 %v2071, %v2097
    %v2115 = vadd.f32 %v2072, %v2101
    %v2116 = vadd.f32 %v2073, %v2097
    %v2117 = vadd.f32 %v2074, %v2101
    %v2118 = vadd.f32 %v2075, %v2097
    %v2119 = vadd.f32 %v2076, %v2101
    %v2120 = vadd.f32 %v2077, %v2097
    %v2121 = vadd.f32 %v2078, %v2101
    %v2122 = vadd.f32 %v2079, %v2097
    %v2123 = vadd.f32 %v2080, %v2101
    %v2124 = vadd.f32 %v2081, %v2097
    %v2125 = vadd.f32 %v2082, %v2101
    %v2126 = vadd.f32 %v2083, %v2097
    %v2127 = vadd.f32 %v2084, %v2101
    %v2128 = vadd.f32 %v2085, %v2097
    %v2129 = vadd.f32 %v2086, %v2101
    %v2130 = vadd.f32 %v2087, %v2097
    %v2131 = vadd.f32 %v2088, %v2101
    %v2132 = vadd.f32 %v2089, %v2097
    %v2133 = vadd.f32 %v2090, %v2101
    %v2134 = vadd.f32 %v2091, %v2097
    %v2135 = vadd.f32 %v2092, %v2101
    %v2136 = vmax.f32 %v2104, 0.0
    %v2137 = vmax.f32 %v2105, 0.0
    %v2138 = vmax.f32 %v2106, 0.0
    %v2139 = vmax.f32 %v2107, 0.0
    %v2140 = vmax.f32 %v2108, 0.0
    %v2141 = vmax.f32 %v2109, 0.0
    %v2142 = vmax.f32 %v2110, 0.0
    %v2143 = vmax.f32 %v2111, 0.0
    %v2144 = vmax.f32 %v2112, 0.0
    %v2145 = vmax.f32 %v2113, 0.0
    %v2146 = vmax.f32 %v2114, 0.0
    %v2147 = vmax.f32 %v2115, 0.0
    %v2148 = vmax.f32 %v2116, 0.0
    %v2149 = vmax.f32 %v2117, 0.0
    %v2150 = vmax.f32 %v2118, 0.0
    %v2151 = vmax.f32 %v2119, 0.0
    %v2152 = vmax.f32 %v2120, 0.0
    %v2153 = vmax.f32 %v2121, 0.0
    %v2154 = vmax.f32 %v2122, 0.0
    %v2155 = vmax.f32 %v2123, 0.0
    %v2156 = vmax.f32 %v2124, 0.0
    %v2157 = vmax.f32 %v2125, 0.0
    %v2158 = vmax.f32 %v2126, 0.0
    %v2159 = vmax.f32 %v2127, 0.0
    %v2160 = vmax.f32 %v2128, 0.0
    %v2161 = vmax.f32 %v2129, 0.0
    %v2162 = vmax.f32 %v2130, 0.0
    %v2163 = vmax.f32 %v2131, 0.0
    %v2164 = vmax.f32 %v2132, 0.0
    %v2165 = vmax.f32 %v2133, 0.0
    %v2166 = vmax.f32 %v2134, 0.0
    %v2167 = vmax.f32 %v2135, 0.0
    %v2168 = vld [vmem:[#allocation16] sm:$0xff]
    %v2169 = vld [vmem:[#allocation16 + $0x8] sm:$0xff]
    %v2170 = vld [vmem:[#allocation16 + $0x10] sm:$0xff]
    %v2171 = vld [vmem:[#allocation16 + $0x18] sm:$0xff]
    %v2172 = vld [vmem:[#allocation16 + $0x20] sm:$0xff]
    %v2173 = vld [vmem:[#allocation16 + $0x28] sm:$0xff]
    %v2174 = vld [vmem:[#allocation16 + $0x30] sm:$0xff]
    %v2175 = vld [vmem:[#allocation16 + $0x38] sm:$0xff]
    %v2176 = vld [vmem:[#allocation16 + $0x40] sm:$0xff]
    %v2177 = vld [vmem:[#allocation16 + $0x48] sm:$0xff]
    %v2178 = vld [vmem:[#allocation16 + $0x50] sm:$0xff]
    %v2179 = vld [vmem:[#allocation16 + $0x58] sm:$0xff]
    %v2180 = vld [vmem:[#allocation16 + $0x60] sm:$0xff]
    %v2181 = vld [vmem:[#allocation16 + $0x68] sm:$0xff]
    %v2182 = vld [vmem:[#allocation16 + $0x70] sm:$0xff]
    %v2183 = vld [vmem:[#allocation16 + $0x78] sm:$0xff]
    %v2184 = vld [vmem:[#allocation16 + $0x80] sm:$0xff]
    %v2185 = vld [vmem:[#allocation16 + $0x88] sm:$0xff]
    %v2186 = vld [vmem:[#allocation16 + $0x90] sm:$0xff]
    %v2187 = vld [vmem:[#allocation16 + $0x98] sm:$0xff]
    %v2188 = vld [vmem:[#allocation16 + $0xa0] sm:$0xff]
    %v2189 = vld [vmem:[#allocation16 + $0xa8] sm:$0xff]
    %v2190 = vld [vmem:[#allocation16 + $0xb0] sm:$0xff]
    %v2191 = vld [vmem:[#allocation16 + $0xb8] sm:$0xff]
    %v2192 = vld [vmem:[#allocation16 + $0xc0] sm:$0xff]
    %v2193 = vld [vmem:[#allocation16 + $0xc8] sm:$0xff]
    %v2194 = vld [vmem:[#allocation16 + $0xd0] sm:$0xff]
    %v2195 = vld [vmem:[#allocation16 + $0xd8] sm:$0xff]
    %v2196 = vld [vmem:[#allocation16 + $0xe0] sm:$0xff]
    %v2197 = vld [vmem:[#allocation16 + $0xe8] sm:$0xff]
    %v2198 = vld [vmem:[#allocation16 + $0xf0] sm:$0xff]
    %v2199 = vld [vmem:[#allocation16 + $0xf8] sm:$0xff]
    %v2200 = vld [vmem:[#allocation17] sm:$0x3]
    %v2201 = vld [vmem:[#allocation19] sm:$0x3]
    %v2202 = vld [vmem:[#allocation20] sm:$0x3]
    %v2203 = vpack.c.bf16 %v2138, %v2136
    %v2204 = vpack.c.bf16 %v2139, %v2137
    %v2205 = vpack.c.bf16 %v2142, %v2140
    %v2206 = vpack.c.bf16 %v2143, %v2141
    %v2207 = vpack.c.bf16 %v2146, %v2144
    %v2208 = vpack.c.bf16 %v2147, %v2145
    %v2209 = vpack.c.bf16 %v2150, %v2148
    %v2210 = vpack.c.bf16 %v2151, %v2149
    %v2211 = vpack.c.bf16 %v2154, %v2152
    %v2212 = vpack.c.bf16 %v2155, %v2153
    %v2213 = vpack.c.bf16 %v2158, %v2156
    %v2214 = vpack.c.bf16 %v2159, %v2157
    %v2215 = vpack.c.bf16 %v2162, %v2160
    %v2216 = vpack.c.bf16 %v2163, %v2161
    %v2217 = vpack.c.bf16 %v2166, %v2164
    %v2218 = vpack.c.bf16 %v2167, %v2165
    %v2251 = vunpack.c.l.b16 %v2168
    %v2252 = vunpack.c.h.b16 %v2168
    %v2253 = vunpack.c.l.b16 %v2169
    %v2254 = vunpack.c.h.b16 %v2169
    %v2255 = vunpack.c.l.b16 %v2170
    %v2256 = vunpack.c.h.b16 %v2170
    %v2257 = vunpack.c.l.b16 %v2171
    %v2258 = vunpack.c.h.b16 %v2171
    %v2259 = vunpack.c.l.b16 %v2172
    %v2260 = vunpack.c.h.b16 %v2172
    %v2261 = vunpack.c.l.b16 %v2173
    %v2262 = vunpack.c.h.b16 %v2173
    %v2263 = vunpack.c.l.b16 %v2174
    %v2264 = vunpack.c.h.b16 %v2174
    %v2265 = vunpack.c.l.b16 %v2175
    %v2266 = vunpack.c.h.b16 %v2175
    %v2267 = vunpack.c.l.b16 %v2176
    %v2268 = vunpack.c.h.b16 %v2176
    %v2269 = vunpack.c.l.b16 %v2177
    %v2270 = vunpack.c.h.b16 %v2177
    %v2271 = vunpack.c.l.b16 %v2178
    %v2272 = vunpack.c.h.b16 %v2178
    %v2273 = vunpack.c.l.b16 %v2179
    %v2274 = vunpack.c.h.b16 %v2179
    %v2275 = vunpack.c.l.b16 %v2180
    %v2276 = vunpack.c.h.b16 %v2180
    %v2277 = vunpack.c.l.b16 %v2181
    %v2278 = vunpack.c.h.b16 %v2181
    %v2279 = vunpack.c.l.b16 %v2182
    %v2280 = vunpack.c.h.b16 %v2182
    %v2281 = vunpack.c.l.b16 %v2183
    %v2282 = vunpack.c.h.b16 %v2183
    %v2283 = vunpack.c.l.b16 %v2184
    %v2284 = vunpack.c.h.b16 %v2184
    %v2285 = vunpack.c.l.b16 %v2185
    %v2286 = vunpack.c.h.b16 %v2185
    %v2287 = vunpack.c.l.b16 %v2186
    %v2288 = vunpack.c.h.b16 %v2186
    %v2289 = vunpack.c.l.b16 %v2187
    %v2290 = vunpack.c.h.b16 %v2187
    %v2291 = vunpack.c.l.b16 %v2188
    %v2292 = vunpack.c.h.b16 %v2188
    %v2293 = vunpack.c.l.b16 %v2189
    %v2294 = vunpack.c.h.b16 %v2189
    %v2295 = vunpack.c.l.b16 %v2190
    %v2296 = vunpack.c.h.b16 %v2190
    %v2297 = vunpack.c.l.b16 %v2191
    %v2298 = vunpack.c.h.b16 %v2191
    %v2299 = vunpack.c.l.b16 %v2192
    %v2300 = vunpack.c.h.b16 %v2192
    %v2301 = vunpack.c.l.b16 %v2193
    %v2302 = vunpack.c.h.b16 %v2193
    %v2303 = vunpack.c.l.b16 %v2194
    %v2304 = vunpack.c.h.b16 %v2194
    %v2305 = vunpack.c.l.b16 %v2195
    %v2306 = vunpack.c.h.b16 %v2195
    %v2307 = vunpack.c.l.b16 %v2196
    %v2308 = vunpack.c.h.b16 %v2196
    %v2309 = vunpack.c.l.b16 %v2197
    %v2310 = vunpack.c.h.b16 %v2197
    %v2311 = vunpack.c.l.b16 %v2198
    %v2312 = vunpack.c.h.b16 %v2198
    %v2313 = vunpack.c.l.b16 %v2199
    %v2314 = vunpack.c.h.b16 %v2199
    %v2315 = vpack.c.b16 %v2253, %v2251
    %v2316 = vpack.c.b16 %v2254, %v2252
    %v2317 = vpack.c.b16 %v2257, %v2255
    %v2318 = vpack.c.b16 %v2258, %v2256
    %v2319 = vpack.c.b16 %v2261, %v2259
    %v2320 = vpack.c.b16 %v2262, %v2260
    %v2321 = vpack.c.b16 %v2265, %v2263
    %v2322 = vpack.c.b16 %v2266, %v2264
    %v2323 = vpack.c.b16 %v2269, %v2267
    %v2324 = vpack.c.b16 %v2270, %v2268
    %v2325 = vpack.c.b16 %v2273, %v2271
    %v2326 = vpack.c.b16 %v2274, %v2272
    %v2327 = vpack.c.b16 %v2277, %v2275
    %v2328 = vpack.c.b16 %v2278, %v2276
    %v2329 = vpack.c.b16 %v2281, %v2279
    %v2330 = vpack.c.b16 %v2282, %v2280
    %v2331 = vpack.c.b16 %v2285, %v2283
    %v2332 = vpack.c.b16 %v2286, %v2284
    %v2333 = vpack.c.b16 %v2289, %v2287
    %v2334 = vpack.c.b16 %v2290, %v2288
    %v2335 = vpack.c.b16 %v2293, %v2291
    %v2336 = vpack.c.b16 %v2294, %v2292
    %v2337 = vpack.c.b16 %v2297, %v2295
    %v2338 = vpack.c.b16 %v2298, %v2296
    %v2339 = vpack.c.b16 %v2301, %v2299
    %v2340 = vpack.c.b16 %v2302, %v2300
    %v2341 = vpack.c.b16 %v2305, %v2303
    %v2342 = vpack.c.b16 %v2306, %v2304
    %v2343 = vpack.c.b16 %v2309, %v2307
    %v2344 = vpack.c.b16 %v2310, %v2308
    %v2345 = vpack.c.b16 %v2313, %v2311
    %v2346 = vpack.c.b16 %v2314, %v2312
    %2379 = vmatprep.subr.bf16.mxu0 %v2316
    %2380 = vmatpush1.bf16.msra.mxu0 %v2315
    %2381 = vmatprep.subr.bf16.mxu0 %v2318
    %2382 = vmatpush1.bf16.msra.mxu0 %v2317
    %2383 = vmatprep.subr.bf16.mxu0 %v2320
    %2384 = vmatpush1.bf16.msra.mxu0 %v2319
    %2385 = vmatprep.subr.bf16.mxu0 %v2322
    %2386 = vmatpush1.bf16.msra.mxu0 %v2321
    %2387 = vmatprep.subr.bf16.mxu0 %v2324
    %2388 = vmatpush1.bf16.msra.mxu0 %v2323
    %2389 = vmatprep.subr.bf16.mxu0 %v2326
    %2390 = vmatpush1.bf16.msra.mxu0 %v2325
    %2391 = vmatprep.subr.bf16.mxu0 %v2328
    %2392 = vmatpush1.bf16.msra.mxu0 %v2327
    %2393 = vmatprep.subr.bf16.mxu0 %v2330
    %2394 = vmatpush1.bf16.msra.mxu0 %v2329
    %2395 = vmatprep.subr.bf16.mxu0 %v2332
    %2396 = vmatpush1.bf16.msra.mxu0 %v2331
    %2397 = vmatprep.subr.bf16.mxu0 %v2334
    %2398 = vmatpush1.bf16.msra.mxu0 %v2333
    %2399 = vmatprep.subr.bf16.mxu0 %v2336
    %2400 = vmatpush1.bf16.msra.mxu0 %v2335
    %2401 = vmatprep.subr.bf16.mxu0 %v2338
    %2402 = vmatpush1.bf16.msra.mxu0 %v2337
    %2403 = vmatprep.subr.bf16.mxu0 %v2340
    %2404 = vmatpush1.bf16.msra.mxu0 %v2339
    %2405 = vmatprep.subr.bf16.mxu0 %v2342
    %2406 = vmatpush1.bf16.msra.mxu0 %v2341
    %2407 = vmatprep.subr.bf16.mxu0 %v2344
    %2408 = vmatpush1.bf16.msra.mxu0 %v2343
    %2409 = vmatprep.subr.bf16.mxu0 %v2346
    %2410 = vmatpush1.bf16.msra.mxu0 %v2345
    %2411 = vmatprep.mubr.bf16.mxu0 %v2204
    %2412 = vmatmul.mubr.bf16.gmra.mrb[0].mxu0 %v2203
    %v2413 = vpop.f32.mrb[0].mxu0
    %v2414 = vadd.f32 0.0, %v2413
    %v2415 = vpop.f32.mrb[0].mxu0
    %v2416 = vadd.f32 0.0, %v2415
    %v2417 = vpop.f32.mrb[0].mxu0
    %v2418 = vadd.f32 0.0, %v2417
    %v2419 = vpop.f32.mrb[0].mxu0
    %v2420 = vadd.f32 0.0, %v2419
    %2421 = vmatprep.mubr.bf16.mxu0 %v2206
    %2422 = vmatmul.mubr.bf16.gmra.mrb[0].mxu0 %v2205
    %v2423 = vpop.f32.mrb[0].mxu0
    %v2424 = vadd.f32 0.0, %v2423
    %v2425 = vpop.f32.mrb[0].mxu0
    %v2426 = vadd.f32 0.0, %v2425
    %v2427 = vpop.f32.mrb[0].mxu0
    %v2428 = vadd.f32 0.0, %v2427
    %v2429 = vpop.f32.mrb[0].mxu0
    %v2430 = vadd.f32 0.0, %v2429
    %2431 = vmatprep.mubr.bf16.mxu0 %v2208
    %2432 = vmatmul.mubr.bf16.gmra.mrb[0].mxu0 %v2207
    %v2433 = vpop.f32.mrb[0].mxu0
    %v2434 = vadd.f32 0.0, %v2433
    %v2435 = vpop.f32.mrb[0].mxu0
    %v2436 = vadd.f32 0.0, %v2435
    %v2437 = vpop.f32.mrb[0].mxu0
    %v2438 = vadd.f32 0.0, %v2437
    %v2439 = vpop.f32.mrb[0].mxu0
    %v2440 = vadd.f32 0.0, %v2439
    %2441 = vmatprep.mubr.bf16.mxu0 %v2210
    %2442 = vmatmul.mubr.bf16.gmra.mrb[0].mxu0 %v2209
    %v2443 = vpop.f32.mrb[0].mxu0
    %v2444 = vadd.f32 0.0, %v2443
    %v2445 = vpop.f32.mrb[0].mxu0
    %v2446 = vadd.f32 0.0, %v2445
    %v2447 = vpop.f32.mrb[0].mxu0
    %v2448 = vadd.f32 0.0, %v2447
    %v2449 = vpop.f32.mrb[0].mxu0
    %v2450 = vadd.f32 0.0, %v2449
    %2451 = vmatprep.mubr.bf16.mxu0 %v2212
    %2452 = vmatmul.mubr.bf16.gmra.mrb[0].mxu0 %v2211
    %v2453 = vpop.f32.mrb[0].mxu0
    %v2454 = vadd.f32 0.0, %v2453
    %v2455 = vpop.f32.mrb[0].mxu0
    %v2456 = vadd.f32 0.0, %v2455
    %v2457 = vpop.f32.mrb[0].mxu0
    %v2458 = vadd.f32 0.0, %v2457
    %v2459 = vpop.f32.mrb[0].mxu0
    %v2460 = vadd.f32 0.0, %v2459
    %2461 = vmatprep.mubr.bf16.mxu0 %v2214
    %2462 = vmatmul.mubr.bf16.gmra.mrb[0].mxu0 %v2213
    %v2463 = vpop.f32.mrb[0].mxu0
    %v2464 = vadd.f32 0.0, %v2463
    %v2465 = vpop.f32.mrb[0].mxu0
    %v2466 = vadd.f32 0.0, %v2465
    %v2467 = vpop.f32.mrb[0].mxu0
    %v2468 = vadd.f32 0.0, %v2467
    %v2469 = vpop.f32.mrb[0].mxu0
    %v2470 = vadd.f32 0.0, %v2469
    %2471 = vmatprep.mubr.bf16.mxu0 %v2216
    %2472 = vmatmul.mubr.bf16.gmra.mrb[0].mxu0 %v2215
    %v2473 = vpop.f32.mrb[0].mxu0
    %v2474 = vadd.f32 0.0, %v2473
    %v2475 = vpop.f32.mrb[0].mxu0
    %v2476 = vadd.f32 0.0, %v2475
    %v2477 = vpop.f32.mrb[0].mxu0
    %v2478 = vadd.f32 0.0, %v2477
    %v2479 = vpop.f32.mrb[0].mxu0
    %v2480 = vadd.f32 0.0, %v2479
    %2481 = vmatprep.mubr.bf16.mxu0 %v2218
    %2482 = vmatmul.mubr.bf16.gmra.mrb[0].mxu0 %v2217
    %v2483 = vpop.f32.mrb[0].mxu0
    %v2484 = vadd.f32 0.0, %v2483
    %v2485 = vpop.f32.mrb[0].mxu0
    %v2486 = vadd.f32 0.0, %v2485
    %v2487 = vpop.f32.mrb[0].mxu0
    %v2488 = vadd.f32 0.0, %v2487
    %v2489 = vpop.f32.mrb[0].mxu0
    %v2490 = vadd.f32 0.0, %v2489
    %2491 = vdwg.mxu0
    %v2493 = vlaneseq
    %v2494 = vshrl.u32 %v2493, 7
    %v2495 = vsub.s32 0, %v2494
    %v2496 = vrot.slane %v2201, %v2495
    %v2497 = vlaneseq
    %v2498 = vshrl.u32 %v2497, 7
    %v2499 = vsub.s32 1, %v2498
    %v2500 = vrot.slane %v2201, %v2499
    %v2503 = vmul.f32 %v2414, %v2496
    %v2504 = vmul.f32 %v2416, %v2500
    %v2505 = vmul.f32 %v2418, %v2496
    %v2506 = vmul.f32 %v2420, %v2500
    %v2507 = vmul.f32 %v2424, %v2496
    %v2508 = vmul.f32 %v2426, %v2500
    %v2509 = vmul.f32 %v2428, %v2496
    %v2510 = vmul.f32 %v2430, %v2500
    %v2511 = vmul.f32 %v2434, %v2496
    %v2512 = vmul.f32 %v2436, %v2500
    %v2513 = vmul.f32 %v2438, %v2496
    %v2514 = vmul.f32 %v2440, %v2500
    %v2515 = vmul.f32 %v2444, %v2496
    %v2516 = vmul.f32 %v2446, %v2500
    %v2517 = vmul.f32 %v2448, %v2496
    %v2518 = vmul.f32 %v2450, %v2500
    %v2519 = vmul.f32 %v2454, %v2496
    %v2520 = vmul.f32 %v2456, %v2500
    %v2521 = vmul.f32 %v2458, %v2496
    %v2522 = vmul.f32 %v2460, %v2500
    %v2523 = vmul.f32 %v2464, %v2496
    %v2524 = vmul.f32 %v2466, %v2500
    %v2525 = vmul.f32 %v2468, %v2496
    %v2526 = vmul.f32 %v2470, %v2500
    %v2527 = vmul.f32 %v2474, %v2496
    %v2528 = vmul.f32 %v2476, %v2500
    %v2529 = vmul.f32 %v2478, %v2496
    %v2530 = vmul.f32 %v2480, %v2500
    %v2531 = vmul.f32 %v2484, %v2496
    %v2532 = vmul.f32 %v2486, %v2500
    %v2533 = vmul.f32 %v2488, %v2496
    %v2534 = vmul.f32 %v2490, %v2500
    %v2535 = vadd.f32 %v2503, %v2504
    %2536 = vadd.xlane.f32.xlu0 %v2535
    %v2537 = vpop.xlane.xlu0 %2536
    %v2538 = vadd.f32 %v2505, %v2506
    %2539 = vadd.xlane.f32.xlu0 %v2538
    %v2540 = vpop.xlane.xlu0 %2539
    %v2541 = vadd.f32 %v2507, %v2508
    %2542 = vadd.xlane.f32.xlu0 %v2541
    %v2543 = vpop.xlane.xlu0 %2542
    %v2544 = vadd.f32 %v2509, %v2510
    %2545 = vadd.xlane.f32.xlu0 %v2544
    %v2546 = vpop.xlane.xlu0 %2545
    %v2547 = vadd.f32 %v2511, %v2512
    %2548 = vadd.xlane.f32.xlu0 %v2547
    %v2549 = vpop.xlane.xlu0 %2548
    %v2550 = vadd.f32 %v2513, %v2514
    %2551 = vadd.xlane.f32.xlu0 %v2550
    %v2552 = vpop.xlane.xlu0 %2551
    %v2553 = vadd.f32 %v2515, %v2516
    %2554 = vadd.xlane.f32.xlu0 %v2553
    %v2555 = vpop.xlane.xlu0 %2554
    %v2556 = vadd.f32 %v2517, %v2518
    %2557 = vadd.xlane.f32.xlu0 %v2556
    %v2558 = vpop.xlane.xlu0 %2557
    %v2559 = vadd.f32 %v2519, %v2520
    %2560 = vadd.xlane.f32.xlu0 %v2559
    %v2561 = vpop.xlane.xlu0 %2560
    %v2562 = vadd.f32 %v2521, %v2522
    %2563 = vadd.xlane.f32.xlu0 %v2562
    %v2564 = vpop.xlane.xlu0 %2563
    %v2565 = vadd.f32 %v2523, %v2524
    %2566 = vadd.xlane.f32.xlu0 %v2565
    %v2567 = vpop.xlane.xlu0 %2566
    %v2568 = vadd.f32 %v2525, %v2526
    %2569 = vadd.xlane.f32.xlu0 %v2568
    %v2570 = vpop.xlane.xlu0 %2569
    %v2571 = vadd.f32 %v2527, %v2528
    %2572 = vadd.xlane.f32.xlu0 %v2571
    %v2573 = vpop.xlane.xlu0 %2572
    %v2574 = vadd.f32 %v2529, %v2530
    %2575 = vadd.xlane.f32.xlu0 %v2574
    %v2576 = vpop.xlane.xlu0 %2575
    %v2577 = vadd.f32 %v2531, %v2532
    %2578 = vadd.xlane.f32.xlu0 %v2577
    %v2579 = vpop.xlane.xlu0 %2578
    %v2580 = vadd.f32 %v2533, %v2534
    %2581 = vadd.xlane.f32.xlu0 %v2580
    %v2582 = vpop.xlane.xlu0 %2581
    %v2584 = vlaneseq
    %v2585 = vshrl.u32 %v2584, 7
    %v2586 = vsub.s32 0, %v2585
    %v2587 = vrot.slane %v2200, %v2586
    %v2588 = vlaneseq
    %v2589 = vshrl.u32 %v2588, 7
    %v2590 = vsub.s32 1, %v2589
    %v2591 = vrot.slane %v2200, %v2590
    %v2594 = vmul.f32 %v2414, %v2587
    %v2595 = vmul.f32 %v2416, %v2591
    %v2596 = vmul.f32 %v2418, %v2587
    %v2597 = vmul.f32 %v2420, %v2591
    %v2598 = vmul.f32 %v2424, %v2587
    %v2599 = vmul.f32 %v2426, %v2591
    %v2600 = vmul.f32 %v2428, %v2587
    %v2601 = vmul.f32 %v2430, %v2591
    %v2602 = vmul.f32 %v2434, %v2587
    %v2603 = vmul.f32 %v2436, %v2591
    %v2604 = vmul.f32 %v2438, %v2587
    %v2605 = vmul.f32 %v2440, %v2591
    %v2606 = vmul.f32 %v2444, %v2587
    %v2607 = vmul.f32 %v2446, %v2591
    %v2608 = vmul.f32 %v2448, %v2587
    %v2609 = vmul.f32 %v2450, %v2591
    %v2610 = vmul.f32 %v2454, %v2587
    %v2611 = vmul.f32 %v2456, %v2591
    %v2612 = vmul.f32 %v2458, %v2587
    %v2613 = vmul.f32 %v2460, %v2591
    %v2614 = vmul.f32 %v2464, %v2587
    %v2615 = vmul.f32 %v2466, %v2591
    %v2616 = vmul.f32 %v2468, %v2587
    %v2617 = vmul.f32 %v2470, %v2591
    %v2618 = vmul.f32 %v2474, %v2587
    %v2619 = vmul.f32 %v2476, %v2591
    %v2620 = vmul.f32 %v2478, %v2587
    %v2621 = vmul.f32 %v2480, %v2591
    %v2622 = vmul.f32 %v2484, %v2587
    %v2623 = vmul.f32 %v2486, %v2591
    %v2624 = vmul.f32 %v2488, %v2587
    %v2625 = vmul.f32 %v2490, %v2591
    %v2626 = vadd.f32 %v2594, %v2595
    %2627 = vadd.xlane.f32.xlu0 %v2626
    %v2628 = vpop.xlane.xlu0 %2627
    %v2629 = vadd.f32 %v2596, %v2597
    %2630 = vadd.xlane.f32.xlu0 %v2629
    %v2631 = vpop.xlane.xlu0 %2630
    %v2632 = vadd.f32 %v2598, %v2599
    %2633 = vadd.xlane.f32.xlu0 %v2632
    %v2634 = vpop.xlane.xlu0 %2633
    %v2635 = vadd.f32 %v2600, %v2601
    %2636 = vadd.xlane.f32.xlu0 %v2635
    %v2637 = vpop.xlane.xlu0 %2636
    %v2638 = vadd.f32 %v2602, %v2603
    %2639 = vadd.xlane.f32.xlu0 %v2638
    %v2640 = vpop.xlane.xlu0 %2639
    %v2641 = vadd.f32 %v2604, %v2605
    %2642 = vadd.xlane.f32.xlu0 %v2641
    %v2643 = vpop.xlane.xlu0 %2642
    %v2644 = vadd.f32 %v2606, %v2607
    %2645 = vadd.xlane.f32.xlu0 %v2644
    %v2646 = vpop.xlane.xlu0 %2645
    %v2647 = vadd.f32 %v2608, %v2609
    %2648 = vadd.xlane.f32.xlu0 %v2647
    %v2649 = vpop.xlane.xlu0 %2648
    %v2650 = vadd.f32 %v2610, %v2611
    %2651 = vadd.xlane.f32.xlu0 %v2650
    %v2652 = vpop.xlane.xlu0 %2651
    %v2653 = vadd.f32 %v2612, %v2613
    %2654 = vadd.xlane.f32.xlu0 %v2653
    %v2655 = vpop.xlane.xlu0 %2654
    %v2656 = vadd.f32 %v2614, %v2615
    %2657 = vadd.xlane.f32.xlu0 %v2656
    %v2658 = vpop.xlane.xlu0 %2657
    %v2659 = vadd.f32 %v2616, %v2617
    %2660 = vadd.xlane.f32.xlu0 %v2659
    %v2661 = vpop.xlane.xlu0 %2660
    %v2662 = vadd.f32 %v2618, %v2619
    %2663 = vadd.xlane.f32.xlu0 %v2662
    %v2664 = vpop.xlane.xlu0 %2663
    %v2665 = vadd.f32 %v2620, %v2621
    %2666 = vadd.xlane.f32.xlu0 %v2665
    %v2667 = vpop.xlane.xlu0 %2666
    %v2668 = vadd.f32 %v2622, %v2623
    %2669 = vadd.xlane.f32.xlu0 %v2668
    %v2670 = vpop.xlane.xlu0 %2669
    %v2671 = vadd.f32 %v2624, %v2625
    %2672 = vadd.xlane.f32.xlu0 %v2671
    %v2673 = vpop.xlane.xlu0 %2672
    %2674 = vxpose.xlu0.b32.start [1/16] %v2628, 128
    %2675 = vxpose.xlu0.b32.cont [2/16] %v2631, 128
    %2676 = vxpose.xlu0.b32.cont [3/16] %v2634, 128
    %2677 = vxpose.xlu0.b32.cont [4/16] %v2637, 128
    %2678 = vxpose.xlu0.b32.cont [5/16] %v2640, 128
    %2679 = vxpose.xlu0.b32.cont [6/16] %v2643, 128
    %2680 = vxpose.xlu0.b32.cont [7/16] %v2646, 128
    %2681 = vxpose.xlu0.b32.cont [8/16] %v2649, 128
    %2682 = vxpose.xlu0.b32.cont [9/16] %v2652, 128
    %2683 = vxpose.xlu0.b32.cont [10/16] %v2655, 128
    %2684 = vxpose.xlu0.b32.cont [11/16] %v2658, 128
    %2685 = vxpose.xlu0.b32.cont [12/16] %v2661, 128
    %2686 = vxpose.xlu0.b32.cont [13/16] %v2664, 128
    %2687 = vxpose.xlu0.b32.cont [14/16] %v2667, 128
    %2688 = vxpose.xlu0.b32.cont [15/16] %v2670, 128
    %2689 = vxpose.xlu0.b32.end [16/16] %v2673, 128
    %v2690 = vpop.trf.xlu0
    %v2691 = vpop.trf.xlu0
    %v2692 = vpop.trf.xlu0
    %v2693 = vpop.trf.xlu0
    %v2694 = vpop.trf.xlu0
    %v2695 = vpop.trf.xlu0
    %v2696 = vpop.trf.xlu0
    %v2697 = vpop.trf.xlu0
    %v2698 = vpop.trf.xlu0
    %v2699 = vpop.trf.xlu0
    %v2700 = vpop.trf.xlu0
    %v2701 = vpop.trf.xlu0
    %v2702 = vpop.trf.xlu0
    %v2703 = vpop.trf.xlu0
    %v2704 = vpop.trf.xlu0
    %v2705 = vpop.trf.xlu0
    %v2706 = vlaneseq
    %v2707 = vshrl.u32 %v2706, 7
    %v2708 = vsub.s32 0, %v2707
    %v2709 = vrot.slane %v2690, %v2708
    %v2710 = vadd.f32 %v2537, %v2709
    %v2711 = vadd.f32 %v2540, %v2709
    %v2712 = vadd.f32 %v2543, %v2709
    %v2713 = vadd.f32 %v2546, %v2709
    %v2714 = vadd.f32 %v2549, %v2709
    %v2715 = vadd.f32 %v2552, %v2709
    %v2716 = vadd.f32 %v2555, %v2709
    %v2717 = vadd.f32 %v2558, %v2709
    %v2718 = vadd.f32 %v2561, %v2709
    %v2719 = vadd.f32 %v2564, %v2709
    %v2720 = vadd.f32 %v2567, %v2709
    %v2721 = vadd.f32 %v2570, %v2709
    %v2722 = vadd.f32 %v2573, %v2709
    %v2723 = vadd.f32 %v2576, %v2709
    %v2724 = vadd.f32 %v2579, %v2709
    %v2725 = vadd.f32 %v2582, %v2709
    %vm2726 = vcmp.ge.f32.partialorder %v2710, 0.0
    %vm2727 = vcmp.ge.f32.partialorder %v2711, 0.0
    %vm2728 = vcmp.ge.f32.partialorder %v2712, 0.0
    %vm2729 = vcmp.ge.f32.partialorder %v2713, 0.0
    %vm2730 = vcmp.ge.f32.partialorder %v2714, 0.0
    %vm2731 = vcmp.ge.f32.partialorder %v2715, 0.0
    %vm2732 = vcmp.ge.f32.partialorder %v2716, 0.0
    %vm2733 = vcmp.ge.f32.partialorder %v2717, 0.0
    %vm2734 = vcmp.ge.f32.partialorder %v2718, 0.0
    %vm2735 = vcmp.ge.f32.partialorder %v2719, 0.0
    %vm2736 = vcmp.ge.f32.partialorder %v2720, 0.0
    %vm2737 = vcmp.ge.f32.partialorder %v2721, 0.0
    %vm2738 = vcmp.ge.f32.partialorder %v2722, 0.0
    %vm2739 = vcmp.ge.f32.partialorder %v2723, 0.0
    %vm2740 = vcmp.ge.f32.partialorder %v2724, 0.0
    %vm2741 = vcmp.ge.f32.partialorder %v2725, 0.0
    %v2742 = vmul.f32 %v2710, 0.2
    %v2743 = vmul.f32 %v2711, 0.2
    %v2744 = vmul.f32 %v2712, 0.2
    %v2745 = vmul.f32 %v2713, 0.2
    %v2746 = vmul.f32 %v2714, 0.2
    %v2747 = vmul.f32 %v2715, 0.2
    %v2748 = vmul.f32 %v2716, 0.2
    %v2749 = vmul.f32 %v2717, 0.2
    %v2750 = vmul.f32 %v2718, 0.2
    %v2751 = vmul.f32 %v2719, 0.2
    %v2752 = vmul.f32 %v2720, 0.2
    %v2753 = vmul.f32 %v2721, 0.2
    %v2754 = vmul.f32 %v2722, 0.2
    %v2755 = vmul.f32 %v2723, 0.2
    %v2756 = vmul.f32 %v2724, 0.2
    %v2757 = vmul.f32 %v2725, 0.2
    %v2758 = vsel %vm2726, %v2710, %v2742
    %v2759 = vsel %vm2727, %v2711, %v2743
    %v2760 = vsel %vm2728, %v2712, %v2744
    %v2761 = vsel %vm2729, %v2713, %v2745
    %v2762 = vsel %vm2730, %v2714, %v2746
    %v2763 = vsel %vm2731, %v2715, %v2747
    %v2764 = vsel %vm2732, %v2716, %v2748
    %v2765 = vsel %vm2733, %v2717, %v2749
    %v2766 = vsel %vm2734, %v2718, %v2750
    %v2767 = vsel %vm2735, %v2719, %v2751
    %v2768 = vsel %vm2736, %v2720, %v2752
    %v2769 = vsel %vm2737, %v2721, %v2753
    %v2770 = vsel %vm2738, %v2722, %v2754
    %v2771 = vsel %vm2739, %v2723, %v2755
    %v2772 = vsel %vm2740, %v2724, %v2756
    %v2773 = vsel %vm2741, %v2725, %v2757
    %v2774 = vadd.f32 %v2758, %v738
    %v2775 = vadd.f32 %v2759, %v739
    %v2776 = vadd.f32 %v2760, %v740
    %v2777 = vadd.f32 %v2761, %v741
    %v2778 = vadd.f32 %v2762, %v742
    %v2779 = vadd.f32 %v2763, %v743
    %v2780 = vadd.f32 %v2764, %v744
    %v2781 = vadd.f32 %v2765, %v745
    %v2782 = vadd.f32 %v2766, %v746
    %v2783 = vadd.f32 %v2767, %v747
    %v2784 = vadd.f32 %v2768, %v748
    %v2785 = vadd.f32 %v2769, %v749
    %v2786 = vadd.f32 %v2770, %v750
    %v2787 = vadd.f32 %v2771, %v751
    %v2788 = vadd.f32 %v2772, %v752
    %v2789 = vadd.f32 %v2773, %v753
    %2790 = vmax.xlane.f32.xlu0 %v2774
    %v2791 = vpop.xlane.xlu0 %2790
    %2792 = vmax.xlane.f32.xlu0 %v2775
    %v2793 = vpop.xlane.xlu0 %2792
    %2794 = vmax.xlane.f32.xlu0 %v2776
    %v2795 = vpop.xlane.xlu0 %2794
    %2796 = vmax.xlane.f32.xlu0 %v2777
    %v2797 = vpop.xlane.xlu0 %2796
    %2798 = vmax.xlane.f32.xlu0 %v2778
    %v2799 = vpop.xlane.xlu0 %2798
    %2800 = vmax.xlane.f32.xlu0 %v2779
    %v2801 = vpop.xlane.xlu0 %2800
    %2802 = vmax.xlane.f32.xlu0 %v2780
    %v2803 = vpop.xlane.xlu0 %2802
    %2804 = vmax.xlane.f32.xlu0 %v2781
    %v2805 = vpop.xlane.xlu0 %2804
    %2806 = vmax.xlane.f32.xlu0 %v2782
    %v2807 = vpop.xlane.xlu0 %2806
    %2808 = vmax.xlane.f32.xlu0 %v2783
    %v2809 = vpop.xlane.xlu0 %2808
    %2810 = vmax.xlane.f32.xlu0 %v2784
    %v2811 = vpop.xlane.xlu0 %2810
    %2812 = vmax.xlane.f32.xlu0 %v2785
    %v2813 = vpop.xlane.xlu0 %2812
    %2814 = vmax.xlane.f32.xlu0 %v2786
    %v2815 = vpop.xlane.xlu0 %2814
    %2816 = vmax.xlane.f32.xlu0 %v2787
    %v2817 = vpop.xlane.xlu0 %2816
    %2818 = vmax.xlane.f32.xlu0 %v2788
    %v2819 = vpop.xlane.xlu0 %2818
    %2820 = vmax.xlane.f32.xlu0 %v2789
    %v2821 = vpop.xlane.xlu0 %2820
    %v2822 = vsub.f32 %v2774, %v2791
    %v2823 = vsub.f32 %v2775, %v2793
    %v2824 = vsub.f32 %v2776, %v2795
    %v2825 = vsub.f32 %v2777, %v2797
    %v2826 = vsub.f32 %v2778, %v2799
    %v2827 = vsub.f32 %v2779, %v2801
    %v2828 = vsub.f32 %v2780, %v2803
    %v2829 = vsub.f32 %v2781, %v2805
    %v2830 = vsub.f32 %v2782, %v2807
    %v2831 = vsub.f32 %v2783, %v2809
    %v2832 = vsub.f32 %v2784, %v2811
    %v2833 = vsub.f32 %v2785, %v2813
    %v2834 = vsub.f32 %v2786, %v2815
    %v2835 = vsub.f32 %v2787, %v2817
    %v2836 = vsub.f32 %v2788, %v2819
    %v2837 = vsub.f32 %v2789, %v2821
    %v2838 = vmul.f32 %v2822, 1.442695
    %v2839 = vpow.pop %v2838
    %v2840 = vmul.f32 %v2823, 1.442695
    %v2841 = vpow.pop %v2840
    %v2842 = vmul.f32 %v2824, 1.442695
    %v2843 = vpow.pop %v2842
    %v2844 = vmul.f32 %v2825, 1.442695
    %v2845 = vpow.pop %v2844
    %v2846 = vmul.f32 %v2826, 1.442695
    %v2847 = vpow.pop %v2846
    %v2848 = vmul.f32 %v2827, 1.442695
    %v2849 = vpow.pop %v2848
    %v2850 = vmul.f32 %v2828, 1.442695
    %v2851 = vpow.pop %v2850
    %v2852 = vmul.f32 %v2829, 1.442695
    %v2853 = vpow.pop %v2852
    %v2854 = vmul.f32 %v2830, 1.442695
    %v2855 = vpow.pop %v2854
    %v2856 = vmul.f32 %v2831, 1.442695
    %v2857 = vpow.pop %v2856
    %v2858 = vmul.f32 %v2832, 1.442695
    %v2859 = vpow.pop %v2858
    %v2860 = vmul.f32 %v2833, 1.442695
    %v2861 = vpow.pop %v2860
    %v2862 = vmul.f32 %v2834, 1.442695
    %v2863 = vpow.pop %v2862
    %v2864 = vmul.f32 %v2835, 1.442695
    %v2865 = vpow.pop %v2864
    %v2866 = vmul.f32 %v2836, 1.442695
    %v2867 = vpow.pop %v2866
    %v2868 = vmul.f32 %v2837, 1.442695
    %v2869 = vpow.pop %v2868
    %2870 = vadd.xlane.f32.xlu0 %v2839
    %v2871 = vpop.xlane.xlu0 %2870
    %2872 = vadd.xlane.f32.xlu0 %v2841
    %v2873 = vpop.xlane.xlu0 %2872
    %2874 = vadd.xlane.f32.xlu0 %v2843
    %v2875 = vpop.xlane.xlu0 %2874
    %2876 = vadd.xlane.f32.xlu0 %v2845
    %v2877 = vpop.xlane.xlu0 %2876
    %2878 = vadd.xlane.f32.xlu0 %v2847
    %v2879 = vpop.xlane.xlu0 %2878
    %2880 = vadd.xlane.f32.xlu0 %v2849
    %v2881 = vpop.xlane.xlu0 %2880
    %2882 = vadd.xlane.f32.xlu0 %v2851
    %v2883 = vpop.xlane.xlu0 %2882
    %2884 = vadd.xlane.f32.xlu0 %v2853
    %v2885 = vpop.xlane.xlu0 %2884
    %2886 = vadd.xlane.f32.xlu0 %v2855
    %v2887 = vpop.xlane.xlu0 %2886
    %2888 = vadd.xlane.f32.xlu0 %v2857
    %v2889 = vpop.xlane.xlu0 %2888
    %2890 = vadd.xlane.f32.xlu0 %v2859
    %v2891 = vpop.xlane.xlu0 %2890
    %2892 = vadd.xlane.f32.xlu0 %v2861
    %v2893 = vpop.xlane.xlu0 %2892
    %2894 = vadd.xlane.f32.xlu0 %v2863
    %v2895 = vpop.xlane.xlu0 %2894
    %2896 = vadd.xlane.f32.xlu0 %v2865
    %v2897 = vpop.xlane.xlu0 %2896
    %2898 = vadd.xlane.f32.xlu0 %v2867
    %v2899 = vpop.xlane.xlu0 %2898
    %2900 = vadd.xlane.f32.xlu0 %v2869
    %v2901 = vpop.xlane.xlu0 %2900
    %v2902 = vmax.f32 %v2871, 1e-20
    %v2903 = vmax.f32 %v2873, 1e-20
    %v2904 = vmax.f32 %v2875, 1e-20
    %v2905 = vmax.f32 %v2877, 1e-20
    %v2906 = vmax.f32 %v2879, 1e-20
    %v2907 = vmax.f32 %v2881, 1e-20
    %v2908 = vmax.f32 %v2883, 1e-20
    %v2909 = vmax.f32 %v2885, 1e-20
    %v2910 = vmax.f32 %v2887, 1e-20
    %v2911 = vmax.f32 %v2889, 1e-20
    %v2912 = vmax.f32 %v2891, 1e-20
    %v2913 = vmax.f32 %v2893, 1e-20
    %v2914 = vmax.f32 %v2895, 1e-20
    %v2915 = vmax.f32 %v2897, 1e-20
    %v2916 = vmax.f32 %v2899, 1e-20
    %v2917 = vmax.f32 %v2901, 1e-20
    %v2918 = vpack.c.bf16 %v2841, %v2839
    %v2919 = vpack.c.bf16 %v2845, %v2843
    %v2920 = vpack.c.bf16 %v2849, %v2847
    %v2921 = vpack.c.bf16 %v2853, %v2851
    %v2922 = vpack.c.bf16 %v2857, %v2855
    %v2923 = vpack.c.bf16 %v2861, %v2859
    %v2924 = vpack.c.bf16 %v2865, %v2863
    %v2925 = vpack.c.bf16 %v2869, %v2867
    %v2926 = vpack.c.bf16 %v2418, %v2414
    %v2927 = vpack.c.bf16 %v2420, %v2416
    %v2928 = vpack.c.bf16 %v2428, %v2424
    %v2929 = vpack.c.bf16 %v2430, %v2426
    %v2930 = vpack.c.bf16 %v2438, %v2434
    %v2931 = vpack.c.bf16 %v2440, %v2436
    %v2932 = vpack.c.bf16 %v2448, %v2444
    %v2933 = vpack.c.bf16 %v2450, %v2446
    %v2934 = vpack.c.bf16 %v2458, %v2454
    %v2935 = vpack.c.bf16 %v2460, %v2456
    %v2936 = vpack.c.bf16 %v2468, %v2464
    %v2937 = vpack.c.bf16 %v2470, %v2466
    %v2938 = vpack.c.bf16 %v2478, %v2474
    %v2939 = vpack.c.bf16 %v2480, %v2476
    %v2940 = vpack.c.bf16 %v2488, %v2484
    %v2941 = vpack.c.bf16 %v2490, %v2486
    %2942 = vmatprep.subr.bf16.mxu0 %v2927
    %2943 = vmatpush1.bf16.msra.mxu0 %v2926
    %2944 = vmatprep.subr.bf16.mxu0 %v2929
    %2945 = vmatpush1.bf16.msra.mxu0 %v2928
    %2946 = vmatprep.subr.bf16.mxu0 %v2931
    %2947 = vmatpush1.bf16.msra.mxu0 %v2930
    %2948 = vmatprep.subr.bf16.mxu0 %v2933
    %2949 = vmatpush1.bf16.msra.mxu0 %v2932
    %2950 = vmatprep.subr.bf16.mxu0 %v2935
    %2951 = vmatpush1.bf16.msra.mxu0 %v2934
    %2952 = vmatprep.subr.bf16.mxu0 %v2937
    %2953 = vmatpush1.bf16.msra.mxu0 %v2936
    %2954 = vmatprep.subr.bf16.mxu0 %v2939
    %2955 = vmatpush1.bf16.msra.mxu0 %v2938
    %2956 = vmatprep.subr.bf16.mxu0 %v2941
    %2957 = vmatpush1.bf16.msra.mxu0 %v2940
    %2958 = vmatprep.subr.bf16.mxu0 0
    %2959 = vmatpush1.bf16.msra.mxu0 0
    %2960 = vmatprep.subr.bf16.mxu0 0
    %2961 = vmatpush1.bf16.msra.mxu0 0
    %2962 = vmatprep.subr.bf16.mxu0 0
    %2963 = vmatpush1.bf16.msra.mxu0 0
    %2964 = vmatprep.subr.bf16.mxu0 0
    %2965 = vmatpush1.bf16.msra.mxu0 0
    %2966 = vmatprep.subr.bf16.mxu0 0
    %2967 = vmatpush1.bf16.msra.mxu0 0
    %2968 = vmatprep.subr.bf16.mxu0 0
    %2969 = vmatpush1.bf16.msra.mxu0 0
    %2970 = vmatprep.subr.bf16.mxu0 0
    %2971 = vmatpush1.bf16.msra.mxu0 0
    %2972 = vmatprep.subr.bf16.mxu0 0
    %2973 = vmatpush1.bf16.msra.mxu0 0
    %2974 = vmatprep.mubr.bf16.mxu0 0
    %2975 = vmatmul.mubr.bf16.gmra.mrb[0].mxu0 %v2918
    %v2976 = vpop.f32.mrb[0].mxu0
    %v2977 = vadd.f32 0.0, %v2976
    %v2978 = vpop.f32.mrb[0].mxu0
    %v2979 = vadd.f32 0.0, %v2978
    %v2980 = vpop.f32.mrb[0].mxu0
    %v2981 = vadd.f32 0.0, %v2980
    %v2982 = vpop.f32.mrb[0].mxu0
    %v2983 = vadd.f32 0.0, %v2982
    %2984 = vmatprep.mubr.bf16.mxu0 0
    %2985 = vmatmul.mubr.bf16.gmra.mrb[0].mxu0 %v2919
    %v2986 = vpop.f32.mrb[0].mxu0
    %v2987 = vadd.f32 0.0, %v2986
    %v2988 = vpop.f32.mrb[0].mxu0
    %v2989 = vadd.f32 0.0, %v2988
    %v2990 = vpop.f32.mrb[0].mxu0
    %v2991 = vadd.f32 0.0, %v2990
    %v2992 = vpop.f32.mrb[0].mxu0
    %v2993 = vadd.f32 0.0, %v2992
    %2994 = vmatprep.mubr.bf16.mxu0 0
    %2995 = vmatmul.mubr.bf16.gmra.mrb[0].mxu0 %v2920
    %v2996 = vpop.f32.mrb[0].mxu0
    %v2997 = vadd.f32 0.0, %v2996
    %v2998 = vpop.f32.mrb[0].mxu0
    %v2999 = vadd.f32 0.0, %v2998
    %v3000 = vpop.f32.mrb[0].mxu0
    %v3001 = vadd.f32 0.0, %v3000
    %v3002 = vpop.f32.mrb[0].mxu0
    %v3003 = vadd.f32 0.0, %v3002
    %3004 = vmatprep.mubr.bf16.mxu0 0
    %3005 = vmatmul.mubr.bf16.gmra.mrb[0].mxu0 %v2921
    %v3006 = vpop.f32.mrb[0].mxu0
    %v3007 = vadd.f32 0.0, %v3006
    %v3008 = vpop.f32.mrb[0].mxu0
    %v3009 = vadd.f32 0.0, %v3008
    %v3010 = vpop.f32.mrb[0].mxu0
    %v3011 = vadd.f32 0.0, %v3010
    %v3012 = vpop.f32.mrb[0].mxu0
    %v3013 = vadd.f32 0.0, %v3012
    %3014 = vmatprep.mubr.bf16.mxu0 0
    %3015 = vmatmul.mubr.bf16.gmra.mrb[0].mxu0 %v2922
    %v3016 = vpop.f32.mrb[0].mxu0
    %v3017 = vadd.f32 0.0, %v3016
    %v3018 = vpop.f32.mrb[0].mxu0
    %v3019 = vadd.f32 0.0, %v3018
    %v3020 = vpop.f32.mrb[0].mxu0
    %v3021 = vadd.f32 0.0, %v3020
    %v3022 = vpop.f32.mrb[0].mxu0
    %v3023 = vadd.f32 0.0, %v3022
    %3024 = vmatprep.mubr.bf16.mxu0 0
    %3025 = vmatmul.mubr.bf16.gmra.mrb[0].mxu0 %v2923
    %v3026 = vpop.f32.mrb[0].mxu0
    %v3027 = vadd.f32 0.0, %v3026
    %v3028 = vpop.f32.mrb[0].mxu0
    %v3029 = vadd.f32 0.0, %v3028
    %v3030 = vpop.f32.mrb[0].mxu0
    %v3031 = vadd.f32 0.0, %v3030
    %v3032 = vpop.f32.mrb[0].mxu0
    %v3033 = vadd.f32 0.0, %v3032
    %3034 = vmatprep.mubr.bf16.mxu0 0
    %3035 = vmatmul.mubr.bf16.gmra.mrb[0].mxu0 %v2924
    %v3036 = vpop.f32.mrb[0].mxu0
    %v3037 = vadd.f32 0.0, %v3036
    %v3038 = vpop.f32.mrb[0].mxu0
    %v3039 = vadd.f32 0.0, %v3038
    %v3040 = vpop.f32.mrb[0].mxu0
    %v3041 = vadd.f32 0.0, %v3040
    %v3042 = vpop.f32.mrb[0].mxu0
    %v3043 = vadd.f32 0.0, %v3042
    %3044 = vmatprep.mubr.bf16.mxu0 0
    %3045 = vmatmul.mubr.bf16.gmra.mrb[0].mxu0 %v2925
    %v3046 = vpop.f32.mrb[0].mxu0
    %v3047 = vadd.f32 0.0, %v3046
    %v3048 = vpop.f32.mrb[0].mxu0
    %v3049 = vadd.f32 0.0, %v3048
    %v3050 = vpop.f32.mrb[0].mxu0
    %v3051 = vadd.f32 0.0, %v3050
    %v3052 = vpop.f32.mrb[0].mxu0
    %v3053 = vadd.f32 0.0, %v3052
    %3054 = vdwg.mxu0
    %v3055 = vrcp.pop %v2902
    %v3056 = vrcp.pop %v2903
    %v3057 = vrcp.pop %v2904
    %v3058 = vrcp.pop %v2905
    %v3059 = vrcp.pop %v2906
    %v3060 = vrcp.pop %v2907
    %v3061 = vrcp.pop %v2908
    %v3062 = vrcp.pop %v2909
    %v3063 = vrcp.pop %v2910
    %v3064 = vrcp.pop %v2911
    %v3065 = vrcp.pop %v2912
    %v3066 = vrcp.pop %v2913
    %v3067 = vrcp.pop %v2914
    %v3068 = vrcp.pop %v2915
    %v3069 = vrcp.pop %v2916
    %v3070 = vrcp.pop %v2917
    %v3071 = vmul.f32 %v2977, %v3055
    %v3072 = vmul.f32 %v2979, %v3055
    %v3073 = vmul.f32 %v2981, %v3056
    %v3074 = vmul.f32 %v2983, %v3056
    %v3075 = vmul.f32 %v2987, %v3057
    %v3076 = vmul.f32 %v2989, %v3057
    %v3077 = vmul.f32 %v2991, %v3058
    %v3078 = vmul.f32 %v2993, %v3058
    %v3079 = vmul.f32 %v2997, %v3059
    %v3080 = vmul.f32 %v2999, %v3059
    %v3081 = vmul.f32 %v3001, %v3060
    %v3082 = vmul.f32 %v3003, %v3060
    %v3083 = vmul.f32 %v3007, %v3061
    %v3084 = vmul.f32 %v3009, %v3061
    %v3085 = vmul.f32 %v3011, %v3062
    %v3086 = vmul.f32 %v3013, %v3062
    %v3087 = vmul.f32 %v3017, %v3063
    %v3088 = vmul.f32 %v3019, %v3063
    %v3089 = vmul.f32 %v3021, %v3064
    %v3090 = vmul.f32 %v3023, %v3064
    %v3091 = vmul.f32 %v3027, %v3065
    %v3092 = vmul.f32 %v3029, %v3065
    %v3093 = vmul.f32 %v3031, %v3066
    %v3094 = vmul.f32 %v3033, %v3066
    %v3095 = vmul.f32 %v3037, %v3067
    %v3096 = vmul.f32 %v3039, %v3067
    %v3097 = vmul.f32 %v3041, %v3068
    %v3098 = vmul.f32 %v3043, %v3068
    %v3099 = vmul.f32 %v3047, %v3069
    %v3100 = vmul.f32 %v3049, %v3069
    %v3101 = vmul.f32 %v3051, %v3070
    %v3102 = vmul.f32 %v3053, %v3070
    %v3104 = vlaneseq
    %v3105 = vshrl.u32 %v3104, 7
    %v3106 = vsub.s32 0, %v3105
    %v3107 = vrot.slane %v2202, %v3106
    %v3108 = vlaneseq
    %v3109 = vshrl.u32 %v3108, 7
    %v3110 = vsub.s32 1, %v3109
    %v3111 = vrot.slane %v2202, %v3110
    %v3114 = vadd.f32 %v3071, %v3107
    %v3115 = vadd.f32 %v3072, %v3111
    %v3116 = vadd.f32 %v3073, %v3107
    %v3117 = vadd.f32 %v3074, %v3111
    %v3118 = vadd.f32 %v3075, %v3107
    %v3119 = vadd.f32 %v3076, %v3111
    %v3120 = vadd.f32 %v3077, %v3107
    %v3121 = vadd.f32 %v3078, %v3111
    %v3122 = vadd.f32 %v3079, %v3107
    %v3123 = vadd.f32 %v3080, %v3111
    %v3124 = vadd.f32 %v3081, %v3107
    %v3125 = vadd.f32 %v3082, %v3111
    %v3126 = vadd.f32 %v3083, %v3107
    %v3127 = vadd.f32 %v3084, %v3111
    %v3128 = vadd.f32 %v3085, %v3107
    %v3129 = vadd.f32 %v3086, %v3111
    %v3130 = vadd.f32 %v3087, %v3107
    %v3131 = vadd.f32 %v3088, %v3111
    %v3132 = vadd.f32 %v3089, %v3107
    %v3133 = vadd.f32 %v3090, %v3111
    %v3134 = vadd.f32 %v3091, %v3107
    %v3135 = vadd.f32 %v3092, %v3111
    %v3136 = vadd.f32 %v3093, %v3107
    %v3137 = vadd.f32 %v3094, %v3111
    %v3138 = vadd.f32 %v3095, %v3107
    %v3139 = vadd.f32 %v3096, %v3111
    %v3140 = vadd.f32 %v3097, %v3107
    %v3141 = vadd.f32 %v3098, %v3111
    %v3142 = vadd.f32 %v3099, %v3107
    %v3143 = vadd.f32 %v3100, %v3111
    %v3144 = vadd.f32 %v3101, %v3107
    %v3145 = vadd.f32 %v3102, %v3111
    %v3146 = vmax.f32 %v3114, 0.0
    %v3147 = vmax.f32 %v3115, 0.0
    %v3148 = vmax.f32 %v3116, 0.0
    %v3149 = vmax.f32 %v3117, 0.0
    %v3150 = vmax.f32 %v3118, 0.0
    %v3151 = vmax.f32 %v3119, 0.0
    %v3152 = vmax.f32 %v3120, 0.0
    %v3153 = vmax.f32 %v3121, 0.0
    %v3154 = vmax.f32 %v3122, 0.0
    %v3155 = vmax.f32 %v3123, 0.0
    %v3156 = vmax.f32 %v3124, 0.0
    %v3157 = vmax.f32 %v3125, 0.0
    %v3158 = vmax.f32 %v3126, 0.0
    %v3159 = vmax.f32 %v3127, 0.0
    %v3160 = vmax.f32 %v3128, 0.0
    %v3161 = vmax.f32 %v3129, 0.0
    %v3162 = vmax.f32 %v3130, 0.0
    %v3163 = vmax.f32 %v3131, 0.0
    %v3164 = vmax.f32 %v3132, 0.0
    %v3165 = vmax.f32 %v3133, 0.0
    %v3166 = vmax.f32 %v3134, 0.0
    %v3167 = vmax.f32 %v3135, 0.0
    %v3168 = vmax.f32 %v3136, 0.0
    %v3169 = vmax.f32 %v3137, 0.0
    %v3170 = vmax.f32 %v3138, 0.0
    %v3171 = vmax.f32 %v3139, 0.0
    %v3172 = vmax.f32 %v3140, 0.0
    %v3173 = vmax.f32 %v3141, 0.0
    %v3174 = vmax.f32 %v3142, 0.0
    %v3175 = vmax.f32 %v3143, 0.0
    %v3176 = vmax.f32 %v3144, 0.0
    %v3177 = vmax.f32 %v3145, 0.0
    %v3178 = vld [vmem:[%s2] sm:$0xff]
    %v3179 = vld [vmem:[%s2 + $0x8] sm:$0xff]
    %v3180 = vpack.c.bf16 %v3179, %v3178
    %v3181 = vpack.c.bf16 %v3148, %v3146
    %v3182 = vpack.c.bf16 %v3149, %v3147
    %v3183 = vpack.c.bf16 %v3152, %v3150
    %v3184 = vpack.c.bf16 %v3153, %v3151
    %v3185 = vpack.c.bf16 %v3156, %v3154
    %v3186 = vpack.c.bf16 %v3157, %v3155
    %v3187 = vpack.c.bf16 %v3160, %v3158
    %v3188 = vpack.c.bf16 %v3161, %v3159
    %v3189 = vpack.c.bf16 %v3164, %v3162
    %v3190 = vpack.c.bf16 %v3165, %v3163
    %v3191 = vpack.c.bf16 %v3168, %v3166
    %v3192 = vpack.c.bf16 %v3169, %v3167
    %v3193 = vpack.c.bf16 %v3172, %v3170
    %v3194 = vpack.c.bf16 %v3173, %v3171
    %v3195 = vpack.c.bf16 %v3176, %v3174
    %v3196 = vpack.c.bf16 %v3177, %v3175
    %3197 = vmatprep.subr.bf16.mxu0 %v3182
    %3198 = vmatpush1.bf16.msra.mxu0 %v3181
    %3199 = vmatprep.subr.bf16.mxu0 %v3184
    %3200 = vmatpush1.bf16.msra.mxu0 %v3183
    %3201 = vmatprep.subr.bf16.mxu0 %v3186
    %3202 = vmatpush1.bf16.msra.mxu0 %v3185
    %3203 = vmatprep.subr.bf16.mxu0 %v3188
    %3204 = vmatpush1.bf16.msra.mxu0 %v3187
    %3205 = vmatprep.subr.bf16.mxu0 %v3190
    %3206 = vmatpush1.bf16.msra.mxu0 %v3189
    %3207 = vmatprep.subr.bf16.mxu0 %v3192
    %3208 = vmatpush1.bf16.msra.mxu0 %v3191
    %3209 = vmatprep.subr.bf16.mxu0 %v3194
    %3210 = vmatpush1.bf16.msra.mxu0 %v3193
    %3211 = vmatprep.subr.bf16.mxu0 %v3196
    %3212 = vmatpush1.bf16.msra.mxu0 %v3195
    %3213 = vmatprep.subr.bf16.mxu0 0
    %3214 = vmatpush1.bf16.msra.mxu0 0
    %3215 = vmatprep.subr.bf16.mxu0 0
    %3216 = vmatpush1.bf16.msra.mxu0 0
    %3217 = vmatprep.subr.bf16.mxu0 0
    %3218 = vmatpush1.bf16.msra.mxu0 0
    %3219 = vmatprep.subr.bf16.mxu0 0
    %3220 = vmatpush1.bf16.msra.mxu0 0
    %3221 = vmatprep.subr.bf16.mxu0 0
    %3222 = vmatpush1.bf16.msra.mxu0 0
    %3223 = vmatprep.subr.bf16.mxu0 0
    %3224 = vmatpush1.bf16.msra.mxu0 0
    %3225 = vmatprep.subr.bf16.mxu0 0
    %3226 = vmatpush1.bf16.msra.mxu0 0
    %3227 = vmatprep.subr.bf16.mxu0 0
    %3228 = vmatpush1.bf16.msra.mxu0 0
    %3229 = vmatprep.mubr.bf16.mxu0 0
    %3230 = vmatmul.mubr.bf16.gmra.mrb[0].mxu0 %v3180
    %v3231 = vpop.f32.mrb[0].mxu0
    %v3232 = vadd.f32 0.0, %v3231
    %v3233 = vpop.f32.mrb[0].mxu0
    %v3234 = vadd.f32 0.0, %v3233
    %v3235 = vpop.f32.mrb[0].mxu0
    %v3236 = vadd.f32 0.0, %v3235
    %v3237 = vpop.f32.mrb[0].mxu0
    %v3238 = vadd.f32 0.0, %v3237
    %3239 = vdwg.mxu0
    %v3240 = vpack.c.bf16 %v3236, %v3232
    %v3241 = vpack.c.bf16 %v3238, %v3234
    %v3242 = vld [vmem:[#allocation22] sm:$0xff]
    %v3243 = vld [vmem:[#allocation22 + $0x8] sm:$0xff]
    %v3244 = vld [vmem:[#allocation22 + $0x10] sm:$0xff]
    %v3245 = vld [vmem:[#allocation22 + $0x18] sm:$0xff]
    %v3246 = vld [vmem:[#allocation22 + $0x20] sm:$0xff]
    %v3247 = vld [vmem:[#allocation22 + $0x28] sm:$0xff]
    %v3248 = vld [vmem:[#allocation22 + $0x30] sm:$0xff]
    %v3249 = vld [vmem:[#allocation22 + $0x38] sm:$0xff]
    %v3250 = vld [vmem:[#allocation22 + $0x40] sm:$0xff]
    %v3251 = vld [vmem:[#allocation22 + $0x48] sm:$0xff]
    %v3252 = vld [vmem:[#allocation22 + $0x50] sm:$0xff]
    %v3253 = vld [vmem:[#allocation22 + $0x58] sm:$0xff]
    %v3254 = vld [vmem:[#allocation22 + $0x60] sm:$0xff]
    %v3255 = vld [vmem:[#allocation22 + $0x68] sm:$0xff]
    %v3256 = vld [vmem:[#allocation22 + $0x70] sm:$0xff]
    %v3257 = vld [vmem:[#allocation22 + $0x78] sm:$0xff]
    %v3258 = vld [vmem:[#allocation22 + $0x80] sm:$0xff]
    %v3259 = vld [vmem:[#allocation22 + $0x88] sm:$0xff]
    %v3260 = vld [vmem:[#allocation22 + $0x90] sm:$0xff]
    %v3261 = vld [vmem:[#allocation22 + $0x98] sm:$0xff]
    %v3262 = vld [vmem:[#allocation22 + $0xa0] sm:$0xff]
    %v3263 = vld [vmem:[#allocation22 + $0xa8] sm:$0xff]
    %v3264 = vld [vmem:[#allocation22 + $0xb0] sm:$0xff]
    %v3265 = vld [vmem:[#allocation22 + $0xb8] sm:$0xff]
    %v3266 = vld [vmem:[#allocation22 + $0xc0] sm:$0xff]
    %v3267 = vld [vmem:[#allocation22 + $0xc8] sm:$0xff]
    %v3268 = vld [vmem:[#allocation22 + $0xd0] sm:$0xff]
    %v3269 = vld [vmem:[#allocation22 + $0xd8] sm:$0xff]
    %v3270 = vld [vmem:[#allocation22 + $0xe0] sm:$0xff]
    %v3271 = vld [vmem:[#allocation22 + $0xe8] sm:$0xff]
    %v3272 = vld [vmem:[#allocation22 + $0xf0] sm:$0xff]
    %v3273 = vld [vmem:[#allocation22 + $0xf8] sm:$0xff]
    %v3274 = vld [vmem:[%s3] sm:$0xff]
    %v3275 = vld [vmem:[%s3 + $0x8] sm:$0xff]
    %v3276 = vpack.c.bf16 %v3275, %v3274
    %v3277 = vld [vmem:[#allocation23] sm:$0xff]
    %v3279 = vunpack.c.l.b16 %v3277
    %v3280 = vunpack.c.h.b16 %v3277
    %v3281 = vpack.c.b16 %v3279, %v3279
    %v3282 = vpack.c.b16 %v3280, %v3280
    %vm3283 = vcmask 64512
    %v3285 = vsel %vm3283, %v3276, 0
    %vm3287 = vcmask 1043456
    %v3289 = vsel %vm3287, %v3281, 0
    %v3292 = vsel %vm3287, %v3282, 0
    %3294 = vmatprep.subr.bf16.mxu0 %v3292
    %3295 = vmatpush1.bf16.msra.mxu0 %v3289
    %3296 = vmatprep.subr.bf16.mxu0 0
    %3297 = vmatpush1.bf16.msra.mxu0 0
    %3298 = vmatprep.subr.bf16.mxu0 0
    %3299 = vmatpush1.bf16.msra.mxu0 0
    %3300 = vmatprep.subr.bf16.mxu0 0
    %3301 = vmatpush1.bf16.msra.mxu0 0
    %3302 = vmatprep.subr.bf16.mxu0 0
    %3303 = vmatpush1.bf16.msra.mxu0 0
    %3304 = vmatprep.subr.bf16.mxu0 0
    %3305 = vmatpush1.bf16.msra.mxu0 0
    %3306 = vmatprep.subr.bf16.mxu0 0
    %3307 = vmatpush1.bf16.msra.mxu0 0
    %3308 = vmatprep.subr.bf16.mxu0 0
    %3309 = vmatpush1.bf16.msra.mxu0 0
    %3310 = vmatprep.subr.bf16.mxu0 0
    %3311 = vmatpush1.bf16.msra.mxu0 0
    %3312 = vmatprep.subr.bf16.mxu0 0
    %3313 = vmatpush1.bf16.msra.mxu0 0
    %3314 = vmatprep.subr.bf16.mxu0 0
    %3315 = vmatpush1.bf16.msra.mxu0 0
    %3316 = vmatprep.subr.bf16.mxu0 0
    %3317 = vmatpush1.bf16.msra.mxu0 0
    %3318 = vmatprep.subr.bf16.mxu0 0
    %3319 = vmatpush1.bf16.msra.mxu0 0
    %3320 = vmatprep.subr.bf16.mxu0 0
    %3321 = vmatpush1.bf16.msra.mxu0 0
    %3322 = vmatprep.subr.bf16.mxu0 0
    %3323 = vmatpush1.bf16.msra.mxu0 0
    %3324 = vmatprep.subr.bf16.mxu0 0
    %3325 = vmatpush1.bf16.msra.mxu0 0
    %3326 = vmatprep.mubr.bf16.mxu0 0
    %3327 = vmatmul.mubr.bf16.gmra.mrb[0].mxu0 %v3285
    %v3328 = vpop.f32.mrb[0].mxu0
    %v3329 = vadd.f32 0.0, %v3328
    %v3330 = vpop.f32.mrb[0].mxu0
    %v3331 = vadd.f32 0.0, %v3330
    %v3332 = vpop.f32.mrb[0].mxu0
    %v3333 = vadd.f32 0.0, %v3332
    %v3334 = vpop.f32.mrb[0].mxu0
    %v3335 = vadd.f32 0.0, %v3334
    %3336 = vdwg.mxu0
    %v3369 = vunpack.c.l.b16 %v3242
    %v3370 = vunpack.c.h.b16 %v3242
    %v3371 = vunpack.c.l.b16 %v3243
    %v3372 = vunpack.c.h.b16 %v3243
    %v3373 = vunpack.c.l.b16 %v3244
    %v3374 = vunpack.c.h.b16 %v3244
    %v3375 = vunpack.c.l.b16 %v3245
    %v3376 = vunpack.c.h.b16 %v3245
    %v3377 = vunpack.c.l.b16 %v3246
    %v3378 = vunpack.c.h.b16 %v3246
    %v3379 = vunpack.c.l.b16 %v3247
    %v3380 = vunpack.c.h.b16 %v3247
    %v3381 = vunpack.c.l.b16 %v3248
    %v3382 = vunpack.c.h.b16 %v3248
    %v3383 = vunpack.c.l.b16 %v3249
    %v3384 = vunpack.c.h.b16 %v3249
    %v3385 = vunpack.c.l.b16 %v3250
    %v3386 = vunpack.c.h.b16 %v3250
    %v3387 = vunpack.c.l.b16 %v3251
    %v3388 = vunpack.c.h.b16 %v3251
    %v3389 = vunpack.c.l.b16 %v3252
    %v3390 = vunpack.c.h.b16 %v3252
    %v3391 = vunpack.c.l.b16 %v3253
    %v3392 = vunpack.c.h.b16 %v3253
    %v3393 = vunpack.c.l.b16 %v3254
    %v3394 = vunpack.c.h.b16 %v3254
    %v3395 = vunpack.c.l.b16 %v3255
    %v3396 = vunpack.c.h.b16 %v3255
    %v3397 = vunpack.c.l.b16 %v3256
    %v3398 = vunpack.c.h.b16 %v3256
    %v3399 = vunpack.c.l.b16 %v3257
    %v3400 = vunpack.c.h.b16 %v3257
    %v3401 = vunpack.c.l.b16 %v3258
    %v3402 = vunpack.c.h.b16 %v3258
    %v3403 = vunpack.c.l.b16 %v3259
    %v3404 = vunpack.c.h.b16 %v3259
    %v3405 = vunpack.c.l.b16 %v3260
    %v3406 = vunpack.c.h.b16 %v3260
    %v3407 = vunpack.c.l.b16 %v3261
    %v3408 = vunpack.c.h.b16 %v3261
    %v3409 = vunpack.c.l.b16 %v3262
    %v3410 = vunpack.c.h.b16 %v3262
    %v3411 = vunpack.c.l.b16 %v3263
    %v3412 = vunpack.c.h.b16 %v3263
    %v3413 = vunpack.c.l.b16 %v3264
    %v3414 = vunpack.c.h.b16 %v3264
    %v3415 = vunpack.c.l.b16 %v3265
    %v3416 = vunpack.c.h.b16 %v3265
    %v3417 = vunpack.c.l.b16 %v3266
    %v3418 = vunpack.c.h.b16 %v3266
    %v3419 = vunpack.c.l.b16 %v3267
    %v3420 = vunpack.c.h.b16 %v3267
    %v3421 = vunpack.c.l.b16 %v3268
    %v3422 = vunpack.c.h.b16 %v3268
    %v3423 = vunpack.c.l.b16 %v3269
    %v3424 = vunpack.c.h.b16 %v3269
    %v3425 = vunpack.c.l.b16 %v3270
    %v3426 = vunpack.c.h.b16 %v3270
    %v3427 = vunpack.c.l.b16 %v3271
    %v3428 = vunpack.c.h.b16 %v3271
    %v3429 = vunpack.c.l.b16 %v3272
    %v3430 = vunpack.c.h.b16 %v3272
    %v3431 = vunpack.c.l.b16 %v3273
    %v3432 = vunpack.c.h.b16 %v3273
    %v3433 = vpack.c.b16 %v3371, %v3369
    %v3434 = vpack.c.b16 %v3372, %v3370
    %v3435 = vpack.c.b16 %v3375, %v3373
    %v3436 = vpack.c.b16 %v3376, %v3374
    %v3437 = vpack.c.b16 %v3379, %v3377
    %v3438 = vpack.c.b16 %v3380, %v3378
    %v3439 = vpack.c.b16 %v3383, %v3381
    %v3440 = vpack.c.b16 %v3384, %v3382
    %v3441 = vpack.c.b16 %v3387, %v3385
    %v3442 = vpack.c.b16 %v3388, %v3386
    %v3443 = vpack.c.b16 %v3391, %v3389
    %v3444 = vpack.c.b16 %v3392, %v3390
    %v3445 = vpack.c.b16 %v3395, %v3393
    %v3446 = vpack.c.b16 %v3396, %v3394
    %v3447 = vpack.c.b16 %v3399, %v3397
    %v3448 = vpack.c.b16 %v3400, %v3398
    %v3449 = vpack.c.b16 %v3403, %v3401
    %v3450 = vpack.c.b16 %v3404, %v3402
    %v3451 = vpack.c.b16 %v3407, %v3405
    %v3452 = vpack.c.b16 %v3408, %v3406
    %v3453 = vpack.c.b16 %v3411, %v3409
    %v3454 = vpack.c.b16 %v3412, %v3410
    %v3455 = vpack.c.b16 %v3415, %v3413
    %v3456 = vpack.c.b16 %v3416, %v3414
    %v3457 = vpack.c.b16 %v3419, %v3417
    %v3458 = vpack.c.b16 %v3420, %v3418
    %v3459 = vpack.c.b16 %v3423, %v3421
    %v3460 = vpack.c.b16 %v3424, %v3422
    %v3461 = vpack.c.b16 %v3427, %v3425
    %v3462 = vpack.c.b16 %v3428, %v3426
    %v3463 = vpack.c.b16 %v3431, %v3429
    %v3464 = vpack.c.b16 %v3432, %v3430
    %3497 = vmatprep.subr.bf16.mxu0 %v3434
    %3498 = vmatpush1.bf16.msra.mxu0 %v3433
    %3499 = vmatprep.subr.bf16.mxu0 %v3436
    %3500 = vmatpush1.bf16.msra.mxu0 %v3435
    %3501 = vmatprep.subr.bf16.mxu0 %v3438
    %3502 = vmatpush1.bf16.msra.mxu0 %v3437
    %3503 = vmatprep.subr.bf16.mxu0 %v3440
    %3504 = vmatpush1.bf16.msra.mxu0 %v3439
    %3505 = vmatprep.subr.bf16.mxu0 %v3442
    %3506 = vmatpush1.bf16.msra.mxu0 %v3441
    %3507 = vmatprep.subr.bf16.mxu0 %v3444
    %3508 = vmatpush1.bf16.msra.mxu0 %v3443
    %3509 = vmatprep.subr.bf16.mxu0 %v3446
    %3510 = vmatpush1.bf16.msra.mxu0 %v3445
    %3511 = vmatprep.subr.bf16.mxu0 %v3448
    %3512 = vmatpush1.bf16.msra.mxu0 %v3447
    %3513 = vmatprep.subr.bf16.mxu0 %v3450
    %3514 = vmatpush1.bf16.msra.mxu0 %v3449
    %3515 = vmatprep.subr.bf16.mxu0 %v3452
    %3516 = vmatpush1.bf16.msra.mxu0 %v3451
    %3517 = vmatprep.subr.bf16.mxu0 %v3454
    %3518 = vmatpush1.bf16.msra.mxu0 %v3453
    %3519 = vmatprep.subr.bf16.mxu0 %v3456
    %3520 = vmatpush1.bf16.msra.mxu0 %v3455
    %3521 = vmatprep.subr.bf16.mxu0 %v3458
    %3522 = vmatpush1.bf16.msra.mxu0 %v3457
    %3523 = vmatprep.subr.bf16.mxu0 %v3460
    %3524 = vmatpush1.bf16.msra.mxu0 %v3459
    %3525 = vmatprep.subr.bf16.mxu0 %v3462
    %3526 = vmatpush1.bf16.msra.mxu0 %v3461
    %3527 = vmatprep.subr.bf16.mxu0 %v3464
    %3528 = vmatpush1.bf16.msra.mxu0 %v3463
    %3529 = vmatprep.mubr.bf16.mxu0 %v3241
    %3530 = vmatmul.mubr.bf16.gmra.mrb[0].mxu0 %v3240
    %v3531 = vpop.f32.mrb[0].mxu0
    %v3532 = vadd.f32 %v3329, %v3531
    %v3533 = vpop.f32.mrb[0].mxu0
    %v3534 = vadd.f32 %v3331, %v3533
    %v3535 = vpop.f32.mrb[0].mxu0
    %v3536 = vadd.f32 %v3333, %v3535
    %v3537 = vpop.f32.mrb[0].mxu0
    %v3538 = vadd.f32 %v3335, %v3537
    %3539 = vdwg.mxu0
    %v3540 = vld [vmem:[#allocation25] sm:$0x3]
    %v3542 = vlaneseq
    %v3543 = vshrl.u32 %v3542, 7
    %v3544 = vsub.s32 0, %v3543
    %v3545 = vrot.slane %v3540, %v3544
    %v3546 = vlaneseq
    %v3547 = vshrl.u32 %v3546, 7
    %v3548 = vsub.s32 1, %v3547
    %v3549 = vrot.slane %v3540, %v3548
    %v3552 = vadd.f32 %v3532, %v3545
    %v3553 = vadd.f32 %v3534, %v3549
    %v3554 = vadd.f32 %v3536, %v3545
    %v3555 = vadd.f32 %v3538, %v3549
    %v3556 = vmax.f32 %v3552, 0.0
    %v3557 = vmax.f32 %v3553, 0.0
    %v3558 = vmax.f32 %v3554, 0.0
    %v3559 = vmax.f32 %v3555, 0.0
    %v3560 = vpack.c.bf16 %v3558, %v3556
    %v3561 = vpack.c.bf16 %v3559, %v3557
    %v3562 = vld [vmem:[%s19] sm:$0xf]
    %v3563 = vld [vmem:[%s19 + $0x4] sm:$0xf]
    %v3564 = vld [vmem:[%s19 + $0x8] sm:$0xf]
    %v3565 = vld [vmem:[%s19 + $0xc] sm:$0xf]
    %v3566 = vld [vmem:[%s19 + $0x10] sm:$0xf]
    %v3567 = vld [vmem:[%s19 + $0x14] sm:$0xf]
    %v3568 = vld [vmem:[%s19 + $0x18] sm:$0xf]
    %v3569 = vld [vmem:[%s19 + $0x1c] sm:$0xf]
    %v3570 = vld [vmem:[%s19 + $0x20] sm:$0xf]
    %v3571 = vld [vmem:[%s19 + $0x24] sm:$0xf]
    %v3572 = vld [vmem:[%s19 + $0x28] sm:$0xf]
    %v3573 = vld [vmem:[%s19 + $0x2c] sm:$0xf]
    %v3574 = vld [vmem:[%s19 + $0x30] sm:$0xf]
    %v3575 = vld [vmem:[%s19 + $0x34] sm:$0xf]
    %v3576 = vld [vmem:[%s19 + $0x38] sm:$0xf]
    %v3577 = vld [vmem:[%s19 + $0x3c] sm:$0xf]
    %v3578 = vld [vmem:[%s19 + $0x40] sm:$0xf]
    %v3579 = vld [vmem:[%s19 + $0x44] sm:$0xf]
    %v3580 = vld [vmem:[%s19 + $0x48] sm:$0xf]
    %v3581 = vld [vmem:[%s19 + $0x4c] sm:$0xf]
    %v3582 = vld [vmem:[%s19 + $0x50] sm:$0xf]
    %v3583 = vld [vmem:[%s19 + $0x54] sm:$0xf]
    %v3584 = vld [vmem:[%s19 + $0x58] sm:$0xf]
    %v3585 = vld [vmem:[%s19 + $0x5c] sm:$0xf]
    %v3586 = vld [vmem:[%s19 + $0x60] sm:$0xf]
    %v3587 = vld [vmem:[%s19 + $0x64] sm:$0xf]
    %v3588 = vld [vmem:[%s19 + $0x68] sm:$0xf]
    %v3589 = vld [vmem:[%s19 + $0x6c] sm:$0xf]
    %v3590 = vld [vmem:[%s19 + $0x70] sm:$0xf]
    %v3591 = vld [vmem:[%s19 + $0x74] sm:$0xf]
    %v3592 = vld [vmem:[%s19 + $0x78] sm:$0xf]
    %v3593 = vld [vmem:[%s19 + $0x7c] sm:$0xf]
    %v3594 = vld [vmem:[#allocation26] sm:$0x1]
    %v3596 = vlaneseq
    %v3597 = vshrl.u32 %v3596, 7
    %v3598 = vsub.s32 0, %v3597
    %v3599 = vrot.slane %v3594, %v3598
    %v3633 = vunpack.c.l.b16 %v3562
    %v3634 = vunpack.c.l.b16 %v3563
    %v3635 = vunpack.c.l.b16 %v3564
    %v3636 = vunpack.c.l.b16 %v3565
    %v3637 = vunpack.c.l.b16 %v3566
    %v3638 = vunpack.c.l.b16 %v3567
    %v3639 = vunpack.c.l.b16 %v3568
    %v3640 = vunpack.c.l.b16 %v3569
    %v3641 = vunpack.c.l.b16 %v3570
    %v3642 = vunpack.c.l.b16 %v3571
    %v3643 = vunpack.c.l.b16 %v3572
    %v3644 = vunpack.c.l.b16 %v3573
    %v3645 = vunpack.c.l.b16 %v3574
    %v3646 = vunpack.c.l.b16 %v3575
    %v3647 = vunpack.c.l.b16 %v3576
    %v3648 = vunpack.c.l.b16 %v3577
    %v3649 = vunpack.c.l.b16 %v3578
    %v3650 = vunpack.c.l.b16 %v3579
    %v3651 = vunpack.c.l.b16 %v3580
    %v3652 = vunpack.c.l.b16 %v3581
    %v3653 = vunpack.c.l.b16 %v3582
    %v3654 = vunpack.c.l.b16 %v3583
    %v3655 = vunpack.c.l.b16 %v3584
    %v3656 = vunpack.c.l.b16 %v3585
    %v3657 = vunpack.c.l.b16 %v3586
    %v3658 = vunpack.c.l.b16 %v3587
    %v3659 = vunpack.c.l.b16 %v3588
    %v3660 = vunpack.c.l.b16 %v3589
    %v3661 = vunpack.c.l.b16 %v3590
    %v3662 = vunpack.c.l.b16 %v3591
    %v3663 = vunpack.c.l.b16 %v3592
    %v3664 = vunpack.c.l.b16 %v3593
    %v3665 = vpack.c.b16 %v3634, %v3633
    %v3666 = vpack.c.b16 %v3636, %v3635
    %v3667 = vpack.c.b16 %v3638, %v3637
    %v3668 = vpack.c.b16 %v3640, %v3639
    %v3669 = vpack.c.b16 %v3642, %v3641
    %v3670 = vpack.c.b16 %v3644, %v3643
    %v3671 = vpack.c.b16 %v3646, %v3645
    %v3672 = vpack.c.b16 %v3648, %v3647
    %v3673 = vpack.c.b16 %v3650, %v3649
    %v3674 = vpack.c.b16 %v3652, %v3651
    %v3675 = vpack.c.b16 %v3654, %v3653
    %v3676 = vpack.c.b16 %v3656, %v3655
    %v3677 = vpack.c.b16 %v3658, %v3657
    %v3678 = vpack.c.b16 %v3660, %v3659
    %v3679 = vpack.c.b16 %v3662, %v3661
    %v3680 = vpack.c.b16 %v3664, %v3663
    %3697 = vmatprep.subr.bf16.mxu0 0
    %3698 = vmatpush1.bf16.msra.mxu0 %v3665
    %3699 = vmatprep.subr.bf16.mxu0 0
    %3700 = vmatpush1.bf16.msra.mxu0 %v3666
    %3701 = vmatprep.subr.bf16.mxu0 0
    %3702 = vmatpush1.bf16.msra.mxu0 %v3667
    %3703 = vmatprep.subr.bf16.mxu0 0
    %3704 = vmatpush1.bf16.msra.mxu0 %v3668
    %3705 = vmatprep.subr.bf16.mxu0 0
    %3706 = vmatpush1.bf16.msra.mxu0 %v3669
    %3707 = vmatprep.subr.bf16.mxu0 0
    %3708 = vmatpush1.bf16.msra.mxu0 %v3670
    %3709 = vmatprep.subr.bf16.mxu0 0
    %3710 = vmatpush1.bf16.msra.mxu0 %v3671
    %3711 = vmatprep.subr.bf16.mxu0 0
    %3712 = vmatpush1.bf16.msra.mxu0 %v3672
    %3713 = vmatprep.subr.bf16.mxu0 0
    %3714 = vmatpush1.bf16.msra.mxu0 %v3673
    %3715 = vmatprep.subr.bf16.mxu0 0
    %3716 = vmatpush1.bf16.msra.mxu0 %v3674
    %3717 = vmatprep.subr.bf16.mxu0 0
    %3718 = vmatpush1.bf16.msra.mxu0 %v3675
    %3719 = vmatprep.subr.bf16.mxu0 0
    %3720 = vmatpush1.bf16.msra.mxu0 %v3676
    %3721 = vmatprep.subr.bf16.mxu0 0
    %3722 = vmatpush1.bf16.msra.mxu0 %v3677
    %3723 = vmatprep.subr.bf16.mxu0 0
    %3724 = vmatpush1.bf16.msra.mxu0 %v3678
    %3725 = vmatprep.subr.bf16.mxu0 0
    %3726 = vmatpush1.bf16.msra.mxu0 %v3679
    %3727 = vmatprep.subr.bf16.mxu0 0
    %3728 = vmatpush1.bf16.msra.mxu0 %v3680
    %3729 = vmatprep.mubr.bf16.mxu0 %v3561
    %3730 = vmatmul.mubr.bf16.gmra.mrb[0].mxu0 %v3560
    %v3731 = vpop.f32.mrb[0].mxu0
    %v3732 = vadd.f32 %v3599, %v3731
    %v3733 = vpop.f32.mrb[0].mxu0
    %v3734 = vpop.f32.mrb[0].mxu0
    %v3735 = vadd.f32 %v3599, %v3734
    %v3736 = vpop.f32.mrb[0].mxu0
    %3737 = vdwg.mxu0
    %3738 = vst [vmem:[#allocation28] sm:$0xff] %v3732
    %3739 = vst [vmem:[#allocation28 + $0x8] sm:$0xff] %v3735
    // Predicated region
    $region150: #{gat_forward.1} parent=1 // pred_check
      _
    $region151: #{gat_forward.1} parent=1 // pred_check_branch
      %3741 = sbr.rel (0) target = $region153
    $region152: #{gat_forward.1} parent=1 // pred_region
      %s3743 = ssub.s32 256, 256
      %3744 = vsyncadd [#allocation4], %s3743
      %s3745 = sshll.u32 [#allocation28], 4
      %s3746 = int_to_ptr.vmem [resolvable:$true] %s3745
      %3751 = dma.vmem_to_hbm [thread:$0]  %s3746, 256, %s21, [#allocation4], 128, 128, 8
    $region153: #{gat_forward.1} parent=1 // pred_fallthru
      _
    // Predicated region
    $region154: #{gat_forward.1} parent=1 // pred_check
      _
    $region155: #{gat_forward.1} parent=1 // pred_check_branch
      %3753 = sbr.rel (0) target = $region157
    $region156: #{gat_forward.1} parent=1 // pred_region
      %3754 = dma.done [#allocation4], 256
    $region157: #{gat_forward.1} parent=1 // pred_fallthru
      _
    %3755 = vsyncpa [#allocation3], 1
    %3756 = vsyncpa [#allocation6], 1
    %3757 = vsyncpa [#allocation9], 1
    %3758 = vsyncpa [#allocation12], 1
    %3759 = vsyncpa [#allocation15], 1
    %3760 = vsyncpa [#allocation18], 1
    %3761 = vsyncpa [#allocation21], 1
    %3762 = vsyncpa [#allocation24], 1
    %3763 = vsyncpa [#allocation27], 1
    %3764 = vsyncpa [#allocation4], 1

</llo_original>
